<compile_context>
chip_gen: v7x
topology: tpu7x:2x2x1
jax: 0.10.0
libtpu: 0.0.40
codegen_flags: <defaults>
</compile_context>

<pallas_src>
import numpy as np
import jax
import jax.numpy as jnp
from jax import lax
from jax.experimental import pallas as pl
from jax.experimental.pallas import tpu as pltpu

VMEM = pl.BlockSpec(memory_space=pltpu.MemorySpace.VMEM)


# ----------------------------- fused Pallas kernel -----------------------------

def _cnn_fused_kernel(xt_ref, t1_ref, b1_ref, p1_ref, q1_ref,
                      t2_ref, b2_ref, p2_ref, q2_ref,
                      wfc_ref, bfc_ref, wh_ref, bh_ref, out_ref):
    f32, bf16 = jnp.float32, jnp.bfloat16

    def mm(a, b):
        return jnp.dot(a, b, preferred_element_type=f32)

    n = out_ref.shape[0]

    # conv1 (1->16, 3x3) + bias + ReLU.  The three kh taps were lane-concatenated in
    # the wrapper (layout plumbing only), so conv1 is a single K=84 MXU matmul.
    a1 = jnp.maximum(mm(xt_ref[...], t1_ref[...]) + b1_ref[...], 0.0)   # (n*42-2, 416) f32
    a1b = a1.astype(bf16)

    # maxpool1: rows first (P also crops the conv's valid 40 rows and skips the
    # cross-batch garbage rows), then columns.
    r1 = jnp.maximum(mm(p1_ref[0], a1b), mm(p1_ref[1], a1b))            # (n*20, 416) f32
    r1b = r1.astype(bf16)
    c1 = jnp.maximum(mm(r1b, q1_ref[0]), mm(r1b, q1_ref[1]))            # (n*20, 208) f32

    # conv2 (16->32, 3x3) + bias + ReLU.  kh taps are static row-slices of c1
    # (the former R row-shift matmuls are eliminated); three independent matmuls.
    rows2 = c1.shape[0] - 2
    a2 = (mm(c1[0:rows2, :].astype(bf16), t2_ref[0])
          + mm(c1[1:rows2 + 1, :].astype(bf16), t2_ref[1])) \
         + mm(c1[2:rows2 + 2, :].astype(bf16), t2_ref[2])
    a2 = jnp.maximum(a2 + b2_ref[...], 0.0)                             # (n*20-2, 352) f32
    a2b = a2.astype(bf16)

    # maxpool2: rows first (crop 20->18, h-major output rows), then columns.
    r2 = jnp.maximum(mm(p2_ref[0], a2b), mm(p2_ref[1], a2b))            # (9n, 352) f32
    r2b = r2.astype(bf16)
    c2 = jnp.maximum(mm(r2b, q2_ref[0]), mm(r2b, q2_ref[1]))            # (9n, 160) f32

    # fc Linear(1440, 128): nine INDEPENDENT slab matmuls, tree-reduced (no 9-deep
    # serial accumulate chain).  Flatten order is folded into the pre-permuted wfc.
    # TODO(synk): nn.Dropout(0.5) is eval-mode identity here (no train-mode RNG).
    parts = [mm(c2[hh * n:(hh + 1) * n, :].astype(bf16), wfc_ref[hh]) for hh in range(9)]
    s = ((parts[0] + parts[1]) + (parts[2] + parts[3])) \
        + ((parts[4] + parts[5]) + (parts[6] + parts[7])) + parts[8]
    h = s + bfc_ref[...]                                                # (n, 128) f32

    # two digit heads fused into one (128, 20) matmul
    out_ref[...] = mm(h.astype(bf16), wh_ref[...]) + bh_ref[...]


# --------------------- constant-matrix construction (init-time) ---------------------

def _band_weights(w, cout, cin, w_out, w_in):
    """Banded matrix: T[kh][u*cin+ci, v*cout+co] = w[co, ci, kh, u-v] (0<=u-v<=2)."""
    t = np.zeros((3, w_in * cin, w_out * cout), np.float32)
    for kh in range(3):
        for v in range(w_out):
            for kw in range(3):
                u = v + kw
                t[kh, u * cin:(u + 1) * cin, v * cout:(v + 1) * cout] = w[:, :, kh, kw].T
    return t


def _pool_w(w_in, w_out, c):
    """Qe/Qo select the even/odd columns of each 2-wide pooling window (per channel)."""
    qe = np.zeros((w_in * c, w_out * c), np.float32)
    qo = np.zeros((w_in * c, w_out * c), np.float32)
    for u in range(w_out):
        for ch in range(c):
            qe[(2 * u) * c + ch, u * c + ch] = 1.0
            qo[(2 * u + 1) * c + ch, u * c + ch] = 1.0
    return np.stack([qe, qo])


def _pool_rows(n, h_block, h_out, h_major):
    """Pe/Po select even/odd rows of each pool window directly from the uncropped
    conv output (rows j = b*h_block + i, garbage rows never selected)."""
    rows_in = n * h_block - 2
    pe = np.zeros((n * h_out, rows_in), np.float32)
    po = np.zeros_like(pe)
    for b in range(n):
        for r in range(h_out):
            row = r * n + b if h_major else b * h_out + r
            pe[row, b * h_block + 2 * r] = 1.0
            po[row, b * h_block + 2 * r + 1] = 1.0
    return np.stack([pe, po])


def prepare_constants(params, n):
    """All weight reshaping / permutation / dtype casting happens ONCE here."""
    w1 = np.asarray(params["conv1_w"], np.float32); b1 = np.asarray(params["conv1_b"], np.float32)
    w2 = np.asarray(params["conv2_w"], np.float32); b2 = np.asarray(params["conv2_b"], np.float32)
    wf = np.asarray(params["fc_w"], np.float32);    bfv = np.asarray(params["fc_b"], np.float32)
    wd1 = np.asarray(params["d1_w"], np.float32);   bd1 = np.asarray(params["d1_b"], np.float32)
    wd2 = np.asarray(params["d2_w"], np.float32);   bd2 = np.asarray(params["d2_b"], np.float32)

    t1 = _band_weights(w1, 16, 1, 26, 28).reshape(3 * 28, 26 * 16)   # (84, 416), kh-stacked
    b1_row = np.tile(b1, 26)[None, :]                                # (1, 416)
    p1 = _pool_rows(n, 42, 20, h_major=False)                        # (2, n*20, n*42-2)
    q1 = _pool_w(26, 13, 16)                                         # (2, 416, 208)

    t2 = _band_weights(w2, 32, 16, 11, 13)                           # (3, 208, 352)
    b2_row = np.tile(b2, 11)[None, :]                                # (1, 352)
    p2 = _pool_rows(n, 20, 9, h_major=True)                          # (2, 9n, n*20-2)
    q2 = _pool_w(11, 5, 32)                                          # (2, 352, 160)

    # fc weight permuted so slab hh has rows in (w, c) order matching c2's layout,
    # reproducing PyTorch's (c, h, w) flatten exactly.
    wfc = wf.reshape(128, 32, 9, 5).transpose(2, 3, 1, 0).reshape(9, 160, 128)
    bfc_row = bfv[None, :]                                           # (1, 128)

    wh = np.concatenate([wd1.T, wd2.T], axis=1)                      # (128, 20) fused heads
    bh_row = np.concatenate([bd1, bd2])[None, :]                     # (1, 20)

    bf = lambda a: jnp.asarray(a, jnp.bfloat16)   # matmul operands -> bf16 (halves DMA)
    f3 = lambda a: jnp.asarray(a, jnp.float32)    # biases stay f32 (exact, f32 VPU path)
    return (bf(t1), f3(b1_row), bf(p1), bf(q1),
            bf(t2), f3(b2_row), bf(p2), bf(q2),
            bf(wfc), f3(bfc_row), bf(wh), f3(bh_row))


# ------------------------------- forward wrapper -------------------------------

@jax.jit
def cnn_forward(x, consts):
    # x: NCHW (N, 1, 42, 28) -> (N*42, 28); kh-tap lane concat is wrapper-side layout
    # plumbing so the kernel's conv1 is one K=84 matmul and the input DMA is bf16.
    n = x.shape[0]
    x2d = x.reshape(n * 42, 28)
    rows1 = n * 42 - 2
    x_taps = jnp.concatenate(
        [x2d[0:rows1], x2d[1:rows1 + 1], x2d[2:rows1 + 2]], axis=1
    ).astype(jnp.bfloat16)                                           # (n*42-2, 84)

    macs = ((n * 42 - 2) * 84 * 416 + 2 * (n * 20) * (n * 42 - 2) * 416
            + 2 * (n * 20) * 416 * 208 + 3 * (n * 20 - 2) * 208 * 352
            + 2 * (9 * n) * (n * 20 - 2) * 352 + 2 * (9 * n) * 352 * 160
            + 9 * n * 160 * 128 + n * 128 * 20)
    bytes_accessed = (sum(int(np.prod(c.shape)) * c.dtype.itemsize for c in consts)
                      + int(np.prod(x_taps.shape)) * x_taps.dtype.itemsize + n * 20 * 4)

    out = pl.pallas_call(
        _cnn_fused_kernel,
        out_shape=jax.ShapeDtypeStruct((n, 20), jnp.float32),
        in_specs=[VMEM] * 13,
        out_specs=VMEM,
        cost_estimate=pl.CostEstimate(flops=2 * macs, transcendentals=0,
                                      bytes_accessed=bytes_accessed),
    )(x_taps, *consts)
    # NOTE: for larger batches, add a batch-tile grid axis with
    # dimension_semantics=("parallel",) to use both v7x TensorCores (the P row-pool
    # constants then stay per-tile-sized).  At N=2 a single gridless call is optimal.
    return out[:, :10], out[:, 10:]


# ------------------------------ reference & params ------------------------------

def cnn_reference(params, x):
    def conv(a, w, b):
        out = lax.conv_general_dilated(a, w, (1, 1), "VALID",
                                       dimension_numbers=("NCHW", "OIHW", "NCHW"))
        return jax.nn.relu(out + b[None, :, None, None])

    def pool(a):
        return lax.reduce_window(a, -jnp.inf, lax.max, (1, 1, 2, 2), (1, 1, 2, 2), "VALID")

    h = pool(conv(x, params["conv1_w"], params["conv1_b"]))
    h = pool(conv(h, params["conv2_w"], params["conv2_b"]))
    flat = h.reshape(h.shape[0], -1)
    fc = flat @ params["fc_w"].T + params["fc_b"]
    d1 = fc @ params["d1_w"].T + params["d1_b"]
    d2 = fc @ params["d2_w"].T + params["d2_b"]
    return d1, d2


def init_params(key):
    ks = jax.random.split(key, 10)

    def u(k, shape, fan_in):
        bound = 1.0 / (fan_in ** 0.5)
        return jax.random.uniform(k, shape, jnp.float32, -bound, bound)

    return {
        "conv1_w": u(ks[0], (16, 1, 3, 3), 1 * 9),
        "conv1_b": u(ks[1], (16,), 1 * 9),
        "conv2_w": u(ks[2], (32, 16, 3, 3), 16 * 9),
        "conv2_b": u(ks[3], (32,), 16 * 9),
        "fc_w":    u(ks[4], (128, 32 * 9 * 5), 32 * 9 * 5),
        "fc_b":    u(ks[5], (128,), 32 * 9 * 5),
        "d1_w":    u(ks[6], (10, 128), 128),
        "d1_b":    u(ks[7], (10,), 128),
        "d2_w":    u(ks[8], (10, 128), 128),
        "d2_b":    u(ks[9], (10,), 128),
    }


if __name__ == "__main__":
    key = jax.random.PRNGKey(0)
    pkey, xkey = jax.random.split(key)
    params = init_params(pkey)

    n = 2
    x = jax.random.normal(xkey, (n, 1, 42, 28), jnp.float32)

    consts = prepare_constants(params, n)          # one-time weight prep (bf16)
    d1, d2 = cnn_forward(x, consts)
    jax.block_until_ready((d1, d2))

    assert d1.shape == (n, 10) and d2.shape == (n, 10)
    assert d1.dtype == jnp.float32 and d2.dtype == jnp.float32

    # numerical check against a plain-XLA f32 reference of the PyTorch module
    r1_, r2_ = cnn_reference(params, x)
    err = max(float(jnp.max(jnp.abs(d1 - r1_))), float(jnp.max(jnp.abs(d2 - r2_))))
    assert err < 2e-2, f"mismatch vs reference: {err}"

    print("KERNEL_OK")
</pallas_src>

<mosaic_0001>
module attributes {stable_mosaic.version = 11 : i64} {
  func.func @_cnn_fused_kernel(%arg0: memref<82x84xbf16, #tpu.memory_space<vmem>>, %arg1: memref<84x416xbf16, #tpu.memory_space<vmem>>, %arg2: memref<1x416xf32, #tpu.memory_space<vmem>>, %arg3: memref<2x40x82xbf16, #tpu.memory_space<vmem>>, %arg4: memref<2x416x208xbf16, #tpu.memory_space<vmem>>, %arg5: memref<3x208x352xbf16, #tpu.memory_space<vmem>>, %arg6: memref<1x352xf32, #tpu.memory_space<vmem>>, %arg7: memref<2x18x38xbf16, #tpu.memory_space<vmem>>, %arg8: memref<2x352x160xbf16, #tpu.memory_space<vmem>>, %arg9: memref<9x160x128xbf16, #tpu.memory_space<vmem>>, %arg10: memref<1x128xf32, #tpu.memory_space<vmem>>, %arg11: memref<128x20xbf16, #tpu.memory_space<vmem>>, %arg12: memref<1x20xf32, #tpu.memory_space<vmem>>, %arg13: memref<2x20xf32, #tpu.memory_space<vmem>>) attributes {dimension_semantics = [], scalar_prefetch = 0 : i64, scratch_operands = 0 : i64, tpu.core_type = #tpu.core_type<tc>} {
    %c0 = arith.constant 0 : index
    %c0_0 = arith.constant 0 : index
    %0 = vector.load %arg0[%c0, %c0_0] : memref<82x84xbf16, #tpu.memory_space<vmem>>, vector<82x84xbf16>
    %c0_1 = arith.constant 0 : index
    %c0_2 = arith.constant 0 : index
    %1 = vector.load %arg1[%c0_1, %c0_2] : memref<84x416xbf16, #tpu.memory_space<vmem>>, vector<84x416xbf16>
    %cst = arith.constant dense<0.000000e+00> : vector<82x416xf32>
    %2 = tpu.matmul %0, %1, %cst {dimension_numbers = #tpu.dot_dimension_numbers<[1], [0], [0], [1], [0, 0, 1, 1], [], []>} : vector<82x84xbf16>, vector<84x416xbf16>, vector<82x416xf32> -> vector<82x416xf32>
    %c0_3 = arith.constant 0 : index
    %c0_4 = arith.constant 0 : index
    %3 = vector.load %arg2[%c0_3, %c0_4] : memref<1x416xf32, #tpu.memory_space<vmem>>, vector<1x416xf32>
    %4 = vector.broadcast %3 : vector<1x416xf32> to vector<82x416xf32>
    %5 = arith.addf %2, %4 : vector<82x416xf32>
    %cst_5 = arith.constant 0.000000e+00 : f32
    %6 = vector.broadcast %cst_5 : f32 to vector<82x416xf32>
    %7 = arith.maximumf %5, %6 : vector<82x416xf32>
    %8 = arith.truncf %7 : vector<82x416xf32> to vector<82x416xbf16>
    %c0_6 = arith.constant 0 : index
    %c0_7 = arith.constant 0 : index
    %c0_8 = arith.constant 0 : index
    %9 = vector.load %arg3[%c0_6, %c0_7, %c0_8] : memref<2x40x82xbf16, #tpu.memory_space<vmem>>, vector<1x40x82xbf16>
    %10 = vector.shape_cast %9 : vector<1x40x82xbf16> to vector<40x82xbf16>
    %cst_9 = arith.constant dense<0.000000e+00> : vector<40x416xf32>
    %11 = tpu.matmul %10, %8, %cst_9 {dimension_numbers = #tpu.dot_dimension_numbers<[1], [0], [0], [1], [0, 0, 1, 1], [], []>} : vector<40x82xbf16>, vector<82x416xbf16>, vector<40x416xf32> -> vector<40x416xf32>
    %c1 = arith.constant 1 : index
    %c0_10 = arith.constant 0 : index
    %c0_11 = arith.constant 0 : index
    %12 = vector.load %arg3[%c1, %c0_10, %c0_11] : memref<2x40x82xbf16, #tpu.memory_space<vmem>>, vector<1x40x82xbf16>
    %13 = vector.shape_cast %12 : vector<1x40x82xbf16> to vector<40x82xbf16>
    %cst_12 = arith.constant dense<0.000000e+00> : vector<40x416xf32>
    %14 = tpu.matmul %13, %8, %cst_12 {dimension_numbers = #tpu.dot_dimension_numbers<[1], [0], [0], [1], [0, 0, 1, 1], [], []>} : vector<40x82xbf16>, vector<82x416xbf16>, vector<40x416xf32> -> vector<40x416xf32>
    %15 = arith.maximumf %11, %14 : vector<40x416xf32>
    %16 = arith.truncf %15 : vector<40x416xf32> to vector<40x416xbf16>
    %c0_13 = arith.constant 0 : index
    %c0_14 = arith.constant 0 : index
    %c0_15 = arith.constant 0 : index
    %17 = vector.load %arg4[%c0_13, %c0_14, %c0_15] : memref<2x416x208xbf16, #tpu.memory_space<vmem>>, vector<1x416x208xbf16>
    %18 = vector.shape_cast %17 : vector<1x416x208xbf16> to vector<416x208xbf16>
    %cst_16 = arith.constant dense<0.000000e+00> : vector<40x208xf32>
    %19 = tpu.matmul %16, %18, %cst_16 {dimension_numbers = #tpu.dot_dimension_numbers<[1], [0], [0], [1], [0, 0, 1, 1], [], []>} : vector<40x416xbf16>, vector<416x208xbf16>, vector<40x208xf32> -> vector<40x208xf32>
    %c1_17 = arith.constant 1 : index
    %c0_18 = arith.constant 0 : index
    %c0_19 = arith.constant 0 : index
    %20 = vector.load %arg4[%c1_17, %c0_18, %c0_19] : memref<2x416x208xbf16, #tpu.memory_space<vmem>>, vector<1x416x208xbf16>
    %21 = vector.shape_cast %20 : vector<1x416x208xbf16> to vector<416x208xbf16>
    %cst_20 = arith.constant dense<0.000000e+00> : vector<40x208xf32>
    %22 = tpu.matmul %16, %21, %cst_20 {dimension_numbers = #tpu.dot_dimension_numbers<[1], [0], [0], [1], [0, 0, 1, 1], [], []>} : vector<40x416xbf16>, vector<416x208xbf16>, vector<40x208xf32> -> vector<40x208xf32>
    %23 = arith.maximumf %19, %22 : vector<40x208xf32>
    %24 = vector.extract_strided_slice %23 {offsets = [0, 0], sizes = [38, 208], strides = [1, 1]} : vector<40x208xf32> to vector<38x208xf32>
    %25 = arith.truncf %24 : vector<38x208xf32> to vector<38x208xbf16>
    %c0_21 = arith.constant 0 : index
    %c0_22 = arith.constant 0 : index
    %c0_23 = arith.constant 0 : index
    %26 = vector.load %arg5[%c0_21, %c0_22, %c0_23] : memref<3x208x352xbf16, #tpu.memory_space<vmem>>, vector<1x208x352xbf16>
    %27 = vector.shape_cast %26 : vector<1x208x352xbf16> to vector<208x352xbf16>
    %cst_24 = arith.constant dense<0.000000e+00> : vector<38x352xf32>
    %28 = tpu.matmul %25, %27, %cst_24 {dimension_numbers = #tpu.dot_dimension_numbers<[1], [0], [0], [1], [0, 0, 1, 1], [], []>} : vector<38x208xbf16>, vector<208x352xbf16>, vector<38x352xf32> -> vector<38x352xf32>
    %29 = vector.extract_strided_slice %23 {offsets = [1, 0], sizes = [38, 208], strides = [1, 1]} : vector<40x208xf32> to vector<38x208xf32>
    %30 = arith.truncf %29 : vector<38x208xf32> to vector<38x208xbf16>
    %c1_25 = arith.constant 1 : index
    %c0_26 = arith.constant 0 : index
    %c0_27 = arith.constant 0 : index
    %31 = vector.load %arg5[%c1_25, %c0_26, %c0_27] : memref<3x208x352xbf16, #tpu.memory_space<vmem>>, vector<1x208x352xbf16>
    %32 = vector.shape_cast %31 : vector<1x208x352xbf16> to vector<208x352xbf16>
    %cst_28 = arith.constant dense<0.000000e+00> : vector<38x352xf32>
    %33 = tpu.matmul %30, %32, %cst_28 {dimension_numbers = #tpu.dot_dimension_numbers<[1], [0], [0], [1], [0, 0, 1, 1], [], []>} : vector<38x208xbf16>, vector<208x352xbf16>, vector<38x352xf32> -> vector<38x352xf32>
    %34 = arith.addf %28, %33 : vector<38x352xf32>
    %35 = vector.extract_strided_slice %23 {offsets = [2, 0], sizes = [38, 208], strides = [1, 1]} : vector<40x208xf32> to vector<38x208xf32>
    %36 = arith.truncf %35 : vector<38x208xf32> to vector<38x208xbf16>
    %c2 = arith.constant 2 : index
    %c0_29 = arith.constant 0 : index
    %c0_30 = arith.constant 0 : index
    %37 = vector.load %arg5[%c2, %c0_29, %c0_30] : memref<3x208x352xbf16, #tpu.memory_space<vmem>>, vector<1x208x352xbf16>
    %38 = vector.shape_cast %37 : vector<1x208x352xbf16> to vector<208x352xbf16>
    %cst_31 = arith.constant dense<0.000000e+00> : vector<38x352xf32>
    %39 = tpu.matmul %36, %38, %cst_31 {dimension_numbers = #tpu.dot_dimension_numbers<[1], [0], [0], [1], [0, 0, 1, 1], [], []>} : vector<38x208xbf16>, vector<208x352xbf16>, vector<38x352xf32> -> vector<38x352xf32>
    %40 = arith.addf %34, %39 : vector<38x352xf32>
    %c0_32 = arith.constant 0 : index
    %c0_33 = arith.constant 0 : index
    %41 = vector.load %arg6[%c0_32, %c0_33] : memref<1x352xf32, #tpu.memory_space<vmem>>, vector<1x352xf32>
    %42 = vector.broadcast %41 : vector<1x352xf32> to vector<38x352xf32>
    %43 = arith.addf %40, %42 : vector<38x352xf32>
    %cst_34 = arith.constant 0.000000e+00 : f32
    %44 = vector.broadcast %cst_34 : f32 to vector<38x352xf32>
    %45 = arith.maximumf %43, %44 : vector<38x352xf32>
    %46 = arith.truncf %45 : vector<38x352xf32> to vector<38x352xbf16>
    %c0_35 = arith.constant 0 : index
    %c0_36 = arith.constant 0 : index
    %c0_37 = arith.constant 0 : index
    %47 = vector.load %arg7[%c0_35, %c0_36, %c0_37] : memref<2x18x38xbf16, #tpu.memory_space<vmem>>, vector<1x18x38xbf16>
    %48 = vector.shape_cast %47 : vector<1x18x38xbf16> to vector<18x38xbf16>
    %cst_38 = arith.constant dense<0.000000e+00> : vector<18x352xf32>
    %49 = tpu.matmul %48, %46, %cst_38 {dimension_numbers = #tpu.dot_dimension_numbers<[1], [0], [0], [1], [0, 0, 1, 1], [], []>} : vector<18x38xbf16>, vector<38x352xbf16>, vector<18x352xf32> -> vector<18x352xf32>
    %c1_39 = arith.constant 1 : index
    %c0_40 = arith.constant 0 : index
    %c0_41 = arith.constant 0 : index
    %50 = vector.load %arg7[%c1_39, %c0_40, %c0_41] : memref<2x18x38xbf16, #tpu.memory_space<vmem>>, vector<1x18x38xbf16>
    %51 = vector.shape_cast %50 : vector<1x18x38xbf16> to vector<18x38xbf16>
    %cst_42 = arith.constant dense<0.000000e+00> : vector<18x352xf32>
    %52 = tpu.matmul %51, %46, %cst_42 {dimension_numbers = #tpu.dot_dimension_numbers<[1], [0], [0], [1], [0, 0, 1, 1], [], []>} : vector<18x38xbf16>, vector<38x352xbf16>, vector<18x352xf32> -> vector<18x352xf32>
    %53 = arith.maximumf %49, %52 : vector<18x352xf32>
    %54 = arith.truncf %53 : vector<18x352xf32> to vector<18x352xbf16>
    %c0_43 = arith.constant 0 : index
    %c0_44 = arith.constant 0 : index
    %c0_45 = arith.constant 0 : index
    %55 = vector.load %arg8[%c0_43, %c0_44, %c0_45] : memref<2x352x160xbf16, #tpu.memory_space<vmem>>, vector<1x352x160xbf16>
    %56 = vector.shape_cast %55 : vector<1x352x160xbf16> to vector<352x160xbf16>
    %cst_46 = arith.constant dense<0.000000e+00> : vector<18x160xf32>
    %57 = tpu.matmul %54, %56, %cst_46 {dimension_numbers = #tpu.dot_dimension_numbers<[1], [0], [0], [1], [0, 0, 1, 1], [], []>} : vector<18x352xbf16>, vector<352x160xbf16>, vector<18x160xf32> -> vector<18x160xf32>
    %c1_47 = arith.constant 1 : index
    %c0_48 = arith.constant 0 : index
    %c0_49 = arith.constant 0 : index
    %58 = vector.load %arg8[%c1_47, %c0_48, %c0_49] : memref<2x352x160xbf16, #tpu.memory_space<vmem>>, vector<1x352x160xbf16>
    %59 = vector.shape_cast %58 : vector<1x352x160xbf16> to vector<352x160xbf16>
    %cst_50 = arith.constant dense<0.000000e+00> : vector<18x160xf32>
    %60 = tpu.matmul %54, %59, %cst_50 {dimension_numbers = #tpu.dot_dimension_numbers<[1], [0], [0], [1], [0, 0, 1, 1], [], []>} : vector<18x352xbf16>, vector<352x160xbf16>, vector<18x160xf32> -> vector<18x160xf32>
    %61 = arith.maximumf %57, %60 : vector<18x160xf32>
    %62 = vector.extract_strided_slice %61 {offsets = [0, 0], sizes = [2, 160], strides = [1, 1]} : vector<18x160xf32> to vector<2x160xf32>
    %63 = arith.truncf %62 : vector<2x160xf32> to vector<2x160xbf16>
    %c0_51 = arith.constant 0 : index
    %c0_52 = arith.constant 0 : index
    %c0_53 = arith.constant 0 : index
    %64 = vector.load %arg9[%c0_51, %c0_52, %c0_53] : memref<9x160x128xbf16, #tpu.memory_space<vmem>>, vector<1x160x128xbf16>
    %65 = vector.shape_cast %64 : vector<1x160x128xbf16> to vector<160x128xbf16>
    %cst_54 = arith.constant dense<0.000000e+00> : vector<2x128xf32>
    %66 = tpu.matmul %63, %65, %cst_54 {dimension_numbers = #tpu.dot_dimension_numbers<[1], [0], [0], [1], [0, 0, 1, 1], [], []>} : vector<2x160xbf16>, vector<160x128xbf16>, vector<2x128xf32> -> vector<2x128xf32>
    %67 = vector.extract_strided_slice %61 {offsets = [2, 0], sizes = [2, 160], strides = [1, 1]} : vector<18x160xf32> to vector<2x160xf32>
    %68 = arith.truncf %67 : vector<2x160xf32> to vector<2x160xbf16>
    %c1_55 = arith.constant 1 : index
    %c0_56 = arith.constant 0 : index
    %c0_57 = arith.constant 0 : index
    %69 = vector.load %arg9[%c1_55, %c0_56, %c0_57] : memref<9x160x128xbf16, #tpu.memory_space<vmem>>, vector<1x160x128xbf16>
    %70 = vector.shape_cast %69 : vector<1x160x128xbf16> to vector<160x128xbf16>
    %cst_58 = arith.constant dense<0.000000e+00> : vector<2x128xf32>
    %71 = tpu.matmul %68, %70, %cst_58 {dimension_numbers = #tpu.dot_dimension_numbers<[1], [0], [0], [1], [0, 0, 1, 1], [], []>} : vector<2x160xbf16>, vector<160x128xbf16>, vector<2x128xf32> -> vector<2x128xf32>
    %72 = vector.extract_strided_slice %61 {offsets = [4, 0], sizes = [2, 160], strides = [1, 1]} : vector<18x160xf32> to vector<2x160xf32>
    %73 = arith.truncf %72 : vector<2x160xf32> to vector<2x160xbf16>
    %c2_59 = arith.constant 2 : index
    %c0_60 = arith.constant 0 : index
    %c0_61 = arith.constant 0 : index
    %74 = vector.load %arg9[%c2_59, %c0_60, %c0_61] : memref<9x160x128xbf16, #tpu.memory_space<vmem>>, vector<1x160x128xbf16>
    %75 = vector.shape_cast %74 : vector<1x160x128xbf16> to vector<160x128xbf16>
    %cst_62 = arith.constant dense<0.000000e+00> : vector<2x128xf32>
    %76 = tpu.matmul %73, %75, %cst_62 {dimension_numbers = #tpu.dot_dimension_numbers<[1], [0], [0], [1], [0, 0, 1, 1], [], []>} : vector<2x160xbf16>, vector<160x128xbf16>, vector<2x128xf32> -> vector<2x128xf32>
    %77 = vector.extract_strided_slice %61 {offsets = [6, 0], sizes = [2, 160], strides = [1, 1]} : vector<18x160xf32> to vector<2x160xf32>
    %78 = arith.truncf %77 : vector<2x160xf32> to vector<2x160xbf16>
    %c3 = arith.constant 3 : index
    %c0_63 = arith.constant 0 : index
    %c0_64 = arith.constant 0 : index
    %79 = vector.load %arg9[%c3, %c0_63, %c0_64] : memref<9x160x128xbf16, #tpu.memory_space<vmem>>, vector<1x160x128xbf16>
    %80 = vector.shape_cast %79 : vector<1x160x128xbf16> to vector<160x128xbf16>
    %cst_65 = arith.constant dense<0.000000e+00> : vector<2x128xf32>
    %81 = tpu.matmul %78, %80, %cst_65 {dimension_numbers = #tpu.dot_dimension_numbers<[1], [0], [0], [1], [0, 0, 1, 1], [], []>} : vector<2x160xbf16>, vector<160x128xbf16>, vector<2x128xf32> -> vector<2x128xf32>
    %82 = vector.extract_strided_slice %61 {offsets = [8, 0], sizes = [2, 160], strides = [1, 1]} : vector<18x160xf32> to vector<2x160xf32>
    %83 = arith.truncf %82 : vector<2x160xf32> to vector<2x160xbf16>
    %c4 = arith.constant 4 : index
    %c0_66 = arith.constant 0 : index
    %c0_67 = arith.constant 0 : index
    %84 = vector.load %arg9[%c4, %c0_66, %c0_67] : memref<9x160x128xbf16, #tpu.memory_space<vmem>>, vector<1x160x128xbf16>
    %85 = vector.shape_cast %84 : vector<1x160x128xbf16> to vector<160x128xbf16>
    %cst_68 = arith.constant dense<0.000000e+00> : vector<2x128xf32>
    %86 = tpu.matmul %83, %85, %cst_68 {dimension_numbers = #tpu.dot_dimension_numbers<[1], [0], [0], [1], [0, 0, 1, 1], [], []>} : vector<2x160xbf16>, vector<160x128xbf16>, vector<2x128xf32> -> vector<2x128xf32>
    %87 = vector.extract_strided_slice %61 {offsets = [10, 0], sizes = [2, 160], strides = [1, 1]} : vector<18x160xf32> to vector<2x160xf32>
    %88 = arith.truncf %87 : vector<2x160xf32> to vector<2x160xbf16>
    %c5 = arith.constant 5 : index
    %c0_69 = arith.constant 0 : index
    %c0_70 = arith.constant 0 : index
    %89 = vector.load %arg9[%c5, %c0_69, %c0_70] : memref<9x160x128xbf16, #tpu.memory_space<vmem>>, vector<1x160x128xbf16>
    %90 = vector.shape_cast %89 : vector<1x160x128xbf16> to vector<160x128xbf16>
    %cst_71 = arith.constant dense<0.000000e+00> : vector<2x128xf32>
    %91 = tpu.matmul %88, %90, %cst_71 {dimension_numbers = #tpu.dot_dimension_numbers<[1], [0], [0], [1], [0, 0, 1, 1], [], []>} : vector<2x160xbf16>, vector<160x128xbf16>, vector<2x128xf32> -> vector<2x128xf32>
    %92 = vector.extract_strided_slice %61 {offsets = [12, 0], sizes = [2, 160], strides = [1, 1]} : vector<18x160xf32> to vector<2x160xf32>
    %93 = arith.truncf %92 : vector<2x160xf32> to vector<2x160xbf16>
    %c6 = arith.constant 6 : index
    %c0_72 = arith.constant 0 : index
    %c0_73 = arith.constant 0 : index
    %94 = vector.load %arg9[%c6, %c0_72, %c0_73] : memref<9x160x128xbf16, #tpu.memory_space<vmem>>, vector<1x160x128xbf16>
    %95 = vector.shape_cast %94 : vector<1x160x128xbf16> to vector<160x128xbf16>
    %cst_74 = arith.constant dense<0.000000e+00> : vector<2x128xf32>
    %96 = tpu.matmul %93, %95, %cst_74 {dimension_numbers = #tpu.dot_dimension_numbers<[1], [0], [0], [1], [0, 0, 1, 1], [], []>} : vector<2x160xbf16>, vector<160x128xbf16>, vector<2x128xf32> -> vector<2x128xf32>
    %97 = vector.extract_strided_slice %61 {offsets = [14, 0], sizes = [2, 160], strides = [1, 1]} : vector<18x160xf32> to vector<2x160xf32>
    %98 = arith.truncf %97 : vector<2x160xf32> to vector<2x160xbf16>
    %c7 = arith.constant 7 : index
    %c0_75 = arith.constant 0 : index
    %c0_76 = arith.constant 0 : index
    %99 = vector.load %arg9[%c7, %c0_75, %c0_76] : memref<9x160x128xbf16, #tpu.memory_space<vmem>>, vector<1x160x128xbf16>
    %100 = vector.shape_cast %99 : vector<1x160x128xbf16> to vector<160x128xbf16>
    %cst_77 = arith.constant dense<0.000000e+00> : vector<2x128xf32>
    %101 = tpu.matmul %98, %100, %cst_77 {dimension_numbers = #tpu.dot_dimension_numbers<[1], [0], [0], [1], [0, 0, 1, 1], [], []>} : vector<2x160xbf16>, vector<160x128xbf16>, vector<2x128xf32> -> vector<2x128xf32>
    %102 = vector.extract_strided_slice %61 {offsets = [16, 0], sizes = [2, 160], strides = [1, 1]} : vector<18x160xf32> to vector<2x160xf32>
    %103 = arith.truncf %102 : vector<2x160xf32> to vector<2x160xbf16>
    %c8 = arith.constant 8 : index
    %c0_78 = arith.constant 0 : index
    %c0_79 = arith.constant 0 : index
    %104 = vector.load %arg9[%c8, %c0_78, %c0_79] : memref<9x160x128xbf16, #tpu.memory_space<vmem>>, vector<1x160x128xbf16>
    %105 = vector.shape_cast %104 : vector<1x160x128xbf16> to vector<160x128xbf16>
    %cst_80 = arith.constant dense<0.000000e+00> : vector<2x128xf32>
    %106 = tpu.matmul %103, %105, %cst_80 {dimension_numbers = #tpu.dot_dimension_numbers<[1], [0], [0], [1], [0, 0, 1, 1], [], []>} : vector<2x160xbf16>, vector<160x128xbf16>, vector<2x128xf32> -> vector<2x128xf32>
    %107 = arith.addf %66, %71 : vector<2x128xf32>
    %108 = arith.addf %76, %81 : vector<2x128xf32>
    %109 = arith.addf %107, %108 : vector<2x128xf32>
    %110 = arith.addf %86, %91 : vector<2x128xf32>
    %111 = arith.addf %96, %101 : vector<2x128xf32>
    %112 = arith.addf %110, %111 : vector<2x128xf32>
    %113 = arith.addf %109, %112 : vector<2x128xf32>
    %114 = arith.addf %113, %106 : vector<2x128xf32>
    %c0_81 = arith.constant 0 : index
    %c0_82 = arith.constant 0 : index
    %115 = vector.load %arg10[%c0_81, %c0_82] : memref<1x128xf32, #tpu.memory_space<vmem>>, vector<1x128xf32>
    %116 = vector.broadcast %115 : vector<1x128xf32> to vector<2x128xf32>
    %117 = arith.addf %114, %116 : vector<2x128xf32>
    %118 = arith.truncf %117 : vector<2x128xf32> to vector<2x128xbf16>
    %c0_83 = arith.constant 0 : index
    %c0_84 = arith.constant 0 : index
    %119 = vector.load %arg11[%c0_83, %c0_84] : memref<128x20xbf16, #tpu.memory_space<vmem>>, vector<128x20xbf16>
    %cst_85 = arith.constant dense<0.000000e+00> : vector<2x20xf32>
    %120 = tpu.matmul %118, %119, %cst_85 {dimension_numbers = #tpu.dot_dimension_numbers<[1], [0], [0], [1], [0, 0, 1, 1], [], []>} : vector<2x128xbf16>, vector<128x20xbf16>, vector<2x20xf32> -> vector<2x20xf32>
    %c0_86 = arith.constant 0 : index
    %c0_87 = arith.constant 0 : index
    %121 = vector.load %arg12[%c0_86, %c0_87] : memref<1x20xf32, #tpu.memory_space<vmem>>, vector<1x20xf32>
    %122 = vector.broadcast %121 : vector<1x20xf32> to vector<2x20xf32>
    %123 = arith.addf %120, %122 : vector<2x20xf32>
    %c0_88 = arith.constant 0 : index
    %c0_89 = arith.constant 0 : index
    %124 = vector.load %arg13[%c0_88, %c0_89] : memref<2x20xf32, #tpu.memory_space<vmem>>, vector<2x20xf32>
    tpu.vector_store %arg13[%c0_88, %c0_89], %123 {strides = array<i32>} : memref<2x20xf32, #tpu.memory_space<vmem>>, vector<2x20xf32>,
    return
  }
}

</mosaic_0001>

<llo_original>
// kernel: cnn_forward.1
$region0: #{cnn_forward.1}
  #allocation0 [shape = 'u32[]', space=smem, size = 0x4, offset = 0x4, fixed_abs, tag = 'smem constant byte address 0x4 - core index']
  #allocation1 [shape = 'u32[144,128]{1,0:T(1,128)}', space=vmem, size = 0x12000, scoped, tag = 'internal scratch']
  %s0 = inlined_call_operand.vmem [shape: bf16[82,84], index: 0, kind: input, shape index: {}]
  %s1 = inlined_call_operand.vmem [shape: bf16[84,416], index: 1, kind: input, shape index: {}]
  %s2 = inlined_call_operand.vmem [shape: f32[1,416], index: 2, kind: input, shape index: {}]
  %s3 = inlined_call_operand.vmem [shape: bf16[2,40,82], index: 3, kind: input, shape index: {}]
  %s4 = inlined_call_operand.vmem [shape: bf16[2,416,208], index: 4, kind: input, shape index: {}]
  %s5 = inlined_call_operand.vmem [shape: bf16[3,208,352], index: 5, kind: input, shape index: {}]
  %s6 = inlined_call_operand.vmem [shape: f32[1,352], index: 6, kind: input, shape index: {}]
  %s7 = inlined_call_operand.vmem [shape: bf16[2,18,38], index: 7, kind: input, shape index: {}]
  %s8 = inlined_call_operand.vmem [shape: bf16[2,352,160], index: 8, kind: input, shape index: {}]
  %s9 = inlined_call_operand.hbm [shape: bf16[9,160,128], index: 9, kind: input, shape index: {}]
  %s10 = inlined_call_operand.vmem [shape: f32[1,128], index: 10, kind: input, shape index: {}]
  %s11 = inlined_call_operand.vmem [shape: bf16[128,20], index: 11, kind: input, shape index: {}]
  %s12 = inlined_call_operand.vmem [shape: f32[1,20], index: 12, kind: input, shape index: {}]
  %s13 = inlined_call_operand.vmem [shape: f32[2,20], index: 13, kind: output, shape index: {}]
  %s14 = sld [smem:[#allocation0]]
  $region66: #{cnn_forward.1} parent=0
    _
  %s16 = ssub.s32 1, %s14
  %s17 = scalar_select 0, %s16, %s14
  $region1: #{cnn_forward.1} parent=0
    #allocation2 [shape = 'u8[368640]{0}', space=vmem, size = 0x5a000, scoped, tag = 'input window, operand 9, single buffered']
    #allocation3 [shape = 's32[1]{0}', space=sflag, size = 0x4, scoped, tag = 'scoped memory for cnn_forward.1']
    %18 = vsyncpa [#allocation3], 0
    // Predicated region
    $region2: #{cnn_forward.1} parent=1 // pred_check
      _
    $region3: #{cnn_forward.1} parent=1 // pred_check_branch
      %20 = sbr.rel (0) target = $region5
    $region4: #{cnn_forward.1} parent=1 // pred_region
      _
    $region5: #{cnn_forward.1} parent=1 // pred_fallthru
      _
    // Predicated region
    $region6: #{cnn_forward.1} parent=1 // pred_check
      _
    $region7: #{cnn_forward.1} parent=1 // pred_check_branch
      %22 = sbr.rel (0) target = $region9
    $region8: #{cnn_forward.1} parent=1 // pred_region
      _
    $region9: #{cnn_forward.1} parent=1 // pred_fallthru
      _
    // Predicated region
    $region10: #{cnn_forward.1} parent=1 // pred_check
      _
    $region11: #{cnn_forward.1} parent=1 // pred_check_branch
      %24 = sbr.rel (0) target = $region13
    $region12: #{cnn_forward.1} parent=1 // pred_region
      _
    $region13: #{cnn_forward.1} parent=1 // pred_fallthru
      _
    // Predicated region
    $region14: #{cnn_forward.1} parent=1 // pred_check
      _
    $region15: #{cnn_forward.1} parent=1 // pred_check_branch
      %26 = sbr.rel (0) target = $region17
    $region16: #{cnn_forward.1} parent=1 // pred_region
      _
    $region17: #{cnn_forward.1} parent=1 // pred_fallthru
      _
    // Predicated region
    $region18: #{cnn_forward.1} parent=1 // pred_check
      _
    $region19: #{cnn_forward.1} parent=1 // pred_check_branch
      %28 = sbr.rel (0) target = $region21
    $region20: #{cnn_forward.1} parent=1 // pred_region
      _
    $region21: #{cnn_forward.1} parent=1 // pred_fallthru
      _
    // Predicated region
    $region22: #{cnn_forward.1} parent=1 // pred_check
      _
    $region23: #{cnn_forward.1} parent=1 // pred_check_branch
      %30 = sbr.rel (0) target = $region25
    $region24: #{cnn_forward.1} parent=1 // pred_region
      _
    $region25: #{cnn_forward.1} parent=1 // pred_fallthru
      _
    // Predicated region
    $region26: #{cnn_forward.1} parent=1 // pred_check
      _
    $region27: #{cnn_forward.1} parent=1 // pred_check_branch
      %32 = sbr.rel (0) target = $region29
    $region28: #{cnn_forward.1} parent=1 // pred_region
      _
    $region29: #{cnn_forward.1} parent=1 // pred_fallthru
      _
    // Predicated region
    $region30: #{cnn_forward.1} parent=1 // pred_check
      _
    $region31: #{cnn_forward.1} parent=1 // pred_check_branch
      %34 = sbr.rel (0) target = $region33
    $region32: #{cnn_forward.1} parent=1 // pred_region
      _
    $region33: #{cnn_forward.1} parent=1 // pred_fallthru
      _
    // Predicated region
    $region34: #{cnn_forward.1} parent=1 // pred_check
      _
    $region35: #{cnn_forward.1} parent=1 // pred_check_branch
      %36 = sbr.rel (0) target = $region37
    $region36: #{cnn_forward.1} parent=1 // pred_region
      _
    $region37: #{cnn_forward.1} parent=1 // pred_fallthru
      _
    // Predicated region
    $region38: #{cnn_forward.1} parent=1 // pred_check
      _
    $region39: #{cnn_forward.1} parent=1 // pred_check_branch
      %38 = sbr.rel (0) target = $region41
    $region40: #{cnn_forward.1} parent=1 // pred_region
      %s40 = ssub.s32 11520, 11520
      %41 = vsyncadd [#allocation3], %s40
      %s42 = sshll.u32 [#allocation2], 4
      %s43 = int_to_ptr.vmem [resolvable:$true] %s42
      %48 = dma.hbm_to_vmem [thread:$0]  %s9, 11520, %s43, [#allocation3], 64, 64, 4
    $region41: #{cnn_forward.1} parent=1 // pred_fallthru
      _
    // Predicated region
    $region42: #{cnn_forward.1} parent=1 // pred_check
      _
    $region43: #{cnn_forward.1} parent=1 // pred_check_branch
      %50 = sbr.rel (0) target = $region45
    $region44: #{cnn_forward.1} parent=1 // pred_region
      _
    $region45: #{cnn_forward.1} parent=1 // pred_fallthru
      _
    // Predicated region
    $region46: #{cnn_forward.1} parent=1 // pred_check
      _
    $region47: #{cnn_forward.1} parent=1 // pred_check_branch
      %52 = sbr.rel (0) target = $region49
    $region48: #{cnn_forward.1} parent=1 // pred_region
      _
    $region49: #{cnn_forward.1} parent=1 // pred_fallthru
      _
    // Predicated region
    $region50: #{cnn_forward.1} parent=1 // pred_check
      _
    $region51: #{cnn_forward.1} parent=1 // pred_check_branch
      %54 = sbr.rel (0) target = $region53
    $region52: #{cnn_forward.1} parent=1 // pred_region
      _
    $region53: #{cnn_forward.1} parent=1 // pred_fallthru
      _
    // Predicated region
    $region54: #{cnn_forward.1} parent=1 // pred_check
      _
    $region55: #{cnn_forward.1} parent=1 // pred_check_branch
      %56 = sbr.rel (0) target = $region57
    $region56: #{cnn_forward.1} parent=1 // pred_region
      %57 = dma.done [#allocation3], 11520
    $region57: #{cnn_forward.1} parent=1 // pred_fallthru
      _
    %v59 = vld [vmem:[%s0] sm:$0xf]
    %v60 = vld [vmem:[%s0 + $0x4] sm:$0xf]
    %v61 = vld [vmem:[%s0 + $0x8] sm:$0xf]
    %v62 = vld [vmem:[%s0 + $0xc] sm:$0xf]
    %v63 = vld [vmem:[%s0 + $0x10] sm:$0xf]
    %v64 = vld [vmem:[%s0 + $0x14] sm:$0xf]
    %v65 = vld [vmem:[%s0 + $0x18] sm:$0xf]
    %v66 = vld [vmem:[%s0 + $0x1c] sm:$0xf]
    %v67 = vld [vmem:[%s0 + $0x20] sm:$0xf]
    %v68 = vld [vmem:[%s0 + $0x24] sm:$0xf]
    %v69 = vld [vmem:[%s0 + $0x28] sm:$0x1]
    %v70 = vld [vmem:[%s1] sm:$0xff]
    %v71 = vld [vmem:[%s1 + $0x8] sm:$0xff]
    %v72 = vld [vmem:[%s1 + $0x10] sm:$0xff]
    %v73 = vld [vmem:[%s1 + $0x18] sm:$0xff]
    %v74 = vld [vmem:[%s1 + $0x20] sm:$0xff]
    %v75 = vld [vmem:[%s1 + $0x28] sm:$0xff]
    %v76 = vld [vmem:[%s1 + $0x30] sm:$0xff]
    %v77 = vld [vmem:[%s1 + $0x38] sm:$0xff]
    %v78 = vld [vmem:[%s1 + $0x40] sm:$0xff]
    %v79 = vld [vmem:[%s1 + $0x48] sm:$0xff]
    %v80 = vld [vmem:[%s1 + $0x50] sm:$0xff]
    %v81 = vld [vmem:[%s1 + $0x58] sm:$0xff]
    %v82 = vld [vmem:[%s1 + $0x60] sm:$0xff]
    %v83 = vld [vmem:[%s1 + $0x68] sm:$0xff]
    %v84 = vld [vmem:[%s1 + $0x70] sm:$0xff]
    %v85 = vld [vmem:[%s1 + $0x78] sm:$0xff]
    %v86 = vld [vmem:[%s1 + $0x80] sm:$0xff]
    %v87 = vld [vmem:[%s1 + $0x88] sm:$0xff]
    %v88 = vld [vmem:[%s1 + $0x90] sm:$0xff]
    %v89 = vld [vmem:[%s1 + $0x98] sm:$0xff]
    %v90 = vld [vmem:[%s1 + $0xa0] sm:$0x33]
    %v91 = vld [vmem:[%s1 + $0xa8] sm:$0x33]
    %v92 = vld [vmem:[%s2] sm:$0xf]
    %v94 = vlaneseq
    %v95 = vshrl.u32 %v94, 7
    %v96 = vsub.s32 0, %v95
    %v97 = vrot.slane %v92, %v96
    %v98 = vlaneseq
    %v99 = vshrl.u32 %v98, 7
    %v100 = vsub.s32 1, %v99
    %v101 = vrot.slane %v92, %v100
    %v102 = vlaneseq
    %v103 = vshrl.u32 %v102, 7
    %v104 = vsub.s32 2, %v103
    %v105 = vrot.slane %v92, %v104
    %v106 = vlaneseq
    %v107 = vshrl.u32 %v106, 7
    %v108 = vsub.s32 3, %v107
    %v109 = vrot.slane %v92, %v108
    %v125 = vunpack.c.l.b16 %v59
    %v126 = vunpack.c.l.b16 %v60
    %v127 = vunpack.c.l.b16 %v61
    %v128 = vunpack.c.l.b16 %v62
    %v129 = vunpack.c.l.b16 %v63
    %v130 = vunpack.c.l.b16 %v64
    %v131 = vunpack.c.l.b16 %v65
    %v132 = vunpack.c.l.b16 %v66
    %v133 = vunpack.c.l.b16 %v67
    %v134 = vunpack.c.l.b16 %v68
    %v135 = vunpack.c.l.b16 %v69
    %v136 = vpack.c.b16 %v126, %v125
    %v137 = vpack.c.b16 %v128, %v127
    %v138 = vpack.c.b16 %v130, %v129
    %v139 = vpack.c.b16 %v132, %v131
    %v140 = vpack.c.b16 %v134, %v133
    %v141 = vpack.c.b16 %v135, %v135
    %v164 = vunpack.c.l.b16 %v70
    %v165 = vunpack.c.h.b16 %v70
    %v166 = vunpack.c.l.b16 %v71
    %v167 = vunpack.c.h.b16 %v71
    %v168 = vunpack.c.l.b16 %v72
    %v169 = vunpack.c.h.b16 %v72
    %v170 = vunpack.c.l.b16 %v73
    %v171 = vunpack.c.h.b16 %v73
    %v172 = vunpack.c.l.b16 %v74
    %v173 = vunpack.c.h.b16 %v74
    %v174 = vunpack.c.l.b16 %v75
    %v175 = vunpack.c.h.b16 %v75
    %v176 = vunpack.c.l.b16 %v76
    %v177 = vunpack.c.h.b16 %v76
    %v178 = vunpack.c.l.b16 %v77
    %v179 = vunpack.c.h.b16 %v77
    %v180 = vunpack.c.l.b16 %v78
    %v181 = vunpack.c.h.b16 %v78
    %v182 = vunpack.c.l.b16 %v79
    %v183 = vunpack.c.h.b16 %v79
    %v184 = vunpack.c.l.b16 %v80
    %v185 = vunpack.c.h.b16 %v80
    %v186 = vunpack.c.l.b16 %v81
    %v187 = vunpack.c.h.b16 %v81
    %v188 = vunpack.c.l.b16 %v82
    %v189 = vunpack.c.h.b16 %v82
    %v190 = vunpack.c.l.b16 %v83
    %v191 = vunpack.c.h.b16 %v83
    %v192 = vunpack.c.l.b16 %v84
    %v193 = vunpack.c.h.b16 %v84
    %v194 = vunpack.c.l.b16 %v85
    %v195 = vunpack.c.h.b16 %v85
    %v196 = vunpack.c.l.b16 %v86
    %v197 = vunpack.c.h.b16 %v86
    %v198 = vunpack.c.l.b16 %v87
    %v199 = vunpack.c.h.b16 %v87
    %v200 = vunpack.c.l.b16 %v88
    %v201 = vunpack.c.h.b16 %v88
    %v202 = vunpack.c.l.b16 %v89
    %v203 = vunpack.c.h.b16 %v89
    %v204 = vunpack.c.l.b16 %v90
    %v205 = vunpack.c.h.b16 %v90
    %v206 = vunpack.c.l.b16 %v91
    %v207 = vunpack.c.h.b16 %v91
    %v208 = vpack.c.b16 %v168, %v164
    %v209 = vpack.c.b16 %v169, %v165
    %v210 = vpack.c.b16 %v170, %v166
    %v211 = vpack.c.b16 %v171, %v167
    %v212 = vpack.c.b16 %v176, %v172
    %v213 = vpack.c.b16 %v177, %v173
    %v214 = vpack.c.b16 %v178, %v174
    %v215 = vpack.c.b16 %v179, %v175
    %v216 = vpack.c.b16 %v184, %v180
    %v217 = vpack.c.b16 %v185, %v181
    %v218 = vpack.c.b16 %v186, %v182
    %v219 = vpack.c.b16 %v187, %v183
    %v220 = vpack.c.b16 %v192, %v188
    %v221 = vpack.c.b16 %v193, %v189
    %v222 = vpack.c.b16 %v194, %v190
    %v223 = vpack.c.b16 %v195, %v191
    %v224 = vpack.c.b16 %v200, %v196
    %v225 = vpack.c.b16 %v201, %v197
    %v226 = vpack.c.b16 %v202, %v198
    %v227 = vpack.c.b16 %v203, %v199
    %v228 = vpack.c.b16 %v204, %v204
    %v229 = vpack.c.b16 %v205, %v205
    %v230 = vpack.c.b16 %v206, %v206
    %v231 = vpack.c.b16 %v207, %v207
    %vm252 = vcmask 687104
    %v254 = vsel %vm252, %v136, 0
    %v257 = vsel %vm252, %v137, 0
    %v260 = vsel %vm252, %v138, 0
    %v263 = vsel %vm252, %v139, 0
    %v266 = vsel %vm252, %v140, 0
    %v269 = vsel %vm252, %v141, 0
    %vm271 = vcmask 1041408
    %v273 = vsel %vm271, %v228, 0
    %v276 = vsel %vm271, %v229, 0
    %v279 = vsel %vm271, %v230, 0
    %v282 = vsel %vm271, %v231, 0
    %284 = vmatprep.subr.bf16.mxu0 %v209
    %285 = vmatpush1.bf16.msra.mxu0 %v208
    %286 = vmatprep.subr.bf16.mxu0 %v213
    %287 = vmatpush1.bf16.msra.mxu0 %v212
    %288 = vmatprep.subr.bf16.mxu0 %v217
    %289 = vmatpush1.bf16.msra.mxu0 %v216
    %290 = vmatprep.subr.bf16.mxu0 %v221
    %291 = vmatpush1.bf16.msra.mxu0 %v220
    %292 = vmatprep.subr.bf16.mxu0 %v225
    %293 = vmatpush1.bf16.msra.mxu0 %v224
    %294 = vmatprep.subr.bf16.mxu0 %v276
    %295 = vmatpush1.bf16.msra.mxu0 %v273
    %296 = vmatprep.subr.bf16.mxu0 0
    %297 = vmatpush1.bf16.msra.mxu0 0
    %298 = vmatprep.subr.bf16.mxu0 0
    %299 = vmatpush1.bf16.msra.mxu0 0
    %300 = vmatprep.subr.bf16.mxu0 0
    %301 = vmatpush1.bf16.msra.mxu0 0
    %302 = vmatprep.subr.bf16.mxu0 0
    %303 = vmatpush1.bf16.msra.mxu0 0
    %304 = vmatprep.subr.bf16.mxu0 0
    %305 = vmatpush1.bf16.msra.mxu0 0
    %306 = vmatprep.subr.bf16.mxu0 0
    %307 = vmatpush1.bf16.msra.mxu0 0
    %308 = vmatprep.subr.bf16.mxu0 0
    %309 = vmatpush1.bf16.msra.mxu0 0
    %310 = vmatprep.subr.bf16.mxu0 0
    %311 = vmatpush1.bf16.msra.mxu0 0
    %312 = vmatprep.subr.bf16.mxu0 0
    %313 = vmatpush1.bf16.msra.mxu0 0
    %314 = vmatprep.subr.bf16.mxu0 0
    %315 = vmatpush1.bf16.msra.mxu0 0
    %316 = vmatprep.mubr.bf16.mxu0 0
    %317 = vmatmul.mubr.bf16.gmra.mrb[0].mxu0 %v254
    %v318 = vpop.f32.mrb[0].mxu0
    %v319 = vadd.f32 %v97, %v318
    %v320 = vpop.f32.mrb[0].mxu0
    %v321 = vadd.f32 %v101, %v320
    %v322 = vpop.f32.mrb[0].mxu0
    %v323 = vadd.f32 %v97, %v322
    %v324 = vpop.f32.mrb[0].mxu0
    %v325 = vadd.f32 %v101, %v324
    %326 = vmatprep.mubr.bf16.mxu0 0
    %327 = vmatmul.mubr.bf16.gmra.mrb[0].mxu0 %v257
    %v328 = vpop.f32.mrb[0].mxu0
    %v329 = vadd.f32 %v97, %v328
    %v330 = vpop.f32.mrb[0].mxu0
    %v331 = vadd.f32 %v101, %v330
    %v332 = vpop.f32.mrb[0].mxu0
    %v333 = vadd.f32 %v97, %v332
    %v334 = vpop.f32.mrb[0].mxu0
    %v335 = vadd.f32 %v101, %v334
    %336 = vmatprep.mubr.bf16.mxu0 0
    %337 = vmatmul.mubr.bf16.gmra.mrb[0].mxu0 %v260
    %v338 = vpop.f32.mrb[0].mxu0
    %v339 = vadd.f32 %v97, %v338
    %v340 = vpop.f32.mrb[0].mxu0
    %v341 = vadd.f32 %v101, %v340
    %v342 = vpop.f32.mrb[0].mxu0
    %v343 = vadd.f32 %v97, %v342
    %v344 = vpop.f32.mrb[0].mxu0
    %v345 = vadd.f32 %v101, %v344
    %346 = vmatprep.mubr.bf16.mxu0 0
    %347 = vmatmul.mubr.bf16.gmra.mrb[0].mxu0 %v263
    %v348 = vpop.f32.mrb[0].mxu0
    %v349 = vadd.f32 %v97, %v348
    %v350 = vpop.f32.mrb[0].mxu0
    %v351 = vadd.f32 %v101, %v350
    %v352 = vpop.f32.mrb[0].mxu0
    %v353 = vadd.f32 %v97, %v352
    %v354 = vpop.f32.mrb[0].mxu0
    %v355 = vadd.f32 %v101, %v354
    %356 = vmatprep.mubr.bf16.mxu0 0
    %357 = vmatmul.mubr.bf16.gmra.mrb[0].mxu0 %v266
    %v358 = vpop.f32.mrb[0].mxu0
    %v359 = vadd.f32 %v97, %v358
    %v360 = vpop.f32.mrb[0].mxu0
    %v361 = vadd.f32 %v101, %v360
    %v362 = vpop.f32.mrb[0].mxu0
    %v363 = vadd.f32 %v97, %v362
    %v364 = vpop.f32.mrb[0].mxu0
    %v365 = vadd.f32 %v101, %v364
    %366 = vmatprep.mubr.bf16.mxu0 0
    %367 = vmatmul.mubr.bf16.gmra.mrb[0].mxu0 %v269
    %v368 = vpop.f32.mrb[0].mxu0
    %v369 = vadd.f32 %v97, %v368
    %v370 = vpop.f32.mrb[0].mxu0
    %v371 = vadd.f32 %v101, %v370
    %v372 = vpop.f32.mrb[0].mxu0
    %v373 = vpop.f32.mrb[0].mxu0
    %374 = vdwg.mxu0
    %375 = vmatprep.subr.bf16.mxu0 %v211
    %376 = vmatpush1.bf16.msra.mxu0 %v210
    %377 = vmatprep.subr.bf16.mxu0 %v215
    %378 = vmatpush1.bf16.msra.mxu0 %v214
    %379 = vmatprep.subr.bf16.mxu0 %v219
    %380 = vmatpush1.bf16.msra.mxu0 %v218
    %381 = vmatprep.subr.bf16.mxu0 %v223
    %382 = vmatpush1.bf16.msra.mxu0 %v222
    %383 = vmatprep.subr.bf16.mxu0 %v227
    %384 = vmatpush1.bf16.msra.mxu0 %v226
    %385 = vmatprep.subr.bf16.mxu0 %v282
    %386 = vmatpush1.bf16.msra.mxu0 %v279
    %387 = vmatprep.subr.bf16.mxu0 0
    %388 = vmatpush1.bf16.msra.mxu0 0
    %389 = vmatprep.subr.bf16.mxu0 0
    %390 = vmatpush1.bf16.msra.mxu0 0
    %391 = vmatprep.subr.bf16.mxu0 0
    %392 = vmatpush1.bf16.msra.mxu0 0
    %393 = vmatprep.subr.bf16.mxu0 0
    %394 = vmatpush1.bf16.msra.mxu0 0
    %395 = vmatprep.subr.bf16.mxu0 0
    %396 = vmatpush1.bf16.msra.mxu0 0
    %397 = vmatprep.subr.bf16.mxu0 0
    %398 = vmatpush1.bf16.msra.mxu0 0
    %399 = vmatprep.subr.bf16.mxu0 0
    %400 = vmatpush1.bf16.msra.mxu0 0
    %401 = vmatprep.subr.bf16.mxu0 0
    %402 = vmatpush1.bf16.msra.mxu0 0
    %403 = vmatprep.subr.bf16.mxu0 0
    %404 = vmatpush1.bf16.msra.mxu0 0
    %405 = vmatprep.subr.bf16.mxu0 0
    %406 = vmatpush1.bf16.msra.mxu0 0
    %407 = vmatprep.mubr.bf16.mxu0 0
    %408 = vmatmul.mubr.bf16.gmra.mrb[0].mxu0 %v254
    %v409 = vpop.f32.mrb[0].mxu0
    %v410 = vadd.f32 %v105, %v409
    %v411 = vpop.f32.mrb[0].mxu0
    %v412 = vadd.f32 %v109, %v411
    %v413 = vpop.f32.mrb[0].mxu0
    %v414 = vadd.f32 %v105, %v413
    %v415 = vpop.f32.mrb[0].mxu0
    %v416 = vadd.f32 %v109, %v415
    %417 = vmatprep.mubr.bf16.mxu0 0
    %418 = vmatmul.mubr.bf16.gmra.mrb[0].mxu0 %v257
    %v419 = vpop.f32.mrb[0].mxu0
    %v420 = vadd.f32 %v105, %v419
    %v421 = vpop.f32.mrb[0].mxu0
    %v422 = vadd.f32 %v109, %v421
    %v423 = vpop.f32.mrb[0].mxu0
    %v424 = vadd.f32 %v105, %v423
    %v425 = vpop.f32.mrb[0].mxu0
    %v426 = vadd.f32 %v109, %v425
    %427 = vmatprep.mubr.bf16.mxu0 0
    %428 = vmatmul.mubr.bf16.gmra.mrb[0].mxu0 %v260
    %v429 = vpop.f32.mrb[0].mxu0
    %v430 = vadd.f32 %v105, %v429
    %v431 = vpop.f32.mrb[0].mxu0
    %v432 = vadd.f32 %v109, %v431
    %v433 = vpop.f32.mrb[0].mxu0
    %v434 = vadd.f32 %v105, %v433
    %v435 = vpop.f32.mrb[0].mxu0
    %v436 = vadd.f32 %v109, %v435
    %437 = vmatprep.mubr.bf16.mxu0 0
    %438 = vmatmul.mubr.bf16.gmra.mrb[0].mxu0 %v263
    %v439 = vpop.f32.mrb[0].mxu0
    %v440 = vadd.f32 %v105, %v439
    %v441 = vpop.f32.mrb[0].mxu0
    %v442 = vadd.f32 %v109, %v441
    %v443 = vpop.f32.mrb[0].mxu0
    %v444 = vadd.f32 %v105, %v443
    %v445 = vpop.f32.mrb[0].mxu0
    %v446 = vadd.f32 %v109, %v445
    %447 = vmatprep.mubr.bf16.mxu0 0
    %448 = vmatmul.mubr.bf16.gmra.mrb[0].mxu0 %v266
    %v449 = vpop.f32.mrb[0].mxu0
    %v450 = vadd.f32 %v105, %v449
    %v451 = vpop.f32.mrb[0].mxu0
    %v452 = vadd.f32 %v109, %v451
    %v453 = vpop.f32.mrb[0].mxu0
    %v454 = vadd.f32 %v105, %v453
    %v455 = vpop.f32.mrb[0].mxu0
    %v456 = vadd.f32 %v109, %v455
    %457 = vmatprep.mubr.bf16.mxu0 0
    %458 = vmatmul.mubr.bf16.gmra.mrb[0].mxu0 %v269
    %v459 = vpop.f32.mrb[0].mxu0
    %v460 = vadd.f32 %v105, %v459
    %v461 = vpop.f32.mrb[0].mxu0
    %v462 = vadd.f32 %v109, %v461
    %v463 = vpop.f32.mrb[0].mxu0
    %v464 = vpop.f32.mrb[0].mxu0
    %465 = vdwg.mxu0
    %v466 = vmax.f32 %v319, 0.0
    %v467 = vmax.f32 %v321, 0.0
    %v468 = vmax.f32 %v410, 0.0
    %v469 = vmax.f32 %v412, 0.0
    %v470 = vmax.f32 %v323, 0.0
    %v471 = vmax.f32 %v325, 0.0
    %v472 = vmax.f32 %v414, 0.0
    %v473 = vmax.f32 %v416, 0.0
    %v474 = vmax.f32 %v329, 0.0
    %v475 = vmax.f32 %v331, 0.0
    %v476 = vmax.f32 %v420, 0.0
    %v477 = vmax.f32 %v422, 0.0
    %v478 = vmax.f32 %v333, 0.0
    %v479 = vmax.f32 %v335, 0.0
    %v480 = vmax.f32 %v424, 0.0
    %v481 = vmax.f32 %v426, 0.0
    %v482 = vmax.f32 %v339, 0.0
    %v483 = vmax.f32 %v341, 0.0
    %v484 = vmax.f32 %v430, 0.0
    %v485 = vmax.f32 %v432, 0.0
    %v486 = vmax.f32 %v343, 0.0
    %v487 = vmax.f32 %v345, 0.0
    %v488 = vmax.f32 %v434, 0.0
    %v489 = vmax.f32 %v436, 0.0
    %v490 = vmax.f32 %v349, 0.0
    %v491 = vmax.f32 %v351, 0.0
    %v492 = vmax.f32 %v440, 0.0
    %v493 = vmax.f32 %v442, 0.0
    %v494 = vmax.f32 %v353, 0.0
    %v495 = vmax.f32 %v355, 0.0
    %v496 = vmax.f32 %v444, 0.0
    %v497 = vmax.f32 %v446, 0.0
    %v498 = vmax.f32 %v359, 0.0
    %v499 = vmax.f32 %v361, 0.0
    %v500 = vmax.f32 %v450, 0.0
    %v501 = vmax.f32 %v452, 0.0
    %v502 = vmax.f32 %v363, 0.0
    %v503 = vmax.f32 %v365, 0.0
    %v504 = vmax.f32 %v454, 0.0
    %v505 = vmax.f32 %v456, 0.0
    %v506 = vmax.f32 %v369, 0.0
    %v507 = vmax.f32 %v371, 0.0
    %v508 = vmax.f32 %v460, 0.0
    %v509 = vmax.f32 %v462, 0.0
    %v510 = vpack.c.bf16 %v470, %v466
    %v511 = vpack.c.bf16 %v471, %v467
    %v512 = vpack.c.bf16 %v472, %v468
    %v513 = vpack.c.bf16 %v473, %v469
    %v514 = vpack.c.bf16 %v478, %v474
    %v515 = vpack.c.bf16 %v479, %v475
    %v516 = vpack.c.bf16 %v480, %v476
    %v517 = vpack.c.bf16 %v481, %v477
    %v518 = vpack.c.bf16 %v486, %v482
    %v519 = vpack.c.bf16 %v487, %v483
    %v520 = vpack.c.bf16 %v488, %v484
    %v521 = vpack.c.bf16 %v489, %v485
    %v522 = vpack.c.bf16 %v494, %v490
    %v523 = vpack.c.bf16 %v495, %v491
    %v524 = vpack.c.bf16 %v496, %v492
    %v525 = vpack.c.bf16 %v497, %v493
    %v526 = vpack.c.bf16 %v502, %v498
    %v527 = vpack.c.bf16 %v503, %v499
    %v528 = vpack.c.bf16 %v504, %v500
    %v529 = vpack.c.bf16 %v505, %v501
    %v530 = vpack.c.bf16 %v506, %v506
    %v531 = vpack.c.bf16 %v507, %v507
    %v532 = vpack.c.bf16 %v508, %v508
    %v533 = vpack.c.bf16 %v509, %v509
    %v534 = vld [vmem:[%s3] sm:$0xf]
    %v535 = vld [vmem:[%s3 + $0x4] sm:$0xf]
    %v536 = vld [vmem:[%s3 + $0x8] sm:$0xf]
    %v537 = vld [vmem:[%s3 + $0xc] sm:$0xf]
    %v538 = vld [vmem:[%s3 + $0x10] sm:$0xf]
    %v544 = vunpack.c.l.b16 %v534
    %v545 = vunpack.c.l.b16 %v535
    %v546 = vunpack.c.l.b16 %v536
    %v547 = vunpack.c.l.b16 %v537
    %v548 = vunpack.c.l.b16 %v538
    %v549 = vpack.c.b16 %v545, %v544
    %v550 = vpack.c.b16 %v547, %v546
    %v551 = vpack.c.b16 %v548, %v548
    %vm552 = vcmask 670720
    %v554 = vsel %vm552, %v549, 0
    %v557 = vsel %vm552, %v550, 0
    %v560 = vsel %vm552, %v551, 0
    %vm562 = vcmask 1040384
    %v564 = vsel %vm562, %v530, 0
    %v567 = vsel %vm562, %v531, 0
    %v570 = vsel %vm562, %v532, 0
    %v573 = vsel %vm562, %v533, 0
    %575 = vmatprep.subr.bf16.mxu0 %v511
    %576 = vmatpush1.bf16.msra.mxu0 %v510
    %577 = vmatprep.subr.bf16.mxu0 %v515
    %578 = vmatpush1.bf16.msra.mxu0 %v514
    %579 = vmatprep.subr.bf16.mxu0 %v519
    %580 = vmatpush1.bf16.msra.mxu0 %v518
    %581 = vmatprep.subr.bf16.mxu0 %v523
    %582 = vmatpush1.bf16.msra.mxu0 %v522
    %583 = vmatprep.subr.bf16.mxu0 %v527
    %584 = vmatpush1.bf16.msra.mxu0 %v526
    %585 = vmatprep.subr.bf16.mxu0 %v567
    %586 = vmatpush1.bf16.msra.mxu0 %v564
    %587 = vmatprep.subr.bf16.mxu0 0
    %588 = vmatpush1.bf16.msra.mxu0 0
    %589 = vmatprep.subr.bf16.mxu0 0
    %590 = vmatpush1.bf16.msra.mxu0 0
    %591 = vmatprep.subr.bf16.mxu0 0
    %592 = vmatpush1.bf16.msra.mxu0 0
    %593 = vmatprep.subr.bf16.mxu0 0
    %594 = vmatpush1.bf16.msra.mxu0 0
    %595 = vmatprep.subr.bf16.mxu0 0
    %596 = vmatpush1.bf16.msra.mxu0 0
    %597 = vmatprep.subr.bf16.mxu0 0
    %598 = vmatpush1.bf16.msra.mxu0 0
    %599 = vmatprep.subr.bf16.mxu0 0
    %600 = vmatpush1.bf16.msra.mxu0 0
    %601 = vmatprep.subr.bf16.mxu0 0
    %602 = vmatpush1.bf16.msra.mxu0 0
    %603 = vmatprep.subr.bf16.mxu0 0
    %604 = vmatpush1.bf16.msra.mxu0 0
    %605 = vmatprep.subr.bf16.mxu0 0
    %606 = vmatpush1.bf16.msra.mxu0 0
    %607 = vmatprep.mubr.bf16.mxu0 0
    %608 = vmatmul.mubr.bf16.gmra.mrb[0].mxu0 %v554
    %v609 = vpop.f32.mrb[0].mxu0
    %v610 = vadd.f32 0.0, %v609
    %v611 = vpop.f32.mrb[0].mxu0
    %v612 = vadd.f32 0.0, %v611
    %v613 = vpop.f32.mrb[0].mxu0
    %v614 = vadd.f32 0.0, %v613
    %v615 = vpop.f32.mrb[0].mxu0
    %v616 = vadd.f32 0.0, %v615
    %617 = vmatprep.mubr.bf16.mxu0 0
    %618 = vmatmul.mubr.bf16.gmra.mrb[0].mxu0 %v557
    %v619 = vpop.f32.mrb[0].mxu0
    %v620 = vadd.f32 0.0, %v619
    %v621 = vpop.f32.mrb[0].mxu0
    %v622 = vadd.f32 0.0, %v621
    %v623 = vpop.f32.mrb[0].mxu0
    %v624 = vadd.f32 0.0, %v623
    %v625 = vpop.f32.mrb[0].mxu0
    %v626 = vadd.f32 0.0, %v625
    %627 = vmatprep.mubr.bf16.mxu0 0
    %628 = vmatmul.mubr.bf16.gmra.mrb[0].mxu0 %v560
    %v629 = vpop.f32.mrb[0].mxu0
    %v630 = vadd.f32 0.0, %v629
    %v631 = vpop.f32.mrb[0].mxu0
    %v632 = vadd.f32 0.0, %v631
    %v633 = vpop.f32.mrb[0].mxu0
    %v634 = vpop.f32.mrb[0].mxu0
    %635 = vdwg.mxu0
    %636 = vmatprep.subr.bf16.mxu0 %v513
    %637 = vmatpush1.bf16.msra.mxu0 %v512
    %638 = vmatprep.subr.bf16.mxu0 %v517
    %639 = vmatpush1.bf16.msra.mxu0 %v516
    %640 = vmatprep.subr.bf16.mxu0 %v521
    %641 = vmatpush1.bf16.msra.mxu0 %v520
    %642 = vmatprep.subr.bf16.mxu0 %v525
    %643 = vmatpush1.bf16.msra.mxu0 %v524
    %644 = vmatprep.subr.bf16.mxu0 %v529
    %645 = vmatpush1.bf16.msra.mxu0 %v528
    %646 = vmatprep.subr.bf16.mxu0 %v573
    %647 = vmatpush1.bf16.msra.mxu0 %v570
    %648 = vmatprep.subr.bf16.mxu0 0
    %649 = vmatpush1.bf16.msra.mxu0 0
    %650 = vmatprep.subr.bf16.mxu0 0
    %651 = vmatpush1.bf16.msra.mxu0 0
    %652 = vmatprep.subr.bf16.mxu0 0
    %653 = vmatpush1.bf16.msra.mxu0 0
    %654 = vmatprep.subr.bf16.mxu0 0
    %655 = vmatpush1.bf16.msra.mxu0 0
    %656 = vmatprep.subr.bf16.mxu0 0
    %657 = vmatpush1.bf16.msra.mxu0 0
    %658 = vmatprep.subr.bf16.mxu0 0
    %659 = vmatpush1.bf16.msra.mxu0 0
    %660 = vmatprep.subr.bf16.mxu0 0
    %661 = vmatpush1.bf16.msra.mxu0 0
    %662 = vmatprep.subr.bf16.mxu0 0
    %663 = vmatpush1.bf16.msra.mxu0 0
    %664 = vmatprep.subr.bf16.mxu0 0
    %665 = vmatpush1.bf16.msra.mxu0 0
    %666 = vmatprep.subr.bf16.mxu0 0
    %667 = vmatpush1.bf16.msra.mxu0 0
    %668 = vmatprep.mubr.bf16.mxu0 0
    %669 = vmatmul.mubr.bf16.gmra.mrb[0].mxu0 %v554
    %v670 = vpop.f32.mrb[0].mxu0
    %v671 = vadd.f32 0.0, %v670
    %v672 = vpop.f32.mrb[0].mxu0
    %v673 = vadd.f32 0.0, %v672
    %v674 = vpop.f32.mrb[0].mxu0
    %v675 = vadd.f32 0.0, %v674
    %v676 = vpop.f32.mrb[0].mxu0
    %v677 = vadd.f32 0.0, %v676
    %678 = vmatprep.mubr.bf16.mxu0 0
    %679 = vmatmul.mubr.bf16.gmra.mrb[0].mxu0 %v557
    %v680 = vpop.f32.mrb[0].mxu0
    %v681 = vadd.f32 0.0, %v680
    %v682 = vpop.f32.mrb[0].mxu0
    %v683 = vadd.f32 0.0, %v682
    %v684 = vpop.f32.mrb[0].mxu0
    %v685 = vadd.f32 0.0, %v684
    %v686 = vpop.f32.mrb[0].mxu0
    %v687 = vadd.f32 0.0, %v686
    %688 = vmatprep.mubr.bf16.mxu0 0
    %689 = vmatmul.mubr.bf16.gmra.mrb[0].mxu0 %v560
    %v690 = vpop.f32.mrb[0].mxu0
    %v691 = vadd.f32 0.0, %v690
    %v692 = vpop.f32.mrb[0].mxu0
    %v693 = vadd.f32 0.0, %v692
    %v694 = vpop.f32.mrb[0].mxu0
    %v695 = vpop.f32.mrb[0].mxu0
    %696 = vdwg.mxu0
    %s697 = scalar_lea.vmem %s3, 20
    %v698 = vld [vmem:[%s697] sm:$0xf]
    %v699 = vld [vmem:[%s697 + $0x4] sm:$0xf]
    %v700 = vld [vmem:[%s697 + $0x8] sm:$0xf]
    %v701 = vld [vmem:[%s697 + $0xc] sm:$0xf]
    %v702 = vld [vmem:[%s697 + $0x10] sm:$0xf]
    %v708 = vunpack.c.l.b16 %v698
    %v709 = vunpack.c.l.b16 %v699
    %v710 = vunpack.c.l.b16 %v700
    %v711 = vunpack.c.l.b16 %v701
    %v712 = vunpack.c.l.b16 %v702
    %v713 = vpack.c.b16 %v709, %v708
    %v714 = vpack.c.b16 %v711, %v710
    %v715 = vpack.c.b16 %v712, %v712
    %v717 = vsel %vm552, %v713, 0
    %v720 = vsel %vm552, %v714, 0
    %v723 = vsel %vm552, %v715, 0
    %725 = vmatprep.subr.bf16.mxu0 %v511
    %726 = vmatpush1.bf16.msra.mxu0 %v510
    %727 = vmatprep.subr.bf16.mxu0 %v515
    %728 = vmatpush1.bf16.msra.mxu0 %v514
    %729 = vmatprep.subr.bf16.mxu0 %v519
    %730 = vmatpush1.bf16.msra.mxu0 %v518
    %731 = vmatprep.subr.bf16.mxu0 %v523
    %732 = vmatpush1.bf16.msra.mxu0 %v522
    %733 = vmatprep.subr.bf16.mxu0 %v527
    %734 = vmatpush1.bf16.msra.mxu0 %v526
    %735 = vmatprep.subr.bf16.mxu0 %v567
    %736 = vmatpush1.bf16.msra.mxu0 %v564
    %737 = vmatprep.subr.bf16.mxu0 0
    %738 = vmatpush1.bf16.msra.mxu0 0
    %739 = vmatprep.subr.bf16.mxu0 0
    %740 = vmatpush1.bf16.msra.mxu0 0
    %741 = vmatprep.subr.bf16.mxu0 0
    %742 = vmatpush1.bf16.msra.mxu0 0
    %743 = vmatprep.subr.bf16.mxu0 0
    %744 = vmatpush1.bf16.msra.mxu0 0
    %745 = vmatprep.subr.bf16.mxu0 0
    %746 = vmatpush1.bf16.msra.mxu0 0
    %747 = vmatprep.subr.bf16.mxu0 0
    %748 = vmatpush1.bf16.msra.mxu0 0
    %749 = vmatprep.subr.bf16.mxu0 0
    %750 = vmatpush1.bf16.msra.mxu0 0
    %751 = vmatprep.subr.bf16.mxu0 0
    %752 = vmatpush1.bf16.msra.mxu0 0
    %753 = vmatprep.subr.bf16.mxu0 0
    %754 = vmatpush1.bf16.msra.mxu0 0
    %755 = vmatprep.subr.bf16.mxu0 0
    %756 = vmatpush1.bf16.msra.mxu0 0
    %757 = vmatprep.mubr.bf16.mxu0 0
    %758 = vmatmul.mubr.bf16.gmra.mrb[0].mxu0 %v717
    %v759 = vpop.f32.mrb[0].mxu0
    %v760 = vadd.f32 0.0, %v759
    %v761 = vpop.f32.mrb[0].mxu0
    %v762 = vadd.f32 0.0, %v761
    %v763 = vpop.f32.mrb[0].mxu0
    %v764 = vadd.f32 0.0, %v763
    %v765 = vpop.f32.mrb[0].mxu0
    %v766 = vadd.f32 0.0, %v765
    %767 = vmatprep.mubr.bf16.mxu0 0
    %768 = vmatmul.mubr.bf16.gmra.mrb[0].mxu0 %v720
    %v769 = vpop.f32.mrb[0].mxu0
    %v770 = vadd.f32 0.0, %v769
    %v771 = vpop.f32.mrb[0].mxu0
    %v772 = vadd.f32 0.0, %v771
    %v773 = vpop.f32.mrb[0].mxu0
    %v774 = vadd.f32 0.0, %v773
    %v775 = vpop.f32.mrb[0].mxu0
    %v776 = vadd.f32 0.0, %v775
    %777 = vmatprep.mubr.bf16.mxu0 0
    %778 = vmatmul.mubr.bf16.gmra.mrb[0].mxu0 %v723
    %v779 = vpop.f32.mrb[0].mxu0
    %v780 = vadd.f32 0.0, %v779
    %v781 = vpop.f32.mrb[0].mxu0
    %v782 = vadd.f32 0.0, %v781
    %v783 = vpop.f32.mrb[0].mxu0
    %v784 = vpop.f32.mrb[0].mxu0
    %785 = vdwg.mxu0
    %786 = vmatprep.subr.bf16.mxu0 %v513
    %787 = vmatpush1.bf16.msra.mxu0 %v512
    %788 = vmatprep.subr.bf16.mxu0 %v517
    %789 = vmatpush1.bf16.msra.mxu0 %v516
    %790 = vmatprep.subr.bf16.mxu0 %v521
    %791 = vmatpush1.bf16.msra.mxu0 %v520
    %792 = vmatprep.subr.bf16.mxu0 %v525
    %793 = vmatpush1.bf16.msra.mxu0 %v524
    %794 = vmatprep.subr.bf16.mxu0 %v529
    %795 = vmatpush1.bf16.msra.mxu0 %v528
    %796 = vmatprep.subr.bf16.mxu0 %v573
    %797 = vmatpush1.bf16.msra.mxu0 %v570
    %798 = vmatprep.subr.bf16.mxu0 0
    %799 = vmatpush1.bf16.msra.mxu0 0
    %800 = vmatprep.subr.bf16.mxu0 0
    %801 = vmatpush1.bf16.msra.mxu0 0
    %802 = vmatprep.subr.bf16.mxu0 0
    %803 = vmatpush1.bf16.msra.mxu0 0
    %804 = vmatprep.subr.bf16.mxu0 0
    %805 = vmatpush1.bf16.msra.mxu0 0
    %806 = vmatprep.subr.bf16.mxu0 0
    %807 = vmatpush1.bf16.msra.mxu0 0
    %808 = vmatprep.subr.bf16.mxu0 0
    %809 = vmatpush1.bf16.msra.mxu0 0
    %810 = vmatprep.subr.bf16.mxu0 0
    %811 = vmatpush1.bf16.msra.mxu0 0
    %812 = vmatprep.subr.bf16.mxu0 0
    %813 = vmatpush1.bf16.msra.mxu0 0
    %814 = vmatprep.subr.bf16.mxu0 0
    %815 = vmatpush1.bf16.msra.mxu0 0
    %816 = vmatprep.subr.bf16.mxu0 0
    %817 = vmatpush1.bf16.msra.mxu0 0
    %818 = vmatprep.mubr.bf16.mxu0 0
    %819 = vmatmul.mubr.bf16.gmra.mrb[0].mxu0 %v717
    %v820 = vpop.f32.mrb[0].mxu0
    %v821 = vadd.f32 0.0, %v820
    %v822 = vpop.f32.mrb[0].mxu0
    %v823 = vadd.f32 0.0, %v822
    %v824 = vpop.f32.mrb[0].mxu0
    %v825 = vadd.f32 0.0, %v824
    %v826 = vpop.f32.mrb[0].mxu0
    %v827 = vadd.f32 0.0, %v826
    %828 = vmatprep.mubr.bf16.mxu0 0
    %829 = vmatmul.mubr.bf16.gmra.mrb[0].mxu0 %v720
    %v830 = vpop.f32.mrb[0].mxu0
    %v831 = vadd.f32 0.0, %v830
    %v832 = vpop.f32.mrb[0].mxu0
    %v833 = vadd.f32 0.0, %v832
    %v834 = vpop.f32.mrb[0].mxu0
    %v835 = vadd.f32 0.0, %v834
    %v836 = vpop.f32.mrb[0].mxu0
    %v837 = vadd.f32 0.0, %v836
    %838 = vmatprep.mubr.bf16.mxu0 0
    %839 = vmatmul.mubr.bf16.gmra.mrb[0].mxu0 %v723
    %v840 = vpop.f32.mrb[0].mxu0
    %v841 = vadd.f32 0.0, %v840
    %v842 = vpop.f32.mrb[0].mxu0
    %v843 = vadd.f32 0.0, %v842
    %v844 = vpop.f32.mrb[0].mxu0
    %v845 = vpop.f32.mrb[0].mxu0
    %846 = vdwg.mxu0
    %v847 = vmax.f32 %v610, %v760
    %v848 = vmax.f32 %v612, %v762
    %v849 = vmax.f32 %v671, %v821
    %v850 = vmax.f32 %v673, %v823
    %v851 = vmax.f32 %v614, %v764
    %v852 = vmax.f32 %v616, %v766
    %v853 = vmax.f32 %v675, %v825
    %v854 = vmax.f32 %v677, %v827
    %v855 = vmax.f32 %v620, %v770
    %v856 = vmax.f32 %v622, %v772
    %v857 = vmax.f32 %v681, %v831
    %v858 = vmax.f32 %v683, %v833
    %v859 = vmax.f32 %v624, %v774
    %v860 = vmax.f32 %v626, %v776
    %v861 = vmax.f32 %v685, %v835
    %v862 = vmax.f32 %v687, %v837
    %v863 = vmax.f32 %v630, %v780
    %v864 = vmax.f32 %v632, %v782
    %v865 = vmax.f32 %v691, %v841
    %v866 = vmax.f32 %v693, %v843
    %v867 = vpack.c.bf16 %v851, %v847
    %v868 = vpack.c.bf16 %v852, %v848
    %v869 = vpack.c.bf16 %v853, %v849
    %v870 = vpack.c.bf16 %v854, %v850
    %v871 = vpack.c.bf16 %v859, %v855
    %v872 = vpack.c.bf16 %v860, %v856
    %v873 = vpack.c.bf16 %v861, %v857
    %v874 = vpack.c.bf16 %v862, %v858
    %v875 = vpack.c.bf16 %v863, %v863
    %v876 = vpack.c.bf16 %v864, %v864
    %v877 = vpack.c.bf16 %v865, %v865
    %v878 = vpack.c.bf16 %v866, %v866
    %v879 = vld [vmem:[%s4] sm:$0xff]
    %v880 = vld [vmem:[%s4 + $0x8] sm:$0xff]
    %v881 = vld [vmem:[%s4 + $0x10] sm:$0xff]
    %v882 = vld [vmem:[%s4 + $0x18] sm:$0xff]
    %v883 = vld [vmem:[%s4 + $0x20] sm:$0xff]
    %v884 = vld [vmem:[%s4 + $0x28] sm:$0xff]
    %v885 = vld [vmem:[%s4 + $0x30] sm:$0xff]
    %v886 = vld [vmem:[%s4 + $0x38] sm:$0xff]
    %v887 = vld [vmem:[%s4 + $0x40] sm:$0xff]
    %v888 = vld [vmem:[%s4 + $0x48] sm:$0xff]
    %v889 = vld [vmem:[%s4 + $0x50] sm:$0xff]
    %v890 = vld [vmem:[%s4 + $0x58] sm:$0xff]
    %v891 = vld [vmem:[%s4 + $0x60] sm:$0xff]
    %v892 = vld [vmem:[%s4 + $0x68] sm:$0xff]
    %v893 = vld [vmem:[%s4 + $0x70] sm:$0xff]
    %v894 = vld [vmem:[%s4 + $0x78] sm:$0xff]
    %v895 = vld [vmem:[%s4 + $0x80] sm:$0xff]
    %v896 = vld [vmem:[%s4 + $0x88] sm:$0xff]
    %v897 = vld [vmem:[%s4 + $0x90] sm:$0xff]
    %v898 = vld [vmem:[%s4 + $0x98] sm:$0xff]
    %v899 = vld [vmem:[%s4 + $0xa0] sm:$0xff]
    %v900 = vld [vmem:[%s4 + $0xa8] sm:$0xff]
    %v901 = vld [vmem:[%s4 + $0xb0] sm:$0xff]
    %v902 = vld [vmem:[%s4 + $0xb8] sm:$0xff]
    %v903 = vld [vmem:[%s4 + $0xc0] sm:$0xff]
    %v904 = vld [vmem:[%s4 + $0xc8] sm:$0xff]
    %v905 = vld [vmem:[%s4 + $0xd0] sm:$0xff]
    %v906 = vld [vmem:[%s4 + $0xd8] sm:$0xff]
    %v907 = vld [vmem:[%s4 + $0xe0] sm:$0xff]
    %v908 = vld [vmem:[%s4 + $0xe8] sm:$0xff]
    %v909 = vld [vmem:[%s4 + $0xf0] sm:$0xff]
    %v910 = vld [vmem:[%s4 + $0xf8] sm:$0xff]
    %v911 = vld [vmem:[%s4 + $0x100] sm:$0xff]
    %v912 = vld [vmem:[%s4 + $0x108] sm:$0xff]
    %v913 = vld [vmem:[%s4 + $0x110] sm:$0xff]
    %v914 = vld [vmem:[%s4 + $0x118] sm:$0xff]
    %v915 = vld [vmem:[%s4 + $0x120] sm:$0xff]
    %v916 = vld [vmem:[%s4 + $0x128] sm:$0xff]
    %v917 = vld [vmem:[%s4 + $0x130] sm:$0xff]
    %v918 = vld [vmem:[%s4 + $0x138] sm:$0xff]
    %v919 = vld [vmem:[%s4 + $0x140] sm:$0xff]
    %v920 = vld [vmem:[%s4 + $0x148] sm:$0xff]
    %v921 = vld [vmem:[%s4 + $0x150] sm:$0xff]
    %v922 = vld [vmem:[%s4 + $0x158] sm:$0xff]
    %v923 = vld [vmem:[%s4 + $0x160] sm:$0xff]
    %v924 = vld [vmem:[%s4 + $0x168] sm:$0xff]
    %v925 = vld [vmem:[%s4 + $0x170] sm:$0xff]
    %v926 = vld [vmem:[%s4 + $0x178] sm:$0xff]
    %v927 = vld [vmem:[%s4 + $0x180] sm:$0xff]
    %v928 = vld [vmem:[%s4 + $0x188] sm:$0xff]
    %v929 = vld [vmem:[%s4 + $0x190] sm:$0xff]
    %v930 = vld [vmem:[%s4 + $0x198] sm:$0xff]
    %v983 = vunpack.c.l.b16 %v879
    %v984 = vunpack.c.h.b16 %v879
    %v985 = vunpack.c.l.b16 %v880
    %v986 = vunpack.c.h.b16 %v880
    %v987 = vunpack.c.l.b16 %v881
    %v988 = vunpack.c.h.b16 %v881
    %v989 = vunpack.c.l.b16 %v882
    %v990 = vunpack.c.h.b16 %v882
    %v991 = vunpack.c.l.b16 %v883
    %v992 = vunpack.c.h.b16 %v883
    %v993 = vunpack.c.l.b16 %v884
    %v994 = vunpack.c.h.b16 %v884
    %v995 = vunpack.c.l.b16 %v885
    %v996 = vunpack.c.h.b16 %v885
    %v997 = vunpack.c.l.b16 %v886
    %v998 = vunpack.c.h.b16 %v886
    %v999 = vunpack.c.l.b16 %v887
    %v1000 = vunpack.c.h.b16 %v887
    %v1001 = vunpack.c.l.b16 %v888
    %v1002 = vunpack.c.h.b16 %v888
    %v1003 = vunpack.c.l.b16 %v889
    %v1004 = vunpack.c.h.b16 %v889
    %v1005 = vunpack.c.l.b16 %v890
    %v1006 = vunpack.c.h.b16 %v890
    %v1007 = vunpack.c.l.b16 %v891
    %v1008 = vunpack.c.h.b16 %v891
    %v1009 = vunpack.c.l.b16 %v892
    %v1010 = vunpack.c.h.b16 %v892
    %v1011 = vunpack.c.l.b16 %v893
    %v1012 = vunpack.c.h.b16 %v893
    %v1013 = vunpack.c.l.b16 %v894
    %v1014 = vunpack.c.h.b16 %v894
    %v1015 = vunpack.c.l.b16 %v895
    %v1016 = vunpack.c.h.b16 %v895
    %v1017 = vunpack.c.l.b16 %v896
    %v1018 = vunpack.c.h.b16 %v896
    %v1019 = vunpack.c.l.b16 %v897
    %v1020 = vunpack.c.h.b16 %v897
    %v1021 = vunpack.c.l.b16 %v898
    %v1022 = vunpack.c.h.b16 %v898
    %v1023 = vunpack.c.l.b16 %v899
    %v1024 = vunpack.c.h.b16 %v899
    %v1025 = vunpack.c.l.b16 %v900
    %v1026 = vunpack.c.h.b16 %v900
    %v1027 = vunpack.c.l.b16 %v901
    %v1028 = vunpack.c.h.b16 %v901
    %v1029 = vunpack.c.l.b16 %v902
    %v1030 = vunpack.c.h.b16 %v902
    %v1031 = vunpack.c.l.b16 %v903
    %v1032 = vunpack.c.h.b16 %v903
    %v1033 = vunpack.c.l.b16 %v904
    %v1034 = vunpack.c.h.b16 %v904
    %v1035 = vunpack.c.l.b16 %v905
    %v1036 = vunpack.c.h.b16 %v905
    %v1037 = vunpack.c.l.b16 %v906
    %v1038 = vunpack.c.h.b16 %v906
    %v1039 = vunpack.c.l.b16 %v907
    %v1040 = vunpack.c.h.b16 %v907
    %v1041 = vunpack.c.l.b16 %v908
    %v1042 = vunpack.c.h.b16 %v908
    %v1043 = vunpack.c.l.b16 %v909
    %v1044 = vunpack.c.h.b16 %v909
    %v1045 = vunpack.c.l.b16 %v910
    %v1046 = vunpack.c.h.b16 %v910
    %v1047 = vunpack.c.l.b16 %v911
    %v1048 = vunpack.c.h.b16 %v911
    %v1049 = vunpack.c.l.b16 %v912
    %v1050 = vunpack.c.h.b16 %v912
    %v1051 = vunpack.c.l.b16 %v913
    %v1052 = vunpack.c.h.b16 %v913
    %v1053 = vunpack.c.l.b16 %v914
    %v1054 = vunpack.c.h.b16 %v914
    %v1055 = vunpack.c.l.b16 %v915
    %v1056 = vunpack.c.h.b16 %v915
    %v1057 = vunpack.c.l.b16 %v916
    %v1058 = vunpack.c.h.b16 %v916
    %v1059 = vunpack.c.l.b16 %v917
    %v1060 = vunpack.c.h.b16 %v917
    %v1061 = vunpack.c.l.b16 %v918
    %v1062 = vunpack.c.h.b16 %v918
    %v1063 = vunpack.c.l.b16 %v919
    %v1064 = vunpack.c.h.b16 %v919
    %v1065 = vunpack.c.l.b16 %v920
    %v1066 = vunpack.c.h.b16 %v920
    %v1067 = vunpack.c.l.b16 %v921
    %v1068 = vunpack.c.h.b16 %v921
    %v1069 = vunpack.c.l.b16 %v922
    %v1070 = vunpack.c.h.b16 %v922
    %v1071 = vunpack.c.l.b16 %v923
    %v1072 = vunpack.c.h.b16 %v923
    %v1073 = vunpack.c.l.b16 %v924
    %v1074 = vunpack.c.h.b16 %v924
    %v1075 = vunpack.c.l.b16 %v925
    %v1076 = vunpack.c.h.b16 %v925
    %v1077 = vunpack.c.l.b16 %v926
    %v1078 = vunpack.c.h.b16 %v926
    %v1079 = vunpack.c.l.b16 %v927
    %v1080 = vunpack.c.h.b16 %v927
    %v1081 = vunpack.c.l.b16 %v928
    %v1082 = vunpack.c.h.b16 %v928
    %v1083 = vunpack.c.l.b16 %v929
    %v1084 = vunpack.c.h.b16 %v929
    %v1085 = vunpack.c.l.b16 %v930
    %v1086 = vunpack.c.h.b16 %v930
    %v1087 = vpack.c.b16 %v985, %v983
    %v1088 = vpack.c.b16 %v986, %v984
    %v1089 = vpack.c.b16 %v989, %v987
    %v1090 = vpack.c.b16 %v990, %v988
    %v1091 = vpack.c.b16 %v993, %v991
    %v1092 = vpack.c.b16 %v994, %v992
    %v1093 = vpack.c.b16 %v997, %v995
    %v1094 = vpack.c.b16 %v998, %v996
    %v1095 = vpack.c.b16 %v1001, %v999
    %v1096 = vpack.c.b16 %v1002, %v1000
    %v1097 = vpack.c.b16 %v1005, %v1003
    %v1098 = vpack.c.b16 %v1006, %v1004
    %v1099 = vpack.c.b16 %v1009, %v1007
    %v1100 = vpack.c.b16 %v1010, %v1008
    %v1101 = vpack.c.b16 %v1013, %v1011
    %v1102 = vpack.c.b16 %v1014, %v1012
    %v1103 = vpack.c.b16 %v1017, %v1015
    %v1104 = vpack.c.b16 %v1018, %v1016
    %v1105 = vpack.c.b16 %v1021, %v1019
    %v1106 = vpack.c.b16 %v1022, %v1020
    %v1107 = vpack.c.b16 %v1025, %v1023
    %v1108 = vpack.c.b16 %v1026, %v1024
    %v1109 = vpack.c.b16 %v1029, %v1027
    %v1110 = vpack.c.b16 %v1030, %v1028
    %v1111 = vpack.c.b16 %v1033, %v1031
    %v1112 = vpack.c.b16 %v1034, %v1032
    %v1113 = vpack.c.b16 %v1037, %v1035
    %v1114 = vpack.c.b16 %v1038, %v1036
    %v1115 = vpack.c.b16 %v1041, %v1039
    %v1116 = vpack.c.b16 %v1042, %v1040
    %v1117 = vpack.c.b16 %v1045, %v1043
    %v1118 = vpack.c.b16 %v1046, %v1044
    %v1119 = vpack.c.b16 %v1049, %v1047
    %v1120 = vpack.c.b16 %v1050, %v1048
    %v1121 = vpack.c.b16 %v1053, %v1051
    %v1122 = vpack.c.b16 %v1054, %v1052
    %v1123 = vpack.c.b16 %v1057, %v1055
    %v1124 = vpack.c.b16 %v1058, %v1056
    %v1125 = vpack.c.b16 %v1061, %v1059
    %v1126 = vpack.c.b16 %v1062, %v1060
    %v1127 = vpack.c.b16 %v1065, %v1063
    %v1128 = vpack.c.b16 %v1066, %v1064
    %v1129 = vpack.c.b16 %v1069, %v1067
    %v1130 = vpack.c.b16 %v1070, %v1068
    %v1131 = vpack.c.b16 %v1073, %v1071
    %v1132 = vpack.c.b16 %v1074, %v1072
    %v1133 = vpack.c.b16 %v1077, %v1075
    %v1134 = vpack.c.b16 %v1078, %v1076
    %v1135 = vpack.c.b16 %v1081, %v1079
    %v1136 = vpack.c.b16 %v1082, %v1080
    %v1137 = vpack.c.b16 %v1085, %v1083
    %v1138 = vpack.c.b16 %v1086, %v1084
    %vm1191 = vcmask 261120
    %v1193 = vsel %vm1191, %v870, 0
    %v1196 = vsel %vm1191, %v874, 0
    %v1199 = vsel %vm1191, %v878, 0
    %1201 = vmatprep.subr.bf16.mxu0 %v1088
    %1202 = vmatpush1.bf16.msra.mxu0 %v1087
    %1203 = vmatprep.subr.bf16.mxu0 %v1090
    %1204 = vmatpush1.bf16.msra.mxu0 %v1089
    %1205 = vmatprep.subr.bf16.mxu0 %v1092
    %1206 = vmatpush1.bf16.msra.mxu0 %v1091
    %1207 = vmatprep.subr.bf16.mxu0 %v1094
    %1208 = vmatpush1.bf16.msra.mxu0 %v1093
    %1209 = vmatprep.subr.bf16.mxu0 %v1096
    %1210 = vmatpush1.bf16.msra.mxu0 %v1095
    %1211 = vmatprep.subr.bf16.mxu0 %v1098
    %1212 = vmatpush1.bf16.msra.mxu0 %v1097
    %1213 = vmatprep.subr.bf16.mxu0 %v1100
    %1214 = vmatpush1.bf16.msra.mxu0 %v1099
    %1215 = vmatprep.subr.bf16.mxu0 %v1102
    %1216 = vmatpush1.bf16.msra.mxu0 %v1101
    %1217 = vmatprep.subr.bf16.mxu0 %v1104
    %1218 = vmatpush1.bf16.msra.mxu0 %v1103
    %1219 = vmatprep.subr.bf16.mxu0 %v1106
    %1220 = vmatpush1.bf16.msra.mxu0 %v1105
    %1221 = vmatprep.subr.bf16.mxu0 %v1108
    %1222 = vmatpush1.bf16.msra.mxu0 %v1107
    %1223 = vmatprep.subr.bf16.mxu0 %v1110
    %1224 = vmatpush1.bf16.msra.mxu0 %v1109
    %1225 = vmatprep.subr.bf16.mxu0 %v1112
    %1226 = vmatpush1.bf16.msra.mxu0 %v1111
    %1227 = vmatprep.subr.bf16.mxu0 %v1114
    %1228 = vmatpush1.bf16.msra.mxu0 %v1113
    %1229 = vmatprep.subr.bf16.mxu0 %v1116
    %1230 = vmatpush1.bf16.msra.mxu0 %v1115
    %1231 = vmatprep.subr.bf16.mxu0 %v1118
    %1232 = vmatpush1.bf16.msra.mxu0 %v1117
    %1233 = vmatprep.mubr.bf16.mxu0 %v868
    %1234 = vmatmul.mubr.bf16.gmra.mrb[0].mxu0 %v867
    %v1235 = vpop.f32.mrb[0].mxu0
    %v1236 = vadd.f32 0.0, %v1235
    %v1237 = vpop.f32.mrb[0].mxu0
    %v1238 = vadd.f32 0.0, %v1237
    %v1239 = vpop.f32.mrb[0].mxu0
    %v1240 = vadd.f32 0.0, %v1239
    %v1241 = vpop.f32.mrb[0].mxu0
    %v1242 = vadd.f32 0.0, %v1241
    %1243 = vmatprep.mubr.bf16.mxu0 %v872
    %1244 = vmatmul.mubr.bf16.gmra.mrb[0].mxu0 %v871
    %v1245 = vpop.f32.mrb[0].mxu0
    %v1246 = vadd.f32 0.0, %v1245
    %v1247 = vpop.f32.mrb[0].mxu0
    %v1248 = vadd.f32 0.0, %v1247
    %v1249 = vpop.f32.mrb[0].mxu0
    %v1250 = vadd.f32 0.0, %v1249
    %v1251 = vpop.f32.mrb[0].mxu0
    %v1252 = vadd.f32 0.0, %v1251
    %1253 = vmatprep.mubr.bf16.mxu0 %v876
    %1254 = vmatmul.mubr.bf16.gmra.mrb[0].mxu0 %v875
    %v1255 = vpop.f32.mrb[0].mxu0
    %v1256 = vadd.f32 0.0, %v1255
    %v1257 = vpop.f32.mrb[0].mxu0
    %v1258 = vadd.f32 0.0, %v1257
    %v1259 = vpop.f32.mrb[0].mxu0
    %v1260 = vpop.f32.mrb[0].mxu0
    %1261 = vdwg.mxu0
    %1262 = vmatprep.subr.bf16.mxu0 %v1120
    %1263 = vmatpush1.bf16.msra.mxu0 %v1119
    %1264 = vmatprep.subr.bf16.mxu0 %v1122
    %1265 = vmatpush1.bf16.msra.mxu0 %v1121
    %1266 = vmatprep.subr.bf16.mxu0 %v1124
    %1267 = vmatpush1.bf16.msra.mxu0 %v1123
    %1268 = vmatprep.subr.bf16.mxu0 %v1126
    %1269 = vmatpush1.bf16.msra.mxu0 %v1125
    %1270 = vmatprep.subr.bf16.mxu0 %v1128
    %1271 = vmatpush1.bf16.msra.mxu0 %v1127
    %1272 = vmatprep.subr.bf16.mxu0 %v1130
    %1273 = vmatpush1.bf16.msra.mxu0 %v1129
    %1274 = vmatprep.subr.bf16.mxu0 %v1132
    %1275 = vmatpush1.bf16.msra.mxu0 %v1131
    %1276 = vmatprep.subr.bf16.mxu0 %v1134
    %1277 = vmatpush1.bf16.msra.mxu0 %v1133
    %1278 = vmatprep.subr.bf16.mxu0 %v1136
    %1279 = vmatpush1.bf16.msra.mxu0 %v1135
    %1280 = vmatprep.subr.bf16.mxu0 %v1138
    %1281 = vmatpush1.bf16.msra.mxu0 %v1137
    %1282 = vmatprep.subr.bf16.mxu0 0
    %1283 = vmatpush1.bf16.msra.mxu0 0
    %1284 = vmatprep.subr.bf16.mxu0 0
    %1285 = vmatpush1.bf16.msra.mxu0 0
    %1286 = vmatprep.subr.bf16.mxu0 0
    %1287 = vmatpush1.bf16.msra.mxu0 0
    %1288 = vmatprep.subr.bf16.mxu0 0
    %1289 = vmatpush1.bf16.msra.mxu0 0
    %1290 = vmatprep.subr.bf16.mxu0 0
    %1291 = vmatpush1.bf16.msra.mxu0 0
    %1292 = vmatprep.subr.bf16.mxu0 0
    %1293 = vmatpush1.bf16.msra.mxu0 0
    %1294 = vmatprep.mubr.bf16.mxu0 %v1193
    %1295 = vmatmul.mubr.bf16.gmra.mrb[0].mxu0 %v869
    %v1296 = vpop.f32.mrb[0].mxu0
    %v1297 = vadd.f32 %v1236, %v1296
    %v1298 = vpop.f32.mrb[0].mxu0
    %v1299 = vadd.f32 %v1238, %v1298
    %v1300 = vpop.f32.mrb[0].mxu0
    %v1301 = vadd.f32 %v1240, %v1300
    %v1302 = vpop.f32.mrb[0].mxu0
    %v1303 = vadd.f32 %v1242, %v1302
    %1304 = vmatprep.mubr.bf16.mxu0 %v1196
    %1305 = vmatmul.mubr.bf16.gmra.mrb[0].mxu0 %v873
    %v1306 = vpop.f32.mrb[0].mxu0
    %v1307 = vadd.f32 %v1246, %v1306
    %v1308 = vpop.f32.mrb[0].mxu0
    %v1309 = vadd.f32 %v1248, %v1308
    %v1310 = vpop.f32.mrb[0].mxu0
    %v1311 = vadd.f32 %v1250, %v1310
    %v1312 = vpop.f32.mrb[0].mxu0
    %v1313 = vadd.f32 %v1252, %v1312
    %1314 = vmatprep.mubr.bf16.mxu0 %v1199
    %1315 = vmatmul.mubr.bf16.gmra.mrb[0].mxu0 %v877
    %v1316 = vpop.f32.mrb[0].mxu0
    %v1317 = vadd.f32 %v1256, %v1316
    %v1318 = vpop.f32.mrb[0].mxu0
    %v1319 = vadd.f32 %v1258, %v1318
    %v1320 = vpop.f32.mrb[0].mxu0
    %v1321 = vpop.f32.mrb[0].mxu0
    %1322 = vdwg.mxu0
    %s1323 = scalar_lea.vmem %s4, 416
    %v1324 = vld [vmem:[%s1323] sm:$0xff]
    %v1325 = vld [vmem:[%s1323 + $0x8] sm:$0xff]
    %v1326 = vld [vmem:[%s1323 + $0x10] sm:$0xff]
    %v1327 = vld [vmem:[%s1323 + $0x18] sm:$0xff]
    %v1328 = vld [vmem:[%s1323 + $0x20] sm:$0xff]
    %v1329 = vld [vmem:[%s1323 + $0x28] sm:$0xff]
    %v1330 = vld [vmem:[%s1323 + $0x30] sm:$0xff]
    %v1331 = vld [vmem:[%s1323 + $0x38] sm:$0xff]
    %v1332 = vld [vmem:[%s1323 + $0x40] sm:$0xff]
    %v1333 = vld [vmem:[%s1323 + $0x48] sm:$0xff]
    %v1334 = vld [vmem:[%s1323 + $0x50] sm:$0xff]
    %v1335 = vld [vmem:[%s1323 + $0x58] sm:$0xff]
    %v1336 = vld [vmem:[%s1323 + $0x60] sm:$0xff]
    %v1337 = vld [vmem:[%s1323 + $0x68] sm:$0xff]
    %v1338 = vld [vmem:[%s1323 + $0x70] sm:$0xff]
    %v1339 = vld [vmem:[%s1323 + $0x78] sm:$0xff]
    %v1340 = vld [vmem:[%s1323 + $0x80] sm:$0xff]
    %v1341 = vld [vmem:[%s1323 + $0x88] sm:$0xff]
    %v1342 = vld [vmem:[%s1323 + $0x90] sm:$0xff]
    %v1343 = vld [vmem:[%s1323 + $0x98] sm:$0xff]
    %v1344 = vld [vmem:[%s1323 + $0xa0] sm:$0xff]
    %v1345 = vld [vmem:[%s1323 + $0xa8] sm:$0xff]
    %v1346 = vld [vmem:[%s1323 + $0xb0] sm:$0xff]
    %v1347 = vld [vmem:[%s1323 + $0xb8] sm:$0xff]
    %v1348 = vld [vmem:[%s1323 + $0xc0] sm:$0xff]
    %v1349 = vld [vmem:[%s1323 + $0xc8] sm:$0xff]
    %v1350 = vld [vmem:[%s1323 + $0xd0] sm:$0xff]
    %v1351 = vld [vmem:[%s1323 + $0xd8] sm:$0xff]
    %v1352 = vld [vmem:[%s1323 + $0xe0] sm:$0xff]
    %v1353 = vld [vmem:[%s1323 + $0xe8] sm:$0xff]
    %v1354 = vld [vmem:[%s1323 + $0xf0] sm:$0xff]
    %v1355 = vld [vmem:[%s1323 + $0xf8] sm:$0xff]
    %v1356 = vld [vmem:[%s1323 + $0x100] sm:$0xff]
    %v1357 = vld [vmem:[%s1323 + $0x108] sm:$0xff]
    %v1358 = vld [vmem:[%s1323 + $0x110] sm:$0xff]
    %v1359 = vld [vmem:[%s1323 + $0x118] sm:$0xff]
    %v1360 = vld [vmem:[%s1323 + $0x120] sm:$0xff]
    %v1361 = vld [vmem:[%s1323 + $0x128] sm:$0xff]
    %v1362 = vld [vmem:[%s1323 + $0x130] sm:$0xff]
    %v1363 = vld [vmem:[%s1323 + $0x138] sm:$0xff]
    %v1364 = vld [vmem:[%s1323 + $0x140] sm:$0xff]
    %v1365 = vld [vmem:[%s1323 + $0x148] sm:$0xff]
    %v1366 = vld [vmem:[%s1323 + $0x150] sm:$0xff]
    %v1367 = vld [vmem:[%s1323 + $0x158] sm:$0xff]
    %v1368 = vld [vmem:[%s1323 + $0x160] sm:$0xff]
    %v1369 = vld [vmem:[%s1323 + $0x168] sm:$0xff]
    %v1370 = vld [vmem:[%s1323 + $0x170] sm:$0xff]
    %v1371 = vld [vmem:[%s1323 + $0x178] sm:$0xff]
    %v1372 = vld [vmem:[%s1323 + $0x180] sm:$0xff]
    %v1373 = vld [vmem:[%s1323 + $0x188] sm:$0xff]
    %v1374 = vld [vmem:[%s1323 + $0x190] sm:$0xff]
    %v1375 = vld [vmem:[%s1323 + $0x198] sm:$0xff]
    %v1428 = vunpack.c.l.b16 %v1324
    %v1429 = vunpack.c.h.b16 %v1324
    %v1430 = vunpack.c.l.b16 %v1325
    %v1431 = vunpack.c.h.b16 %v1325
    %v1432 = vunpack.c.l.b16 %v1326
    %v1433 = vunpack.c.h.b16 %v1326
    %v1434 = vunpack.c.l.b16 %v1327
    %v1435 = vunpack.c.h.b16 %v1327
    %v1436 = vunpack.c.l.b16 %v1328
    %v1437 = vunpack.c.h.b16 %v1328
    %v1438 = vunpack.c.l.b16 %v1329
    %v1439 = vunpack.c.h.b16 %v1329
    %v1440 = vunpack.c.l.b16 %v1330
    %v1441 = vunpack.c.h.b16 %v1330
    %v1442 = vunpack.c.l.b16 %v1331
    %v1443 = vunpack.c.h.b16 %v1331
    %v1444 = vunpack.c.l.b16 %v1332
    %v1445 = vunpack.c.h.b16 %v1332
    %v1446 = vunpack.c.l.b16 %v1333
    %v1447 = vunpack.c.h.b16 %v1333
    %v1448 = vunpack.c.l.b16 %v1334
    %v1449 = vunpack.c.h.b16 %v1334
    %v1450 = vunpack.c.l.b16 %v1335
    %v1451 = vunpack.c.h.b16 %v1335
    %v1452 = vunpack.c.l.b16 %v1336
    %v1453 = vunpack.c.h.b16 %v1336
    %v1454 = vunpack.c.l.b16 %v1337
    %v1455 = vunpack.c.h.b16 %v1337
    %v1456 = vunpack.c.l.b16 %v1338
    %v1457 = vunpack.c.h.b16 %v1338
    %v1458 = vunpack.c.l.b16 %v1339
    %v1459 = vunpack.c.h.b16 %v1339
    %v1460 = vunpack.c.l.b16 %v1340
    %v1461 = vunpack.c.h.b16 %v1340
    %v1462 = vunpack.c.l.b16 %v1341
    %v1463 = vunpack.c.h.b16 %v1341
    %v1464 = vunpack.c.l.b16 %v1342
    %v1465 = vunpack.c.h.b16 %v1342
    %v1466 = vunpack.c.l.b16 %v1343
    %v1467 = vunpack.c.h.b16 %v1343
    %v1468 = vunpack.c.l.b16 %v1344
    %v1469 = vunpack.c.h.b16 %v1344
    %v1470 = vunpack.c.l.b16 %v1345
    %v1471 = vunpack.c.h.b16 %v1345
    %v1472 = vunpack.c.l.b16 %v1346
    %v1473 = vunpack.c.h.b16 %v1346
    %v1474 = vunpack.c.l.b16 %v1347
    %v1475 = vunpack.c.h.b16 %v1347
    %v1476 = vunpack.c.l.b16 %v1348
    %v1477 = vunpack.c.h.b16 %v1348
    %v1478 = vunpack.c.l.b16 %v1349
    %v1479 = vunpack.c.h.b16 %v1349
    %v1480 = vunpack.c.l.b16 %v1350
    %v1481 = vunpack.c.h.b16 %v1350
    %v1482 = vunpack.c.l.b16 %v1351
    %v1483 = vunpack.c.h.b16 %v1351
    %v1484 = vunpack.c.l.b16 %v1352
    %v1485 = vunpack.c.h.b16 %v1352
    %v1486 = vunpack.c.l.b16 %v1353
    %v1487 = vunpack.c.h.b16 %v1353
    %v1488 = vunpack.c.l.b16 %v1354
    %v1489 = vunpack.c.h.b16 %v1354
    %v1490 = vunpack.c.l.b16 %v1355
    %v1491 = vunpack.c.h.b16 %v1355
    %v1492 = vunpack.c.l.b16 %v1356
    %v1493 = vunpack.c.h.b16 %v1356
    %v1494 = vunpack.c.l.b16 %v1357
    %v1495 = vunpack.c.h.b16 %v1357
    %v1496 = vunpack.c.l.b16 %v1358
    %v1497 = vunpack.c.h.b16 %v1358
    %v1498 = vunpack.c.l.b16 %v1359
    %v1499 = vunpack.c.h.b16 %v1359
    %v1500 = vunpack.c.l.b16 %v1360
    %v1501 = vunpack.c.h.b16 %v1360
    %v1502 = vunpack.c.l.b16 %v1361
    %v1503 = vunpack.c.h.b16 %v1361
    %v1504 = vunpack.c.l.b16 %v1362
    %v1505 = vunpack.c.h.b16 %v1362
    %v1506 = vunpack.c.l.b16 %v1363
    %v1507 = vunpack.c.h.b16 %v1363
    %v1508 = vunpack.c.l.b16 %v1364
    %v1509 = vunpack.c.h.b16 %v1364
    %v1510 = vunpack.c.l.b16 %v1365
    %v1511 = vunpack.c.h.b16 %v1365
    %v1512 = vunpack.c.l.b16 %v1366
    %v1513 = vunpack.c.h.b16 %v1366
    %v1514 = vunpack.c.l.b16 %v1367
    %v1515 = vunpack.c.h.b16 %v1367
    %v1516 = vunpack.c.l.b16 %v1368
    %v1517 = vunpack.c.h.b16 %v1368
    %v1518 = vunpack.c.l.b16 %v1369
    %v1519 = vunpack.c.h.b16 %v1369
    %v1520 = vunpack.c.l.b16 %v1370
    %v1521 = vunpack.c.h.b16 %v1370
    %v1522 = vunpack.c.l.b16 %v1371
    %v1523 = vunpack.c.h.b16 %v1371
    %v1524 = vunpack.c.l.b16 %v1372
    %v1525 = vunpack.c.h.b16 %v1372
    %v1526 = vunpack.c.l.b16 %v1373
    %v1527 = vunpack.c.h.b16 %v1373
    %v1528 = vunpack.c.l.b16 %v1374
    %v1529 = vunpack.c.h.b16 %v1374
    %v1530 = vunpack.c.l.b16 %v1375
    %v1531 = vunpack.c.h.b16 %v1375
    %v1532 = vpack.c.b16 %v1430, %v1428
    %v1533 = vpack.c.b16 %v1431, %v1429
    %v1534 = vpack.c.b16 %v1434, %v1432
    %v1535 = vpack.c.b16 %v1435, %v1433
    %v1536 = vpack.c.b16 %v1438, %v1436
    %v1537 = vpack.c.b16 %v1439, %v1437
    %v1538 = vpack.c.b16 %v1442, %v1440
    %v1539 = vpack.c.b16 %v1443, %v1441
    %v1540 = vpack.c.b16 %v1446, %v1444
    %v1541 = vpack.c.b16 %v1447, %v1445
    %v1542 = vpack.c.b16 %v1450, %v1448
    %v1543 = vpack.c.b16 %v1451, %v1449
    %v1544 = vpack.c.b16 %v1454, %v1452
    %v1545 = vpack.c.b16 %v1455, %v1453
    %v1546 = vpack.c.b16 %v1458, %v1456
    %v1547 = vpack.c.b16 %v1459, %v1457
    %v1548 = vpack.c.b16 %v1462, %v1460
    %v1549 = vpack.c.b16 %v1463, %v1461
    %v1550 = vpack.c.b16 %v1466, %v1464
    %v1551 = vpack.c.b16 %v1467, %v1465
    %v1552 = vpack.c.b16 %v1470, %v1468
    %v1553 = vpack.c.b16 %v1471, %v1469
    %v1554 = vpack.c.b16 %v1474, %v1472
    %v1555 = vpack.c.b16 %v1475, %v1473
    %v1556 = vpack.c.b16 %v1478, %v1476
    %v1557 = vpack.c.b16 %v1479, %v1477
    %v1558 = vpack.c.b16 %v1482, %v1480
    %v1559 = vpack.c.b16 %v1483, %v1481
    %v1560 = vpack.c.b16 %v1486, %v1484
    %v1561 = vpack.c.b16 %v1487, %v1485
    %v1562 = vpack.c.b16 %v1490, %v1488
    %v1563 = vpack.c.b16 %v1491, %v1489
    %v1564 = vpack.c.b16 %v1494, %v1492
    %v1565 = vpack.c.b16 %v1495, %v1493
    %v1566 = vpack.c.b16 %v1498, %v1496
    %v1567 = vpack.c.b16 %v1499, %v1497
    %v1568 = vpack.c.b16 %v1502, %v1500
    %v1569 = vpack.c.b16 %v1503, %v1501
    %v1570 = vpack.c.b16 %v1506, %v1504
    %v1571 = vpack.c.b16 %v1507, %v1505
    %v1572 = vpack.c.b16 %v1510, %v1508
    %v1573 = vpack.c.b16 %v1511, %v1509
    %v1574 = vpack.c.b16 %v1514, %v1512
    %v1575 = vpack.c.b16 %v1515, %v1513
    %v1576 = vpack.c.b16 %v1518, %v1516
    %v1577 = vpack.c.b16 %v1519, %v1517
    %v1578 = vpack.c.b16 %v1522, %v1520
    %v1579 = vpack.c.b16 %v1523, %v1521
    %v1580 = vpack.c.b16 %v1526, %v1524
    %v1581 = vpack.c.b16 %v1527, %v1525
    %v1582 = vpack.c.b16 %v1530, %v1528
    %v1583 = vpack.c.b16 %v1531, %v1529
    %1636 = vmatprep.subr.bf16.mxu0 %v1533
    %1637 = vmatpush1.bf16.msra.mxu0 %v1532
    %1638 = vmatprep.subr.bf16.mxu0 %v1535
    %1639 = vmatpush1.bf16.msra.mxu0 %v1534
    %1640 = vmatprep.subr.bf16.mxu0 %v1537
    %1641 = vmatpush1.bf16.msra.mxu0 %v1536
    %1642 = vmatprep.subr.bf16.mxu0 %v1539
    %1643 = vmatpush1.bf16.msra.mxu0 %v1538
    %1644 = vmatprep.subr.bf16.mxu0 %v1541
    %1645 = vmatpush1.bf16.msra.mxu0 %v1540
    %1646 = vmatprep.subr.bf16.mxu0 %v1543
    %1647 = vmatpush1.bf16.msra.mxu0 %v1542
    %1648 = vmatprep.subr.bf16.mxu0 %v1545
    %1649 = vmatpush1.bf16.msra.mxu0 %v1544
    %1650 = vmatprep.subr.bf16.mxu0 %v1547
    %1651 = vmatpush1.bf16.msra.mxu0 %v1546
    %1652 = vmatprep.subr.bf16.mxu0 %v1549
    %1653 = vmatpush1.bf16.msra.mxu0 %v1548
    %1654 = vmatprep.subr.bf16.mxu0 %v1551
    %1655 = vmatpush1.bf16.msra.mxu0 %v1550
    %1656 = vmatprep.subr.bf16.mxu0 %v1553
    %1657 = vmatpush1.bf16.msra.mxu0 %v1552
    %1658 = vmatprep.subr.bf16.mxu0 %v1555
    %1659 = vmatpush1.bf16.msra.mxu0 %v1554
    %1660 = vmatprep.subr.bf16.mxu0 %v1557
    %1661 = vmatpush1.bf16.msra.mxu0 %v1556
    %1662 = vmatprep.subr.bf16.mxu0 %v1559
    %1663 = vmatpush1.bf16.msra.mxu0 %v1558
    %1664 = vmatprep.subr.bf16.mxu0 %v1561
    %1665 = vmatpush1.bf16.msra.mxu0 %v1560
    %1666 = vmatprep.subr.bf16.mxu0 %v1563
    %1667 = vmatpush1.bf16.msra.mxu0 %v1562
    %1668 = vmatprep.mubr.bf16.mxu0 %v868
    %1669 = vmatmul.mubr.bf16.gmra.mrb[0].mxu0 %v867
    %v1670 = vpop.f32.mrb[0].mxu0
    %v1671 = vadd.f32 0.0, %v1670
    %v1672 = vpop.f32.mrb[0].mxu0
    %v1673 = vadd.f32 0.0, %v1672
    %v1674 = vpop.f32.mrb[0].mxu0
    %v1675 = vadd.f32 0.0, %v1674
    %v1676 = vpop.f32.mrb[0].mxu0
    %v1677 = vadd.f32 0.0, %v1676
    %1678 = vmatprep.mubr.bf16.mxu0 %v872
    %1679 = vmatmul.mubr.bf16.gmra.mrb[0].mxu0 %v871
    %v1680 = vpop.f32.mrb[0].mxu0
    %v1681 = vadd.f32 0.0, %v1680
    %v1682 = vpop.f32.mrb[0].mxu0
    %v1683 = vadd.f32 0.0, %v1682
    %v1684 = vpop.f32.mrb[0].mxu0
    %v1685 = vadd.f32 0.0, %v1684
    %v1686 = vpop.f32.mrb[0].mxu0
    %v1687 = vadd.f32 0.0, %v1686
    %1688 = vmatprep.mubr.bf16.mxu0 %v876
    %1689 = vmatmul.mubr.bf16.gmra.mrb[0].mxu0 %v875
    %v1690 = vpop.f32.mrb[0].mxu0
    %v1691 = vadd.f32 0.0, %v1690
    %v1692 = vpop.f32.mrb[0].mxu0
    %v1693 = vadd.f32 0.0, %v1692
    %v1694 = vpop.f32.mrb[0].mxu0
    %v1695 = vpop.f32.mrb[0].mxu0
    %1696 = vdwg.mxu0
    %1697 = vmatprep.subr.bf16.mxu0 %v1565
    %1698 = vmatpush1.bf16.msra.mxu0 %v1564
    %1699 = vmatprep.subr.bf16.mxu0 %v1567
    %1700 = vmatpush1.bf16.msra.mxu0 %v1566
    %1701 = vmatprep.subr.bf16.mxu0 %v1569
    %1702 = vmatpush1.bf16.msra.mxu0 %v1568
    %1703 = vmatprep.subr.bf16.mxu0 %v1571
    %1704 = vmatpush1.bf16.msra.mxu0 %v1570
    %1705 = vmatprep.subr.bf16.mxu0 %v1573
    %1706 = vmatpush1.bf16.msra.mxu0 %v1572
    %1707 = vmatprep.subr.bf16.mxu0 %v1575
    %1708 = vmatpush1.bf16.msra.mxu0 %v1574
    %1709 = vmatprep.subr.bf16.mxu0 %v1577
    %1710 = vmatpush1.bf16.msra.mxu0 %v1576
    %1711 = vmatprep.subr.bf16.mxu0 %v1579
    %1712 = vmatpush1.bf16.msra.mxu0 %v1578
    %1713 = vmatprep.subr.bf16.mxu0 %v1581
    %1714 = vmatpush1.bf16.msra.mxu0 %v1580
    %1715 = vmatprep.subr.bf16.mxu0 %v1583
    %1716 = vmatpush1.bf16.msra.mxu0 %v1582
    %1717 = vmatprep.subr.bf16.mxu0 0
    %1718 = vmatpush1.bf16.msra.mxu0 0
    %1719 = vmatprep.subr.bf16.mxu0 0
    %1720 = vmatpush1.bf16.msra.mxu0 0
    %1721 = vmatprep.subr.bf16.mxu0 0
    %1722 = vmatpush1.bf16.msra.mxu0 0
    %1723 = vmatprep.subr.bf16.mxu0 0
    %1724 = vmatpush1.bf16.msra.mxu0 0
    %1725 = vmatprep.subr.bf16.mxu0 0
    %1726 = vmatpush1.bf16.msra.mxu0 0
    %1727 = vmatprep.subr.bf16.mxu0 0
    %1728 = vmatpush1.bf16.msra.mxu0 0
    %1729 = vmatprep.mubr.bf16.mxu0 %v1193
    %1730 = vmatmul.mubr.bf16.gmra.mrb[0].mxu0 %v869
    %v1731 = vpop.f32.mrb[0].mxu0
    %v1732 = vadd.f32 %v1671, %v1731
    %v1733 = vpop.f32.mrb[0].mxu0
    %v1734 = vadd.f32 %v1673, %v1733
    %v1735 = vpop.f32.mrb[0].mxu0
    %v1736 = vadd.f32 %v1675, %v1735
    %v1737 = vpop.f32.mrb[0].mxu0
    %v1738 = vadd.f32 %v1677, %v1737
    %1739 = vmatprep.mubr.bf16.mxu0 %v1196
    %1740 = vmatmul.mubr.bf16.gmra.mrb[0].mxu0 %v873
    %v1741 = vpop.f32.mrb[0].mxu0
    %v1742 = vadd.f32 %v1681, %v1741
    %v1743 = vpop.f32.mrb[0].mxu0
    %v1744 = vadd.f32 %v1683, %v1743
    %v1745 = vpop.f32.mrb[0].mxu0
    %v1746 = vadd.f32 %v1685, %v1745
    %v1747 = vpop.f32.mrb[0].mxu0
    %v1748 = vadd.f32 %v1687, %v1747
    %1749 = vmatprep.mubr.bf16.mxu0 %v1199
    %1750 = vmatmul.mubr.bf16.gmra.mrb[0].mxu0 %v877
    %v1751 = vpop.f32.mrb[0].mxu0
    %v1752 = vadd.f32 %v1691, %v1751
    %v1753 = vpop.f32.mrb[0].mxu0
    %v1754 = vadd.f32 %v1693, %v1753
    %v1755 = vpop.f32.mrb[0].mxu0
    %v1756 = vpop.f32.mrb[0].mxu0
    %1757 = vdwg.mxu0
    %v1758 = vmax.f32 %v1297, %v1732
    %v1759 = vmax.f32 %v1299, %v1734
    %v1760 = vmax.f32 %v1301, %v1736
    %v1761 = vmax.f32 %v1303, %v1738
    %v1762 = vmax.f32 %v1307, %v1742
    %v1763 = vmax.f32 %v1309, %v1744
    %v1764 = vmax.f32 %v1311, %v1746
    %v1765 = vmax.f32 %v1313, %v1748
    %v1766 = vmax.f32 %v1317, %v1752
    %v1767 = vmax.f32 %v1319, %v1754
    %v1768 = vpack.c.bf16 %v1760, %v1758
    %v1769 = vpack.c.bf16 %v1761, %v1759
    %v1770 = vpack.c.bf16 %v1764, %v1762
    %v1771 = vpack.c.bf16 %v1765, %v1763
    %v1772 = vpack.c.bf16 %v1766, %v1766
    %v1773 = vpack.c.bf16 %v1767, %v1767
    %v1774 = vld [vmem:[%s5] sm:$0xff]
    %v1775 = vld [vmem:[%s5 + $0x8] sm:$0xf]
    %v1776 = vld [vmem:[%s5 + $0xc] sm:$0xff]
    %v1777 = vld [vmem:[%s5 + $0x14] sm:$0xf]
    %v1778 = vld [vmem:[%s5 + $0x18] sm:$0xff]
    %v1779 = vld [vmem:[%s5 + $0x20] sm:$0xf]
    %v1780 = vld [vmem:[%s5 + $0x24] sm:$0xff]
    %v1781 = vld [vmem:[%s5 + $0x2c] sm:$0xf]
    %v1782 = vld [vmem:[%s5 + $0x30] sm:$0xff]
    %v1783 = vld [vmem:[%s5 + $0x38] sm:$0xf]
    %v1784 = vld [vmem:[%s5 + $0x3c] sm:$0xff]
    %v1785 = vld [vmem:[%s5 + $0x44] sm:$0xf]
    %v1786 = vld [vmem:[%s5 + $0x48] sm:$0xff]
    %v1787 = vld [vmem:[%s5 + $0x50] sm:$0xf]
    %v1788 = vld [vmem:[%s5 + $0x54] sm:$0xff]
    %v1789 = vld [vmem:[%s5 + $0x5c] sm:$0xf]
    %v1790 = vld [vmem:[%s5 + $0x60] sm:$0xff]
    %v1791 = vld [vmem:[%s5 + $0x68] sm:$0xf]
    %v1792 = vld [vmem:[%s5 + $0x6c] sm:$0xff]
    %v1793 = vld [vmem:[%s5 + $0x74] sm:$0xf]
    %v1794 = vld [vmem:[%s5 + $0x78] sm:$0xff]
    %v1795 = vld [vmem:[%s5 + $0x80] sm:$0xf]
    %v1796 = vld [vmem:[%s5 + $0x84] sm:$0xff]
    %v1797 = vld [vmem:[%s5 + $0x8c] sm:$0xf]
    %v1798 = vld [vmem:[%s5 + $0x90] sm:$0xff]
    %v1799 = vld [vmem:[%s5 + $0x98] sm:$0xf]
    %v1800 = vld [vmem:[%s5 + $0x9c] sm:$0xff]
    %v1801 = vld [vmem:[%s5 + $0xa4] sm:$0xf]
    %v1802 = vld [vmem:[%s5 + $0xa8] sm:$0xff]
    %v1803 = vld [vmem:[%s5 + $0xb0] sm:$0xf]
    %v1804 = vld [vmem:[%s5 + $0xb4] sm:$0xff]
    %v1805 = vld [vmem:[%s5 + $0xbc] sm:$0xf]
    %v1806 = vld [vmem:[%s5 + $0xc0] sm:$0xff]
    %v1807 = vld [vmem:[%s5 + $0xc8] sm:$0xf]
    %v1808 = vld [vmem:[%s5 + $0xcc] sm:$0xff]
    %v1809 = vld [vmem:[%s5 + $0xd4] sm:$0xf]
    %v1810 = vld [vmem:[%s5 + $0xd8] sm:$0xff]
    %v1811 = vld [vmem:[%s5 + $0xe0] sm:$0xf]
    %v1812 = vld [vmem:[%s5 + $0xe4] sm:$0xff]
    %v1813 = vld [vmem:[%s5 + $0xec] sm:$0xf]
    %v1814 = vld [vmem:[%s5 + $0xf0] sm:$0xff]
    %v1815 = vld [vmem:[%s5 + $0xf8] sm:$0xf]
    %v1816 = vld [vmem:[%s5 + $0xfc] sm:$0xff]
    %v1817 = vld [vmem:[%s5 + $0x104] sm:$0xf]
    %v1818 = vld [vmem:[%s5 + $0x108] sm:$0xff]
    %v1819 = vld [vmem:[%s5 + $0x110] sm:$0xf]
    %v1820 = vld [vmem:[%s5 + $0x114] sm:$0xff]
    %v1821 = vld [vmem:[%s5 + $0x11c] sm:$0xf]
    %v1822 = vld [vmem:[%s5 + $0x120] sm:$0xff]
    %v1823 = vld [vmem:[%s5 + $0x128] sm:$0xf]
    %v1824 = vld [vmem:[%s5 + $0x12c] sm:$0xff]
    %v1825 = vld [vmem:[%s5 + $0x134] sm:$0xf]
    %s1826 = scalar_lea.vmem %s5, 312
    %v1827 = vld [vmem:[%s1826] sm:$0xff]
    %v1828 = vld [vmem:[%s1826 + $0x8] sm:$0xf]
    %v1829 = vld [vmem:[%s1826 + $0xc] sm:$0xff]
    %v1830 = vld [vmem:[%s1826 + $0x14] sm:$0xf]
    %v1831 = vld [vmem:[%s1826 + $0x18] sm:$0xff]
    %v1832 = vld [vmem:[%s1826 + $0x20] sm:$0xf]
    %v1833 = vld [vmem:[%s1826 + $0x24] sm:$0xff]
    %v1834 = vld [vmem:[%s1826 + $0x2c] sm:$0xf]
    %v1835 = vld [vmem:[%s1826 + $0x30] sm:$0xff]
    %v1836 = vld [vmem:[%s1826 + $0x38] sm:$0xf]
    %v1837 = vld [vmem:[%s1826 + $0x3c] sm:$0xff]
    %v1838 = vld [vmem:[%s1826 + $0x44] sm:$0xf]
    %v1839 = vld [vmem:[%s1826 + $0x48] sm:$0xff]
    %v1840 = vld [vmem:[%s1826 + $0x50] sm:$0xf]
    %v1841 = vld [vmem:[%s1826 + $0x54] sm:$0xff]
    %v1842 = vld [vmem:[%s1826 + $0x5c] sm:$0xf]
    %v1843 = vld [vmem:[%s1826 + $0x60] sm:$0xff]
    %v1844 = vld [vmem:[%s1826 + $0x68] sm:$0xf]
    %v1845 = vld [vmem:[%s1826 + $0x6c] sm:$0xff]
    %v1846 = vld [vmem:[%s1826 + $0x74] sm:$0xf]
    %v1847 = vld [vmem:[%s1826 + $0x78] sm:$0xff]
    %v1848 = vld [vmem:[%s1826 + $0x80] sm:$0xf]
    %v1849 = vld [vmem:[%s1826 + $0x84] sm:$0xff]
    %v1850 = vld [vmem:[%s1826 + $0x8c] sm:$0xf]
    %v1851 = vld [vmem:[%s1826 + $0x90] sm:$0xff]
    %v1852 = vld [vmem:[%s1826 + $0x98] sm:$0xf]
    %v1853 = vld [vmem:[%s1826 + $0x9c] sm:$0xff]
    %v1854 = vld [vmem:[%s1826 + $0xa4] sm:$0xf]
    %v1855 = vld [vmem:[%s1826 + $0xa8] sm:$0xff]
    %v1856 = vld [vmem:[%s1826 + $0xb0] sm:$0xf]
    %v1857 = vld [vmem:[%s1826 + $0xb4] sm:$0xff]
    %v1858 = vld [vmem:[%s1826 + $0xbc] sm:$0xf]
    %v1859 = vld [vmem:[%s1826 + $0xc0] sm:$0xff]
    %v1860 = vld [vmem:[%s1826 + $0xc8] sm:$0xf]
    %v1861 = vld [vmem:[%s1826 + $0xcc] sm:$0xff]
    %v1862 = vld [vmem:[%s1826 + $0xd4] sm:$0xf]
    %v1863 = vld [vmem:[%s1826 + $0xd8] sm:$0xff]
    %v1864 = vld [vmem:[%s1826 + $0xe0] sm:$0xf]
    %v1865 = vld [vmem:[%s1826 + $0xe4] sm:$0xff]
    %v1866 = vld [vmem:[%s1826 + $0xec] sm:$0xf]
    %v1867 = vld [vmem:[%s1826 + $0xf0] sm:$0xff]
    %v1868 = vld [vmem:[%s1826 + $0xf8] sm:$0xf]
    %v1869 = vld [vmem:[%s1826 + $0xfc] sm:$0xff]
    %v1870 = vld [vmem:[%s1826 + $0x104] sm:$0xf]
    %v1871 = vld [vmem:[%s1826 + $0x108] sm:$0xff]
    %v1872 = vld [vmem:[%s1826 + $0x110] sm:$0xf]
    %v1873 = vld [vmem:[%s1826 + $0x114] sm:$0xff]
    %v1874 = vld [vmem:[%s1826 + $0x11c] sm:$0xf]
    %v1875 = vld [vmem:[%s1826 + $0x120] sm:$0xff]
    %v1876 = vld [vmem:[%s1826 + $0x128] sm:$0xf]
    %v1877 = vld [vmem:[%s1826 + $0x12c] sm:$0xff]
    %v1878 = vld [vmem:[%s1826 + $0x134] sm:$0xf]
    %vm1879 = vsmask.f32 7424
    %v1881 = vshrl.u32 %v1768, 16
    %v1883 = vshll.u32 %v1768, 16
    %v1885 = vrot.slane %v1883, 1
    %v1886 = vor.u32 %v1881, %v1885
    %v1888 = vshll.u32 %v1770, 16
    %v1890 = vrot.slane %v1888, 1
    %v1891 = vsel %vm1879, %v1886, %v1890
    %v1893 = vshrl.u32 %v1769, 16
    %v1895 = vshll.u32 %v1769, 16
    %v1897 = vrot.slane %v1895, 1
    %v1898 = vor.u32 %v1893, %v1897
    %v1900 = vshll.u32 %v1771, 16
    %v1902 = vrot.slane %v1900, 1
    %v1903 = vsel %vm1879, %v1898, %v1902
    %v1904 = vshrl.u32 %v1770, 16
    %v1906 = vor.u32 %v1904, %v1890
    %v1908 = vshll.u32 %v1772, 16
    %v1910 = vrot.slane %v1908, 1
    %v1911 = vsel %vm1879, %v1906, %v1910
    %v1912 = vshrl.u32 %v1771, 16
    %v1914 = vor.u32 %v1912, %v1902
    %v1916 = vshll.u32 %v1773, 16
    %v1918 = vrot.slane %v1916, 1
    %v1919 = vsel %vm1879, %v1914, %v1918
    %v1920 = vshrl.u32 %v1772, 16
    %v1922 = vor.u32 %v1920, %v1910
    %v1923 = vshrl.u32 %v1773, 16
    %v1925 = vor.u32 %v1923, %v1918
    %v1981 = vunpack.c.l.b16 %v1827
    %v1982 = vunpack.c.h.b16 %v1827
    %v1983 = vunpack.c.l.b16 %v1828
    %v1984 = vunpack.c.l.b16 %v1829
    %v1985 = vunpack.c.h.b16 %v1829
    %v1986 = vunpack.c.l.b16 %v1830
    %v1987 = vunpack.c.l.b16 %v1831
    %v1988 = vunpack.c.h.b16 %v1831
    %v1989 = vunpack.c.l.b16 %v1832
    %v1990 = vunpack.c.l.b16 %v1833
    %v1991 = vunpack.c.h.b16 %v1833
    %v1992 = vunpack.c.l.b16 %v1834
    %v1993 = vunpack.c.l.b16 %v1835
    %v1994 = vunpack.c.h.b16 %v1835
    %v1995 = vunpack.c.l.b16 %v1836
    %v1996 = vunpack.c.l.b16 %v1837
    %v1997 = vunpack.c.h.b16 %v1837
    %v1998 = vunpack.c.l.b16 %v1838
    %v1999 = vunpack.c.l.b16 %v1839
    %v2000 = vunpack.c.h.b16 %v1839
    %v2001 = vunpack.c.l.b16 %v1840
    %v2002 = vunpack.c.l.b16 %v1841
    %v2003 = vunpack.c.h.b16 %v1841
    %v2004 = vunpack.c.l.b16 %v1842
    %v2005 = vunpack.c.l.b16 %v1843
    %v2006 = vunpack.c.h.b16 %v1843
    %v2007 = vunpack.c.l.b16 %v1844
    %v2008 = vunpack.c.l.b16 %v1845
    %v2009 = vunpack.c.h.b16 %v1845
    %v2010 = vunpack.c.l.b16 %v1846
    %v2011 = vunpack.c.l.b16 %v1847
    %v2012 = vunpack.c.h.b16 %v1847
    %v2013 = vunpack.c.l.b16 %v1848
    %v2014 = vunpack.c.l.b16 %v1849
    %v2015 = vunpack.c.h.b16 %v1849
    %v2016 = vunpack.c.l.b16 %v1850
    %v2017 = vunpack.c.l.b16 %v1851
    %v2018 = vunpack.c.h.b16 %v1851
    %v2019 = vunpack.c.l.b16 %v1852
    %v2020 = vunpack.c.l.b16 %v1853
    %v2021 = vunpack.c.h.b16 %v1853
    %v2022 = vunpack.c.l.b16 %v1854
    %v2023 = vunpack.c.l.b16 %v1855
    %v2024 = vunpack.c.h.b16 %v1855
    %v2025 = vunpack.c.l.b16 %v1856
    %v2026 = vunpack.c.l.b16 %v1857
    %v2027 = vunpack.c.h.b16 %v1857
    %v2028 = vunpack.c.l.b16 %v1858
    %v2029 = vunpack.c.l.b16 %v1859
    %v2030 = vunpack.c.h.b16 %v1859
    %v2031 = vunpack.c.l.b16 %v1860
    %v2032 = vunpack.c.l.b16 %v1861
    %v2033 = vunpack.c.h.b16 %v1861
    %v2034 = vunpack.c.l.b16 %v1862
    %v2035 = vunpack.c.l.b16 %v1863
    %v2036 = vunpack.c.h.b16 %v1863
    %v2037 = vunpack.c.l.b16 %v1864
    %v2038 = vunpack.c.l.b16 %v1865
    %v2039 = vunpack.c.h.b16 %v1865
    %v2040 = vunpack.c.l.b16 %v1866
    %v2041 = vunpack.c.l.b16 %v1867
    %v2042 = vunpack.c.h.b16 %v1867
    %v2043 = vunpack.c.l.b16 %v1868
    %v2044 = vunpack.c.l.b16 %v1869
    %v2045 = vunpack.c.h.b16 %v1869
    %v2046 = vunpack.c.l.b16 %v1870
    %v2047 = vunpack.c.l.b16 %v1871
    %v2048 = vunpack.c.h.b16 %v1871
    %v2049 = vunpack.c.l.b16 %v1872
    %v2050 = vunpack.c.l.b16 %v1873
    %v2051 = vunpack.c.h.b16 %v1873
    %v2052 = vunpack.c.l.b16 %v1874
    %v2053 = vunpack.c.l.b16 %v1875
    %v2054 = vunpack.c.h.b16 %v1875
    %v2055 = vunpack.c.l.b16 %v1876
    %v2056 = vunpack.c.l.b16 %v1877
    %v2057 = vunpack.c.h.b16 %v1877
    %v2058 = vunpack.c.l.b16 %v1878
    %v2059 = vpack.c.b16 %v1984, %v1981
    %v2060 = vpack.c.b16 %v1985, %v1982
    %v2061 = vpack.c.b16 %v1986, %v1983
    %v2062 = vpack.c.b16 %v1990, %v1987
    %v2063 = vpack.c.b16 %v1991, %v1988
    %v2064 = vpack.c.b16 %v1992, %v1989
    %v2065 = vpack.c.b16 %v1996, %v1993
    %v2066 = vpack.c.b16 %v1997, %v1994
    %v2067 = vpack.c.b16 %v1998, %v1995
    %v2068 = vpack.c.b16 %v2002, %v1999
    %v2069 = vpack.c.b16 %v2003, %v2000
    %v2070 = vpack.c.b16 %v2004, %v2001
    %v2071 = vpack.c.b16 %v2008, %v2005
    %v2072 = vpack.c.b16 %v2009, %v2006
    %v2073 = vpack.c.b16 %v2010, %v2007
    %v2074 = vpack.c.b16 %v2014, %v2011
    %v2075 = vpack.c.b16 %v2015, %v2012
    %v2076 = vpack.c.b16 %v2016, %v2013
    %v2077 = vpack.c.b16 %v2020, %v2017
    %v2078 = vpack.c.b16 %v2021, %v2018
    %v2079 = vpack.c.b16 %v2022, %v2019
    %v2080 = vpack.c.b16 %v2026, %v2023
    %v2081 = vpack.c.b16 %v2027, %v2024
    %v2082 = vpack.c.b16 %v2028, %v2025
    %v2083 = vpack.c.b16 %v2032, %v2029
    %v2084 = vpack.c.b16 %v2033, %v2030
    %v2085 = vpack.c.b16 %v2034, %v2031
    %v2086 = vpack.c.b16 %v2038, %v2035
    %v2087 = vpack.c.b16 %v2039, %v2036
    %v2088 = vpack.c.b16 %v2040, %v2037
    %v2089 = vpack.c.b16 %v2044, %v2041
    %v2090 = vpack.c.b16 %v2045, %v2042
    %v2091 = vpack.c.b16 %v2046, %v2043
    %v2092 = vpack.c.b16 %v2050, %v2047
    %v2093 = vpack.c.b16 %v2051, %v2048
    %v2094 = vpack.c.b16 %v2052, %v2049
    %v2095 = vpack.c.b16 %v2056, %v2053
    %v2096 = vpack.c.b16 %v2057, %v2054
    %v2097 = vpack.c.b16 %v2058, %v2055
    %vm2137 = vcmask 654336
    %v2139 = vsel %vm2137, %v1903, 0
    %v2142 = vsel %vm2137, %v1919, 0
    %v2145 = vsel %vm2137, %v1925, 0
    %2147 = vmatprep.subr.bf16.mxu0 %v2060
    %2148 = vmatpush1.bf16.msra.mxu0 %v2059
    %2149 = vmatprep.subr.bf16.mxu0 %v2063
    %2150 = vmatpush1.bf16.msra.mxu0 %v2062
    %2151 = vmatprep.subr.bf16.mxu0 %v2066
    %2152 = vmatpush1.bf16.msra.mxu0 %v2065
    %2153 = vmatprep.subr.bf16.mxu0 %v2069
    %2154 = vmatpush1.bf16.msra.mxu0 %v2068
    %2155 = vmatprep.subr.bf16.mxu0 %v2072
    %2156 = vmatpush1.bf16.msra.mxu0 %v2071
    %2157 = vmatprep.subr.bf16.mxu0 %v2075
    %2158 = vmatpush1.bf16.msra.mxu0 %v2074
    %2159 = vmatprep.subr.bf16.mxu0 %v2078
    %2160 = vmatpush1.bf16.msra.mxu0 %v2077
    %2161 = vmatprep.subr.bf16.mxu0 %v2081
    %2162 = vmatpush1.bf16.msra.mxu0 %v2080
    %2163 = vmatprep.subr.bf16.mxu0 %v2084
    %2164 = vmatpush1.bf16.msra.mxu0 %v2083
    %2165 = vmatprep.subr.bf16.mxu0 %v2087
    %2166 = vmatpush1.bf16.msra.mxu0 %v2086
    %2167 = vmatprep.subr.bf16.mxu0 %v2090
    %2168 = vmatpush1.bf16.msra.mxu0 %v2089
    %2169 = vmatprep.subr.bf16.mxu0 %v2093
    %2170 = vmatpush1.bf16.msra.mxu0 %v2092
    %2171 = vmatprep.subr.bf16.mxu0 %v2096
    %2172 = vmatpush1.bf16.msra.mxu0 %v2095
    %2173 = vmatprep.subr.bf16.mxu0 0
    %2174 = vmatpush1.bf16.msra.mxu0 0
    %2175 = vmatprep.subr.bf16.mxu0 0
    %2176 = vmatpush1.bf16.msra.mxu0 0
    %2177 = vmatprep.subr.bf16.mxu0 0
    %2178 = vmatpush1.bf16.msra.mxu0 0
    %2179 = vmatprep.mubr.bf16.mxu0 %v2139
    %2180 = vmatmul.mubr.bf16.gmra.mrb[0].mxu0 %v1891
    %v2181 = vpop.f32.mrb[0].mxu0
    %v2182 = vadd.f32 0.0, %v2181
    %v2183 = vpop.f32.mrb[0].mxu0
    %v2184 = vadd.f32 0.0, %v2183
    %v2185 = vpop.f32.mrb[0].mxu0
    %v2186 = vadd.f32 0.0, %v2185
    %v2187 = vpop.f32.mrb[0].mxu0
    %v2188 = vadd.f32 0.0, %v2187
    %2189 = vmatprep.mubr.bf16.mxu0 %v2142
    %2190 = vmatmul.mubr.bf16.gmra.mrb[0].mxu0 %v1911
    %v2191 = vpop.f32.mrb[0].mxu0
    %v2192 = vadd.f32 0.0, %v2191
    %v2193 = vpop.f32.mrb[0].mxu0
    %v2194 = vadd.f32 0.0, %v2193
    %v2195 = vpop.f32.mrb[0].mxu0
    %v2196 = vadd.f32 0.0, %v2195
    %v2197 = vpop.f32.mrb[0].mxu0
    %v2198 = vadd.f32 0.0, %v2197
    %2199 = vmatprep.mubr.bf16.mxu0 %v2145
    %2200 = vmatmul.mubr.bf16.gmra.mrb[0].mxu0 %v1922
    %v2201 = vpop.f32.mrb[0].mxu0
    %v2202 = vadd.f32 0.0, %v2201
    %v2203 = vpop.f32.mrb[0].mxu0
    %v2204 = vadd.f32 0.0, %v2203
    %v2205 = vpop.f32.mrb[0].mxu0
    %v2206 = vpop.f32.mrb[0].mxu0
    %2207 = vdwg.mxu0
    %2208 = vmatprep.subr.bf16.mxu0 0
    %2209 = vmatpush1.bf16.msra.mxu0 %v2061
    %2210 = vmatprep.subr.bf16.mxu0 0
    %2211 = vmatpush1.bf16.msra.mxu0 %v2064
    %2212 = vmatprep.subr.bf16.mxu0 0
    %2213 = vmatpush1.bf16.msra.mxu0 %v2067
    %2214 = vmatprep.subr.bf16.mxu0 0
    %2215 = vmatpush1.bf16.msra.mxu0 %v2070
    %2216 = vmatprep.subr.bf16.mxu0 0
    %2217 = vmatpush1.bf16.msra.mxu0 %v2073
    %2218 = vmatprep.subr.bf16.mxu0 0
    %2219 = vmatpush1.bf16.msra.mxu0 %v2076
    %2220 = vmatprep.subr.bf16.mxu0 0
    %2221 = vmatpush1.bf16.msra.mxu0 %v2079
    %2222 = vmatprep.subr.bf16.mxu0 0
    %2223 = vmatpush1.bf16.msra.mxu0 %v2082
    %2224 = vmatprep.subr.bf16.mxu0 0
    %2225 = vmatpush1.bf16.msra.mxu0 %v2085
    %2226 = vmatprep.subr.bf16.mxu0 0
    %2227 = vmatpush1.bf16.msra.mxu0 %v2088
    %2228 = vmatprep.subr.bf16.mxu0 0
    %2229 = vmatpush1.bf16.msra.mxu0 %v2091
    %2230 = vmatprep.subr.bf16.mxu0 0
    %2231 = vmatpush1.bf16.msra.mxu0 %v2094
    %2232 = vmatprep.subr.bf16.mxu0 0
    %2233 = vmatpush1.bf16.msra.mxu0 %v2097
    %2234 = vmatprep.subr.bf16.mxu0 0
    %2235 = vmatpush1.bf16.msra.mxu0 0
    %2236 = vmatprep.subr.bf16.mxu0 0
    %2237 = vmatpush1.bf16.msra.mxu0 0
    %2238 = vmatprep.subr.bf16.mxu0 0
    %2239 = vmatpush1.bf16.msra.mxu0 0
    %2240 = vmatprep.mubr.bf16.mxu0 %v2139
    %2241 = vmatmul.mubr.bf16.gmra.mrb[0].mxu0 %v1891
    %v2242 = vpop.f32.mrb[0].mxu0
    %v2243 = vadd.f32 0.0, %v2242
    %v2244 = vpop.f32.mrb[0].mxu0
    %v2245 = vpop.f32.mrb[0].mxu0
    %v2246 = vadd.f32 0.0, %v2245
    %v2247 = vpop.f32.mrb[0].mxu0
    %2248 = vmatprep.mubr.bf16.mxu0 %v2142
    %2249 = vmatmul.mubr.bf16.gmra.mrb[0].mxu0 %v1911
    %v2250 = vpop.f32.mrb[0].mxu0
    %v2251 = vadd.f32 0.0, %v2250
    %v2252 = vpop.f32.mrb[0].mxu0
    %v2253 = vpop.f32.mrb[0].mxu0
    %v2254 = vadd.f32 0.0, %v2253
    %v2255 = vpop.f32.mrb[0].mxu0
    %2256 = vmatprep.mubr.bf16.mxu0 %v2145
    %2257 = vmatmul.mubr.bf16.gmra.mrb[0].mxu0 %v1922
    %v2258 = vpop.f32.mrb[0].mxu0
    %v2259 = vadd.f32 0.0, %v2258
    %v2260 = vpop.f32.mrb[0].mxu0
    %v2261 = vpop.f32.mrb[0].mxu0
    %v2262 = vpop.f32.mrb[0].mxu0
    %2263 = vdwg.mxu0
    %v2316 = vunpack.c.l.b16 %v1774
    %v2317 = vunpack.c.h.b16 %v1774
    %v2318 = vunpack.c.l.b16 %v1775
    %v2319 = vunpack.c.l.b16 %v1776
    %v2320 = vunpack.c.h.b16 %v1776
    %v2321 = vunpack.c.l.b16 %v1777
    %v2322 = vunpack.c.l.b16 %v1778
    %v2323 = vunpack.c.h.b16 %v1778
    %v2324 = vunpack.c.l.b16 %v1779
    %v2325 = vunpack.c.l.b16 %v1780
    %v2326 = vunpack.c.h.b16 %v1780
    %v2327 = vunpack.c.l.b16 %v1781
    %v2328 = vunpack.c.l.b16 %v1782
    %v2329 = vunpack.c.h.b16 %v1782
    %v2330 = vunpack.c.l.b16 %v1783
    %v2331 = vunpack.c.l.b16 %v1784
    %v2332 = vunpack.c.h.b16 %v1784
    %v2333 = vunpack.c.l.b16 %v1785
    %v2334 = vunpack.c.l.b16 %v1786
    %v2335 = vunpack.c.h.b16 %v1786
    %v2336 = vunpack.c.l.b16 %v1787
    %v2337 = vunpack.c.l.b16 %v1788
    %v2338 = vunpack.c.h.b16 %v1788
    %v2339 = vunpack.c.l.b16 %v1789
    %v2340 = vunpack.c.l.b16 %v1790
    %v2341 = vunpack.c.h.b16 %v1790
    %v2342 = vunpack.c.l.b16 %v1791
    %v2343 = vunpack.c.l.b16 %v1792
    %v2344 = vunpack.c.h.b16 %v1792
    %v2345 = vunpack.c.l.b16 %v1793
    %v2346 = vunpack.c.l.b16 %v1794
    %v2347 = vunpack.c.h.b16 %v1794
    %v2348 = vunpack.c.l.b16 %v1795
    %v2349 = vunpack.c.l.b16 %v1796
    %v2350 = vunpack.c.h.b16 %v1796
    %v2351 = vunpack.c.l.b16 %v1797
    %v2352 = vunpack.c.l.b16 %v1798
    %v2353 = vunpack.c.h.b16 %v1798
    %v2354 = vunpack.c.l.b16 %v1799
    %v2355 = vunpack.c.l.b16 %v1800
    %v2356 = vunpack.c.h.b16 %v1800
    %v2357 = vunpack.c.l.b16 %v1801
    %v2358 = vunpack.c.l.b16 %v1802
    %v2359 = vunpack.c.h.b16 %v1802
    %v2360 = vunpack.c.l.b16 %v1803
    %v2361 = vunpack.c.l.b16 %v1804
    %v2362 = vunpack.c.h.b16 %v1804
    %v2363 = vunpack.c.l.b16 %v1805
    %v2364 = vunpack.c.l.b16 %v1806
    %v2365 = vunpack.c.h.b16 %v1806
    %v2366 = vunpack.c.l.b16 %v1807
    %v2367 = vunpack.c.l.b16 %v1808
    %v2368 = vunpack.c.h.b16 %v1808
    %v2369 = vunpack.c.l.b16 %v1809
    %v2370 = vunpack.c.l.b16 %v1810
    %v2371 = vunpack.c.h.b16 %v1810
    %v2372 = vunpack.c.l.b16 %v1811
    %v2373 = vunpack.c.l.b16 %v1812
    %v2374 = vunpack.c.h.b16 %v1812
    %v2375 = vunpack.c.l.b16 %v1813
    %v2376 = vunpack.c.l.b16 %v1814
    %v2377 = vunpack.c.h.b16 %v1814
    %v2378 = vunpack.c.l.b16 %v1815
    %v2379 = vunpack.c.l.b16 %v1816
    %v2380 = vunpack.c.h.b16 %v1816
    %v2381 = vunpack.c.l.b16 %v1817
    %v2382 = vunpack.c.l.b16 %v1818
    %v2383 = vunpack.c.h.b16 %v1818
    %v2384 = vunpack.c.l.b16 %v1819
    %v2385 = vunpack.c.l.b16 %v1820
    %v2386 = vunpack.c.h.b16 %v1820
    %v2387 = vunpack.c.l.b16 %v1821
    %v2388 = vunpack.c.l.b16 %v1822
    %v2389 = vunpack.c.h.b16 %v1822
    %v2390 = vunpack.c.l.b16 %v1823
    %v2391 = vunpack.c.l.b16 %v1824
    %v2392 = vunpack.c.h.b16 %v1824
    %v2393 = vunpack.c.l.b16 %v1825
    %v2394 = vpack.c.b16 %v2319, %v2316
    %v2395 = vpack.c.b16 %v2320, %v2317
    %v2396 = vpack.c.b16 %v2321, %v2318
    %v2397 = vpack.c.b16 %v2325, %v2322
    %v2398 = vpack.c.b16 %v2326, %v2323
    %v2399 = vpack.c.b16 %v2327, %v2324
    %v2400 = vpack.c.b16 %v2331, %v2328
    %v2401 = vpack.c.b16 %v2332, %v2329
    %v2402 = vpack.c.b16 %v2333, %v2330
    %v2403 = vpack.c.b16 %v2337, %v2334
    %v2404 = vpack.c.b16 %v2338, %v2335
    %v2405 = vpack.c.b16 %v2339, %v2336
    %v2406 = vpack.c.b16 %v2343, %v2340
    %v2407 = vpack.c.b16 %v2344, %v2341
    %v2408 = vpack.c.b16 %v2345, %v2342
    %v2409 = vpack.c.b16 %v2349, %v2346
    %v2410 = vpack.c.b16 %v2350, %v2347
    %v2411 = vpack.c.b16 %v2351, %v2348
    %v2412 = vpack.c.b16 %v2355, %v2352
    %v2413 = vpack.c.b16 %v2356, %v2353
    %v2414 = vpack.c.b16 %v2357, %v2354
    %v2415 = vpack.c.b16 %v2361, %v2358
    %v2416 = vpack.c.b16 %v2362, %v2359
    %v2417 = vpack.c.b16 %v2363, %v2360
    %v2418 = vpack.c.b16 %v2367, %v2364
    %v2419 = vpack.c.b16 %v2368, %v2365
    %v2420 = vpack.c.b16 %v2369, %v2366
    %v2421 = vpack.c.b16 %v2373, %v2370
    %v2422 = vpack.c.b16 %v2374, %v2371
    %v2423 = vpack.c.b16 %v2375, %v2372
    %v2424 = vpack.c.b16 %v2379, %v2376
    %v2425 = vpack.c.b16 %v2380, %v2377
    %v2426 = vpack.c.b16 %v2381, %v2378
    %v2427 = vpack.c.b16 %v2385, %v2382
    %v2428 = vpack.c.b16 %v2386, %v2383
    %v2429 = vpack.c.b16 %v2387, %v2384
    %v2430 = vpack.c.b16 %v2391, %v2388
    %v2431 = vpack.c.b16 %v2392, %v2389
    %v2432 = vpack.c.b16 %v2393, %v2390
    %v2472 = vsel %vm2137, %v1769, 0
    %v2474 = vsel %vm2137, %v1771, 0
    %v2476 = vsel %vm2137, %v1773, 0
    %2478 = vmatprep.subr.bf16.mxu0 %v2395
    %2479 = vmatpush1.bf16.msra.mxu0 %v2394
    %2480 = vmatprep.subr.bf16.mxu0 %v2398
    %2481 = vmatpush1.bf16.msra.mxu0 %v2397
    %2482 = vmatprep.subr.bf16.mxu0 %v2401
    %2483 = vmatpush1.bf16.msra.mxu0 %v2400
    %2484 = vmatprep.subr.bf16.mxu0 %v2404
    %2485 = vmatpush1.bf16.msra.mxu0 %v2403
    %2486 = vmatprep.subr.bf16.mxu0 %v2407
    %2487 = vmatpush1.bf16.msra.mxu0 %v2406
    %2488 = vmatprep.subr.bf16.mxu0 %v2410
    %2489 = vmatpush1.bf16.msra.mxu0 %v2409
    %2490 = vmatprep.subr.bf16.mxu0 %v2413
    %2491 = vmatpush1.bf16.msra.mxu0 %v2412
    %2492 = vmatprep.subr.bf16.mxu0 %v2416
    %2493 = vmatpush1.bf16.msra.mxu0 %v2415
    %2494 = vmatprep.subr.bf16.mxu0 %v2419
    %2495 = vmatpush1.bf16.msra.mxu0 %v2418
    %2496 = vmatprep.subr.bf16.mxu0 %v2422
    %2497 = vmatpush1.bf16.msra.mxu0 %v2421
    %2498 = vmatprep.subr.bf16.mxu0 %v2425
    %2499 = vmatpush1.bf16.msra.mxu0 %v2424
    %2500 = vmatprep.subr.bf16.mxu0 %v2428
    %2501 = vmatpush1.bf16.msra.mxu0 %v2427
    %2502 = vmatprep.subr.bf16.mxu0 %v2431
    %2503 = vmatpush1.bf16.msra.mxu0 %v2430
    %2504 = vmatprep.subr.bf16.mxu0 0
    %2505 = vmatpush1.bf16.msra.mxu0 0
    %2506 = vmatprep.subr.bf16.mxu0 0
    %2507 = vmatpush1.bf16.msra.mxu0 0
    %2508 = vmatprep.subr.bf16.mxu0 0
    %2509 = vmatpush1.bf16.msra.mxu0 0
    %2510 = vmatprep.mubr.bf16.mxu0 %v2472
    %2511 = vmatmul.mubr.bf16.gmra.mrb[0].mxu0 %v1768
    %v2512 = vpop.f32.mrb[0].mxu0
    %v2513 = vadd.f32 %v2182, %v2512
    %v2514 = vpop.f32.mrb[0].mxu0
    %v2515 = vadd.f32 %v2184, %v2514
    %v2516 = vpop.f32.mrb[0].mxu0
    %v2517 = vadd.f32 %v2186, %v2516
    %v2518 = vpop.f32.mrb[0].mxu0
    %v2519 = vadd.f32 %v2188, %v2518
    %2520 = vmatprep.mubr.bf16.mxu0 %v2474
    %2521 = vmatmul.mubr.bf16.gmra.mrb[0].mxu0 %v1770
    %v2522 = vpop.f32.mrb[0].mxu0
    %v2523 = vadd.f32 %v2192, %v2522
    %v2524 = vpop.f32.mrb[0].mxu0
    %v2525 = vadd.f32 %v2194, %v2524
    %v2526 = vpop.f32.mrb[0].mxu0
    %v2527 = vadd.f32 %v2196, %v2526
    %v2528 = vpop.f32.mrb[0].mxu0
    %v2529 = vadd.f32 %v2198, %v2528
    %2530 = vmatprep.mubr.bf16.mxu0 %v2476
    %2531 = vmatmul.mubr.bf16.gmra.mrb[0].mxu0 %v1772
    %v2532 = vpop.f32.mrb[0].mxu0
    %v2533 = vadd.f32 %v2202, %v2532
    %v2534 = vpop.f32.mrb[0].mxu0
    %v2535 = vadd.f32 %v2204, %v2534
    %v2536 = vpop.f32.mrb[0].mxu0
    %v2537 = vpop.f32.mrb[0].mxu0
    %2538 = vdwg.mxu0
    %2539 = vmatprep.subr.bf16.mxu0 0
    %2540 = vmatpush1.bf16.msra.mxu0 %v2396
    %2541 = vmatprep.subr.bf16.mxu0 0
    %2542 = vmatpush1.bf16.msra.mxu0 %v2399
    %2543 = vmatprep.subr.bf16.mxu0 0
    %2544 = vmatpush1.bf16.msra.mxu0 %v2402
    %2545 = vmatprep.subr.bf16.mxu0 0
    %2546 = vmatpush1.bf16.msra.mxu0 %v2405
    %2547 = vmatprep.subr.bf16.mxu0 0
    %2548 = vmatpush1.bf16.msra.mxu0 %v2408
    %2549 = vmatprep.subr.bf16.mxu0 0
    %2550 = vmatpush1.bf16.msra.mxu0 %v2411
    %2551 = vmatprep.subr.bf16.mxu0 0
    %2552 = vmatpush1.bf16.msra.mxu0 %v2414
    %2553 = vmatprep.subr.bf16.mxu0 0
    %2554 = vmatpush1.bf16.msra.mxu0 %v2417
    %2555 = vmatprep.subr.bf16.mxu0 0
    %2556 = vmatpush1.bf16.msra.mxu0 %v2420
    %2557 = vmatprep.subr.bf16.mxu0 0
    %2558 = vmatpush1.bf16.msra.mxu0 %v2423
    %2559 = vmatprep.subr.bf16.mxu0 0
    %2560 = vmatpush1.bf16.msra.mxu0 %v2426
    %2561 = vmatprep.subr.bf16.mxu0 0
    %2562 = vmatpush1.bf16.msra.mxu0 %v2429
    %2563 = vmatprep.subr.bf16.mxu0 0
    %2564 = vmatpush1.bf16.msra.mxu0 %v2432
    %2565 = vmatprep.subr.bf16.mxu0 0
    %2566 = vmatpush1.bf16.msra.mxu0 0
    %2567 = vmatprep.subr.bf16.mxu0 0
    %2568 = vmatpush1.bf16.msra.mxu0 0
    %2569 = vmatprep.subr.bf16.mxu0 0
    %2570 = vmatpush1.bf16.msra.mxu0 0
    %2571 = vmatprep.mubr.bf16.mxu0 %v2472
    %2572 = vmatmul.mubr.bf16.gmra.mrb[0].mxu0 %v1768
    %v2573 = vpop.f32.mrb[0].mxu0
    %v2574 = vadd.f32 %v2243, %v2573
    %v2575 = vpop.f32.mrb[0].mxu0
    %v2576 = vpop.f32.mrb[0].mxu0
    %v2577 = vadd.f32 %v2246, %v2576
    %v2578 = vpop.f32.mrb[0].mxu0
    %2579 = vmatprep.mubr.bf16.mxu0 %v2474
    %2580 = vmatmul.mubr.bf16.gmra.mrb[0].mxu0 %v1770
    %v2581 = vpop.f32.mrb[0].mxu0
    %v2582 = vadd.f32 %v2251, %v2581
    %v2583 = vpop.f32.mrb[0].mxu0
    %v2584 = vpop.f32.mrb[0].mxu0
    %v2585 = vadd.f32 %v2254, %v2584
    %v2586 = vpop.f32.mrb[0].mxu0
    %2587 = vmatprep.mubr.bf16.mxu0 %v2476
    %2588 = vmatmul.mubr.bf16.gmra.mrb[0].mxu0 %v1772
    %v2589 = vpop.f32.mrb[0].mxu0
    %v2590 = vadd.f32 %v2259, %v2589
    %v2591 = vpop.f32.mrb[0].mxu0
    %v2592 = vpop.f32.mrb[0].mxu0
    %v2593 = vpop.f32.mrb[0].mxu0
    %2594 = vdwg.mxu0
    %s2595 = scalar_lea.vmem %s5, 624
    %v2596 = vld [vmem:[%s2595] sm:$0xff]
    %v2597 = vld [vmem:[%s2595 + $0x8] sm:$0xf]
    %v2598 = vld [vmem:[%s2595 + $0xc] sm:$0xff]
    %v2599 = vld [vmem:[%s2595 + $0x14] sm:$0xf]
    %v2600 = vld [vmem:[%s2595 + $0x18] sm:$0xff]
    %v2601 = vld [vmem:[%s2595 + $0x20] sm:$0xf]
    %v2602 = vld [vmem:[%s2595 + $0x24] sm:$0xff]
    %v2603 = vld [vmem:[%s2595 + $0x2c] sm:$0xf]
    %v2604 = vld [vmem:[%s2595 + $0x30] sm:$0xff]
    %v2605 = vld [vmem:[%s2595 + $0x38] sm:$0xf]
    %v2606 = vld [vmem:[%s2595 + $0x3c] sm:$0xff]
    %v2607 = vld [vmem:[%s2595 + $0x44] sm:$0xf]
    %v2608 = vld [vmem:[%s2595 + $0x48] sm:$0xff]
    %v2609 = vld [vmem:[%s2595 + $0x50] sm:$0xf]
    %v2610 = vld [vmem:[%s2595 + $0x54] sm:$0xff]
    %v2611 = vld [vmem:[%s2595 + $0x5c] sm:$0xf]
    %v2612 = vld [vmem:[%s2595 + $0x60] sm:$0xff]
    %v2613 = vld [vmem:[%s2595 + $0x68] sm:$0xf]
    %v2614 = vld [vmem:[%s2595 + $0x6c] sm:$0xff]
    %v2615 = vld [vmem:[%s2595 + $0x74] sm:$0xf]
    %v2616 = vld [vmem:[%s2595 + $0x78] sm:$0xff]
    %v2617 = vld [vmem:[%s2595 + $0x80] sm:$0xf]
    %v2618 = vld [vmem:[%s2595 + $0x84] sm:$0xff]
    %v2619 = vld [vmem:[%s2595 + $0x8c] sm:$0xf]
    %v2620 = vld [vmem:[%s2595 + $0x90] sm:$0xff]
    %v2621 = vld [vmem:[%s2595 + $0x98] sm:$0xf]
    %v2622 = vld [vmem:[%s2595 + $0x9c] sm:$0xff]
    %v2623 = vld [vmem:[%s2595 + $0xa4] sm:$0xf]
    %v2624 = vld [vmem:[%s2595 + $0xa8] sm:$0xff]
    %v2625 = vld [vmem:[%s2595 + $0xb0] sm:$0xf]
    %v2626 = vld [vmem:[%s2595 + $0xb4] sm:$0xff]
    %v2627 = vld [vmem:[%s2595 + $0xbc] sm:$0xf]
    %v2628 = vld [vmem:[%s2595 + $0xc0] sm:$0xff]
    %v2629 = vld [vmem:[%s2595 + $0xc8] sm:$0xf]
    %v2630 = vld [vmem:[%s2595 + $0xcc] sm:$0xff]
    %v2631 = vld [vmem:[%s2595 + $0xd4] sm:$0xf]
    %v2632 = vld [vmem:[%s2595 + $0xd8] sm:$0xff]
    %v2633 = vld [vmem:[%s2595 + $0xe0] sm:$0xf]
    %v2634 = vld [vmem:[%s2595 + $0xe4] sm:$0xff]
    %v2635 = vld [vmem:[%s2595 + $0xec] sm:$0xf]
    %v2636 = vld [vmem:[%s2595 + $0xf0] sm:$0xff]
    %v2637 = vld [vmem:[%s2595 + $0xf8] sm:$0xf]
    %v2638 = vld [vmem:[%s2595 + $0xfc] sm:$0xff]
    %v2639 = vld [vmem:[%s2595 + $0x104] sm:$0xf]
    %v2640 = vld [vmem:[%s2595 + $0x108] sm:$0xff]
    %v2641 = vld [vmem:[%s2595 + $0x110] sm:$0xf]
    %v2642 = vld [vmem:[%s2595 + $0x114] sm:$0xff]
    %v2643 = vld [vmem:[%s2595 + $0x11c] sm:$0xf]
    %v2644 = vld [vmem:[%s2595 + $0x120] sm:$0xff]
    %v2645 = vld [vmem:[%s2595 + $0x128] sm:$0xf]
    %v2646 = vld [vmem:[%s2595 + $0x12c] sm:$0xff]
    %v2647 = vld [vmem:[%s2595 + $0x134] sm:$0xf]
    %vm2654 = vcmask 1046528
    %v2655 = vrot.slane %v1768, 1
    %v2656 = vrot.slane %v1770, 1
    %v2657 = vsel %vm2654, %v2655, %v2656
    %v2658 = vrot.slane %v1769, 1
    %v2659 = vrot.slane %v1771, 1
    %v2660 = vsel %vm2654, %v2658, %v2659
    %v2661 = vrot.slane %v1772, 1
    %v2662 = vsel %vm2654, %v2656, %v2661
    %v2663 = vrot.slane %v1773, 1
    %v2664 = vsel %vm2654, %v2659, %v2663
    %v2720 = vunpack.c.l.b16 %v2596
    %v2721 = vunpack.c.h.b16 %v2596
    %v2722 = vunpack.c.l.b16 %v2597
    %v2723 = vunpack.c.l.b16 %v2598
    %v2724 = vunpack.c.h.b16 %v2598
    %v2725 = vunpack.c.l.b16 %v2599
    %v2726 = vunpack.c.l.b16 %v2600
    %v2727 = vunpack.c.h.b16 %v2600
    %v2728 = vunpack.c.l.b16 %v2601
    %v2729 = vunpack.c.l.b16 %v2602
    %v2730 = vunpack.c.h.b16 %v2602
    %v2731 = vunpack.c.l.b16 %v2603
    %v2732 = vunpack.c.l.b16 %v2604
    %v2733 = vunpack.c.h.b16 %v2604
    %v2734 = vunpack.c.l.b16 %v2605
    %v2735 = vunpack.c.l.b16 %v2606
    %v2736 = vunpack.c.h.b16 %v2606
    %v2737 = vunpack.c.l.b16 %v2607
    %v2738 = vunpack.c.l.b16 %v2608
    %v2739 = vunpack.c.h.b16 %v2608
    %v2740 = vunpack.c.l.b16 %v2609
    %v2741 = vunpack.c.l.b16 %v2610
    %v2742 = vunpack.c.h.b16 %v2610
    %v2743 = vunpack.c.l.b16 %v2611
    %v2744 = vunpack.c.l.b16 %v2612
    %v2745 = vunpack.c.h.b16 %v2612
    %v2746 = vunpack.c.l.b16 %v2613
    %v2747 = vunpack.c.l.b16 %v2614
    %v2748 = vunpack.c.h.b16 %v2614
    %v2749 = vunpack.c.l.b16 %v2615
    %v2750 = vunpack.c.l.b16 %v2616
    %v2751 = vunpack.c.h.b16 %v2616
    %v2752 = vunpack.c.l.b16 %v2617
    %v2753 = vunpack.c.l.b16 %v2618
    %v2754 = vunpack.c.h.b16 %v2618
    %v2755 = vunpack.c.l.b16 %v2619
    %v2756 = vunpack.c.l.b16 %v2620
    %v2757 = vunpack.c.h.b16 %v2620
    %v2758 = vunpack.c.l.b16 %v2621
    %v2759 = vunpack.c.l.b16 %v2622
    %v2760 = vunpack.c.h.b16 %v2622
    %v2761 = vunpack.c.l.b16 %v2623
    %v2762 = vunpack.c.l.b16 %v2624
    %v2763 = vunpack.c.h.b16 %v2624
    %v2764 = vunpack.c.l.b16 %v2625
    %v2765 = vunpack.c.l.b16 %v2626
    %v2766 = vunpack.c.h.b16 %v2626
    %v2767 = vunpack.c.l.b16 %v2627
    %v2768 = vunpack.c.l.b16 %v2628
    %v2769 = vunpack.c.h.b16 %v2628
    %v2770 = vunpack.c.l.b16 %v2629
    %v2771 = vunpack.c.l.b16 %v2630
    %v2772 = vunpack.c.h.b16 %v2630
    %v2773 = vunpack.c.l.b16 %v2631
    %v2774 = vunpack.c.l.b16 %v2632
    %v2775 = vunpack.c.h.b16 %v2632
    %v2776 = vunpack.c.l.b16 %v2633
    %v2777 = vunpack.c.l.b16 %v2634
    %v2778 = vunpack.c.h.b16 %v2634
    %v2779 = vunpack.c.l.b16 %v2635
    %v2780 = vunpack.c.l.b16 %v2636
    %v2781 = vunpack.c.h.b16 %v2636
    %v2782 = vunpack.c.l.b16 %v2637
    %v2783 = vunpack.c.l.b16 %v2638
    %v2784 = vunpack.c.h.b16 %v2638
    %v2785 = vunpack.c.l.b16 %v2639
    %v2786 = vunpack.c.l.b16 %v2640
    %v2787 = vunpack.c.h.b16 %v2640
    %v2788 = vunpack.c.l.b16 %v2641
    %v2789 = vunpack.c.l.b16 %v2642
    %v2790 = vunpack.c.h.b16 %v2642
    %v2791 = vunpack.c.l.b16 %v2643
    %v2792 = vunpack.c.l.b16 %v2644
    %v2793 = vunpack.c.h.b16 %v2644
    %v2794 = vunpack.c.l.b16 %v2645
    %v2795 = vunpack.c.l.b16 %v2646
    %v2796 = vunpack.c.h.b16 %v2646
    %v2797 = vunpack.c.l.b16 %v2647
    %v2798 = vpack.c.b16 %v2723, %v2720
    %v2799 = vpack.c.b16 %v2724, %v2721
    %v2800 = vpack.c.b16 %v2725, %v2722
    %v2801 = vpack.c.b16 %v2729, %v2726
    %v2802 = vpack.c.b16 %v2730, %v2727
    %v2803 = vpack.c.b16 %v2731, %v2728
    %v2804 = vpack.c.b16 %v2735, %v2732
    %v2805 = vpack.c.b16 %v2736, %v2733
    %v2806 = vpack.c.b16 %v2737, %v2734
    %v2807 = vpack.c.b16 %v2741, %v2738
    %v2808 = vpack.c.b16 %v2742, %v2739
    %v2809 = vpack.c.b16 %v2743, %v2740
    %v2810 = vpack.c.b16 %v2747, %v2744
    %v2811 = vpack.c.b16 %v2748, %v2745
    %v2812 = vpack.c.b16 %v2749, %v2746
    %v2813 = vpack.c.b16 %v2753, %v2750
    %v2814 = vpack.c.b16 %v2754, %v2751
    %v2815 = vpack.c.b16 %v2755, %v2752
    %v2816 = vpack.c.b16 %v2759, %v2756
    %v2817 = vpack.c.b16 %v2760, %v2757
    %v2818 = vpack.c.b16 %v2761, %v2758
    %v2819 = vpack.c.b16 %v2765, %v2762
    %v2820 = vpack.c.b16 %v2766, %v2763
    %v2821 = vpack.c.b16 %v2767, %v2764
    %v2822 = vpack.c.b16 %v2771, %v2768
    %v2823 = vpack.c.b16 %v2772, %v2769
    %v2824 = vpack.c.b16 %v2773, %v2770
    %v2825 = vpack.c.b16 %v2777, %v2774
    %v2826 = vpack.c.b16 %v2778, %v2775
    %v2827 = vpack.c.b16 %v2779, %v2776
    %v2828 = vpack.c.b16 %v2783, %v2780
    %v2829 = vpack.c.b16 %v2784, %v2781
    %v2830 = vpack.c.b16 %v2785, %v2782
    %v2831 = vpack.c.b16 %v2789, %v2786
    %v2832 = vpack.c.b16 %v2790, %v2787
    %v2833 = vpack.c.b16 %v2791, %v2788
    %v2834 = vpack.c.b16 %v2795, %v2792
    %v2835 = vpack.c.b16 %v2796, %v2793
    %v2836 = vpack.c.b16 %v2797, %v2794
    %v2877 = vsel %vm2137, %v2660, 0
    %v2880 = vsel %vm2137, %v2664, 0
    %v2883 = vsel %vm2137, %v2663, 0
    %2885 = vmatprep.subr.bf16.mxu0 %v2799
    %2886 = vmatpush1.bf16.msra.mxu0 %v2798
    %2887 = vmatprep.subr.bf16.mxu0 %v2802
    %2888 = vmatpush1.bf16.msra.mxu0 %v2801
    %2889 = vmatprep.subr.bf16.mxu0 %v2805
    %2890 = vmatpush1.bf16.msra.mxu0 %v2804
    %2891 = vmatprep.subr.bf16.mxu0 %v2808
    %2892 = vmatpush1.bf16.msra.mxu0 %v2807
    %2893 = vmatprep.subr.bf16.mxu0 %v2811
    %2894 = vmatpush1.bf16.msra.mxu0 %v2810
    %2895 = vmatprep.subr.bf16.mxu0 %v2814
    %2896 = vmatpush1.bf16.msra.mxu0 %v2813
    %2897 = vmatprep.subr.bf16.mxu0 %v2817
    %2898 = vmatpush1.bf16.msra.mxu0 %v2816
    %2899 = vmatprep.subr.bf16.mxu0 %v2820
    %2900 = vmatpush1.bf16.msra.mxu0 %v2819
    %2901 = vmatprep.subr.bf16.mxu0 %v2823
    %2902 = vmatpush1.bf16.msra.mxu0 %v2822
    %2903 = vmatprep.subr.bf16.mxu0 %v2826
    %2904 = vmatpush1.bf16.msra.mxu0 %v2825
    %2905 = vmatprep.subr.bf16.mxu0 %v2829
    %2906 = vmatpush1.bf16.msra.mxu0 %v2828
    %2907 = vmatprep.subr.bf16.mxu0 %v2832
    %2908 = vmatpush1.bf16.msra.mxu0 %v2831
    %2909 = vmatprep.subr.bf16.mxu0 %v2835
    %2910 = vmatpush1.bf16.msra.mxu0 %v2834
    %2911 = vmatprep.subr.bf16.mxu0 0
    %2912 = vmatpush1.bf16.msra.mxu0 0
    %2913 = vmatprep.subr.bf16.mxu0 0
    %2914 = vmatpush1.bf16.msra.mxu0 0
    %2915 = vmatprep.subr.bf16.mxu0 0
    %2916 = vmatpush1.bf16.msra.mxu0 0
    %2917 = vmatprep.mubr.bf16.mxu0 %v2877
    %2918 = vmatmul.mubr.bf16.gmra.mrb[0].mxu0 %v2657
    %v2919 = vpop.f32.mrb[0].mxu0
    %v2920 = vadd.f32 0.0, %v2919
    %v2921 = vpop.f32.mrb[0].mxu0
    %v2922 = vadd.f32 0.0, %v2921
    %v2923 = vpop.f32.mrb[0].mxu0
    %v2924 = vadd.f32 0.0, %v2923
    %v2925 = vpop.f32.mrb[0].mxu0
    %v2926 = vadd.f32 0.0, %v2925
    %2927 = vmatprep.mubr.bf16.mxu0 %v2880
    %2928 = vmatmul.mubr.bf16.gmra.mrb[0].mxu0 %v2662
    %v2929 = vpop.f32.mrb[0].mxu0
    %v2930 = vadd.f32 0.0, %v2929
    %v2931 = vpop.f32.mrb[0].mxu0
    %v2932 = vadd.f32 0.0, %v2931
    %v2933 = vpop.f32.mrb[0].mxu0
    %v2934 = vadd.f32 0.0, %v2933
    %v2935 = vpop.f32.mrb[0].mxu0
    %v2936 = vadd.f32 0.0, %v2935
    %2937 = vmatprep.mubr.bf16.mxu0 %v2883
    %2938 = vmatmul.mubr.bf16.gmra.mrb[0].mxu0 %v2661
    %v2939 = vpop.f32.mrb[0].mxu0
    %v2940 = vadd.f32 0.0, %v2939
    %v2941 = vpop.f32.mrb[0].mxu0
    %v2942 = vadd.f32 0.0, %v2941
    %v2943 = vpop.f32.mrb[0].mxu0
    %v2944 = vpop.f32.mrb[0].mxu0
    %2945 = vdwg.mxu0
    %2946 = vmatprep.subr.bf16.mxu0 0
    %2947 = vmatpush1.bf16.msra.mxu0 %v2800
    %2948 = vmatprep.subr.bf16.mxu0 0
    %2949 = vmatpush1.bf16.msra.mxu0 %v2803
    %2950 = vmatprep.subr.bf16.mxu0 0
    %2951 = vmatpush1.bf16.msra.mxu0 %v2806
    %2952 = vmatprep.subr.bf16.mxu0 0
    %2953 = vmatpush1.bf16.msra.mxu0 %v2809
    %2954 = vmatprep.subr.bf16.mxu0 0
    %2955 = vmatpush1.bf16.msra.mxu0 %v2812
    %2956 = vmatprep.subr.bf16.mxu0 0
    %2957 = vmatpush1.bf16.msra.mxu0 %v2815
    %2958 = vmatprep.subr.bf16.mxu0 0
    %2959 = vmatpush1.bf16.msra.mxu0 %v2818
    %2960 = vmatprep.subr.bf16.mxu0 0
    %2961 = vmatpush1.bf16.msra.mxu0 %v2821
    %2962 = vmatprep.subr.bf16.mxu0 0
    %2963 = vmatpush1.bf16.msra.mxu0 %v2824
    %2964 = vmatprep.subr.bf16.mxu0 0
    %2965 = vmatpush1.bf16.msra.mxu0 %v2827
    %2966 = vmatprep.subr.bf16.mxu0 0
    %2967 = vmatpush1.bf16.msra.mxu0 %v2830
    %2968 = vmatprep.subr.bf16.mxu0 0
    %2969 = vmatpush1.bf16.msra.mxu0 %v2833
    %2970 = vmatprep.subr.bf16.mxu0 0
    %2971 = vmatpush1.bf16.msra.mxu0 %v2836
    %2972 = vmatprep.subr.bf16.mxu0 0
    %2973 = vmatpush1.bf16.msra.mxu0 0
    %2974 = vmatprep.subr.bf16.mxu0 0
    %2975 = vmatpush1.bf16.msra.mxu0 0
    %2976 = vmatprep.subr.bf16.mxu0 0
    %2977 = vmatpush1.bf16.msra.mxu0 0
    %2978 = vmatprep.mubr.bf16.mxu0 %v2877
    %2979 = vmatmul.mubr.bf16.gmra.mrb[0].mxu0 %v2657
    %v2980 = vpop.f32.mrb[0].mxu0
    %v2981 = vadd.f32 0.0, %v2980
    %v2982 = vpop.f32.mrb[0].mxu0
    %v2983 = vpop.f32.mrb[0].mxu0
    %v2984 = vadd.f32 0.0, %v2983
    %v2985 = vpop.f32.mrb[0].mxu0
    %2986 = vmatprep.mubr.bf16.mxu0 %v2880
    %2987 = vmatmul.mubr.bf16.gmra.mrb[0].mxu0 %v2662
    %v2988 = vpop.f32.mrb[0].mxu0
    %v2989 = vadd.f32 0.0, %v2988
    %v2990 = vpop.f32.mrb[0].mxu0
    %v2991 = vpop.f32.mrb[0].mxu0
    %v2992 = vadd.f32 0.0, %v2991
    %v2993 = vpop.f32.mrb[0].mxu0
    %2994 = vmatprep.mubr.bf16.mxu0 %v2883
    %2995 = vmatmul.mubr.bf16.gmra.mrb[0].mxu0 %v2661
    %v2996 = vpop.f32.mrb[0].mxu0
    %v2997 = vadd.f32 0.0, %v2996
    %v2998 = vpop.f32.mrb[0].mxu0
    %v2999 = vpop.f32.mrb[0].mxu0
    %v3000 = vpop.f32.mrb[0].mxu0
    %3001 = vdwg.mxu0
    %v3002 = vadd.f32 %v2513, %v2920
    %v3003 = vadd.f32 %v2515, %v2922
    %v3004 = vadd.f32 %v2574, %v2981
    %v3005 = vadd.f32 %v2517, %v2924
    %v3006 = vadd.f32 %v2519, %v2926
    %v3007 = vadd.f32 %v2577, %v2984
    %v3008 = vadd.f32 %v2523, %v2930
    %v3009 = vadd.f32 %v2525, %v2932
    %v3010 = vadd.f32 %v2582, %v2989
    %v3011 = vadd.f32 %v2527, %v2934
    %v3012 = vadd.f32 %v2529, %v2936
    %v3013 = vadd.f32 %v2585, %v2992
    %v3014 = vadd.f32 %v2533, %v2940
    %v3015 = vadd.f32 %v2535, %v2942
    %v3016 = vadd.f32 %v2590, %v2997
    %v3017 = vld [vmem:[%s6] sm:$0x7]
    %v3019 = vlaneseq
    %v3020 = vshrl.u32 %v3019, 7
    %v3021 = vsub.s32 0, %v3020
    %v3022 = vrot.slane %v3017, %v3021
    %v3023 = vlaneseq
    %v3024 = vshrl.u32 %v3023, 7
    %v3025 = vsub.s32 1, %v3024
    %v3026 = vrot.slane %v3017, %v3025
    %v3027 = vlaneseq
    %v3028 = vshrl.u32 %v3027, 7
    %v3029 = vsub.s32 2, %v3028
    %v3030 = vrot.slane %v3017, %v3029
    %v3034 = vadd.f32 %v3002, %v3022
    %v3035 = vadd.f32 %v3003, %v3026
    %v3036 = vadd.f32 %v3004, %v3030
    %v3037 = vadd.f32 %v3005, %v3022
    %v3038 = vadd.f32 %v3006, %v3026
    %v3039 = vadd.f32 %v3007, %v3030
    %v3040 = vadd.f32 %v3008, %v3022
    %v3041 = vadd.f32 %v3009, %v3026
    %v3042 = vadd.f32 %v3010, %v3030
    %v3043 = vadd.f32 %v3011, %v3022
    %v3044 = vadd.f32 %v3012, %v3026
    %v3045 = vadd.f32 %v3013, %v3030
    %v3046 = vadd.f32 %v3014, %v3022
    %v3047 = vadd.f32 %v3015, %v3026
    %v3048 = vadd.f32 %v3016, %v3030
    %v3049 = vmax.f32 %v3034, 0.0
    %v3050 = vmax.f32 %v3035, 0.0
    %v3051 = vmax.f32 %v3036, 0.0
    %v3052 = vmax.f32 %v3037, 0.0
    %v3053 = vmax.f32 %v3038, 0.0
    %v3054 = vmax.f32 %v3039, 0.0
    %v3055 = vmax.f32 %v3040, 0.0
    %v3056 = vmax.f32 %v3041, 0.0
    %v3057 = vmax.f32 %v3042, 0.0
    %v3058 = vmax.f32 %v3043, 0.0
    %v3059 = vmax.f32 %v3044, 0.0
    %v3060 = vmax.f32 %v3045, 0.0
    %v3061 = vmax.f32 %v3046, 0.0
    %v3062 = vmax.f32 %v3047, 0.0
    %v3063 = vmax.f32 %v3048, 0.0
    %v3064 = vpack.c.bf16 %v3052, %v3049
    %v3065 = vpack.c.bf16 %v3053, %v3050
    %v3066 = vpack.c.bf16 %v3054, %v3051
    %v3067 = vpack.c.bf16 %v3058, %v3055
    %v3068 = vpack.c.bf16 %v3059, %v3056
    %v3069 = vpack.c.bf16 %v3060, %v3057
    %v3070 = vpack.c.bf16 %v3061, %v3061
    %v3071 = vpack.c.bf16 %v3062, %v3062
    %v3072 = vpack.c.bf16 %v3063, %v3063
    %v3073 = vld [vmem:[%s7] sm:$0xf]
    %v3074 = vld [vmem:[%s7 + $0x4] sm:$0xf]
    %v3075 = vld [vmem:[%s7 + $0x8] sm:$0x1]
    %v3079 = vunpack.c.l.b16 %v3073
    %v3080 = vunpack.c.l.b16 %v3074
    %v3081 = vunpack.c.l.b16 %v3075
    %v3082 = vpack.c.b16 %v3080, %v3079
    %v3083 = vpack.c.b16 %v3081, %v3081
    %vm3084 = vcmask 310272
    %v3086 = vsel %vm3084, %v3082, 0
    %v3089 = vsel %vm3084, %v3083, 0
    %vm3091 = vcmask 1042432
    %v3093 = vsel %vm3091, %v3070, 0
    %v3096 = vsel %vm3091, %v3071, 0
    %v3099 = vsel %vm3091, %v3072, 0
    %3101 = vmatprep.subr.bf16.mxu0 %v3065
    %3102 = vmatpush1.bf16.msra.mxu0 %v3064
    %3103 = vmatprep.subr.bf16.mxu0 %v3068
    %3104 = vmatpush1.bf16.msra.mxu0 %v3067
    %3105 = vmatprep.subr.bf16.mxu0 %v3096
    %3106 = vmatpush1.bf16.msra.mxu0 %v3093
    %3107 = vmatprep.subr.bf16.mxu0 0
    %3108 = vmatpush1.bf16.msra.mxu0 0
    %3109 = vmatprep.subr.bf16.mxu0 0
    %3110 = vmatpush1.bf16.msra.mxu0 0
    %3111 = vmatprep.subr.bf16.mxu0 0
    %3112 = vmatpush1.bf16.msra.mxu0 0
    %3113 = vmatprep.subr.bf16.mxu0 0
    %3114 = vmatpush1.bf16.msra.mxu0 0
    %3115 = vmatprep.subr.bf16.mxu0 0
    %3116 = vmatpush1.bf16.msra.mxu0 0
    %3117 = vmatprep.subr.bf16.mxu0 0
    %3118 = vmatpush1.bf16.msra.mxu0 0
    %3119 = vmatprep.subr.bf16.mxu0 0
    %3120 = vmatpush1.bf16.msra.mxu0 0
    %3121 = vmatprep.subr.bf16.mxu0 0
    %3122 = vmatpush1.bf16.msra.mxu0 0
    %3123 = vmatprep.subr.bf16.mxu0 0
    %3124 = vmatpush1.bf16.msra.mxu0 0
    %3125 = vmatprep.subr.bf16.mxu0 0
    %3126 = vmatpush1.bf16.msra.mxu0 0
    %3127 = vmatprep.subr.bf16.mxu0 0
    %3128 = vmatpush1.bf16.msra.mxu0 0
    %3129 = vmatprep.subr.bf16.mxu0 0
    %3130 = vmatpush1.bf16.msra.mxu0 0
    %3131 = vmatprep.subr.bf16.mxu0 0
    %3132 = vmatpush1.bf16.msra.mxu0 0
    %3133 = vmatprep.mubr.bf16.mxu0 0
    %3134 = vmatmul.mubr.bf16.gmra.mrb[0].mxu0 %v3086
    %v3135 = vpop.f32.mrb[0].mxu0
    %v3136 = vadd.f32 0.0, %v3135
    %v3137 = vpop.f32.mrb[0].mxu0
    %v3138 = vadd.f32 0.0, %v3137
    %v3139 = vpop.f32.mrb[0].mxu0
    %v3140 = vadd.f32 0.0, %v3139
    %v3141 = vpop.f32.mrb[0].mxu0
    %v3142 = vadd.f32 0.0, %v3141
    %3143 = vmatprep.mubr.bf16.mxu0 0
    %3144 = vmatmul.mubr.bf16.gmra.mrb[0].mxu0 %v3089
    %v3145 = vpop.f32.mrb[0].mxu0
    %v3146 = vadd.f32 0.0, %v3145
    %v3147 = vpop.f32.mrb[0].mxu0
    %v3148 = vadd.f32 0.0, %v3147
    %v3149 = vpop.f32.mrb[0].mxu0
    %v3150 = vpop.f32.mrb[0].mxu0
    %3151 = vdwg.mxu0
    %3152 = vmatprep.subr.bf16.mxu0 0
    %3153 = vmatpush1.bf16.msra.mxu0 %v3066
    %3154 = vmatprep.subr.bf16.mxu0 0
    %3155 = vmatpush1.bf16.msra.mxu0 %v3069
    %3156 = vmatprep.subr.bf16.mxu0 0
    %3157 = vmatpush1.bf16.msra.mxu0 %v3099
    %3158 = vmatprep.subr.bf16.mxu0 0
    %3159 = vmatpush1.bf16.msra.mxu0 0
    %3160 = vmatprep.subr.bf16.mxu0 0
    %3161 = vmatpush1.bf16.msra.mxu0 0
    %3162 = vmatprep.subr.bf16.mxu0 0
    %3163 = vmatpush1.bf16.msra.mxu0 0
    %3164 = vmatprep.subr.bf16.mxu0 0
    %3165 = vmatpush1.bf16.msra.mxu0 0
    %3166 = vmatprep.subr.bf16.mxu0 0
    %3167 = vmatpush1.bf16.msra.mxu0 0
    %3168 = vmatprep.subr.bf16.mxu0 0
    %3169 = vmatpush1.bf16.msra.mxu0 0
    %3170 = vmatprep.subr.bf16.mxu0 0
    %3171 = vmatpush1.bf16.msra.mxu0 0
    %3172 = vmatprep.subr.bf16.mxu0 0
    %3173 = vmatpush1.bf16.msra.mxu0 0
    %3174 = vmatprep.subr.bf16.mxu0 0
    %3175 = vmatpush1.bf16.msra.mxu0 0
    %3176 = vmatprep.subr.bf16.mxu0 0
    %3177 = vmatpush1.bf16.msra.mxu0 0
    %3178 = vmatprep.subr.bf16.mxu0 0
    %3179 = vmatpush1.bf16.msra.mxu0 0
    %3180 = vmatprep.subr.bf16.mxu0 0
    %3181 = vmatpush1.bf16.msra.mxu0 0
    %3182 = vmatprep.subr.bf16.mxu0 0
    %3183 = vmatpush1.bf16.msra.mxu0 0
    %3184 = vmatprep.mubr.bf16.mxu0 0
    %3185 = vmatmul.mubr.bf16.gmra.mrb[0].mxu0 %v3086
    %v3186 = vpop.f32.mrb[0].mxu0
    %v3187 = vadd.f32 0.0, %v3186
    %v3188 = vpop.f32.mrb[0].mxu0
    %v3189 = vpop.f32.mrb[0].mxu0
    %v3190 = vadd.f32 0.0, %v3189
    %v3191 = vpop.f32.mrb[0].mxu0
    %3192 = vmatprep.mubr.bf16.mxu0 0
    %3193 = vmatmul.mubr.bf16.gmra.mrb[0].mxu0 %v3089
    %v3194 = vpop.f32.mrb[0].mxu0
    %v3195 = vadd.f32 0.0, %v3194
    %v3196 = vpop.f32.mrb[0].mxu0
    %v3197 = vpop.f32.mrb[0].mxu0
    %v3198 = vpop.f32.mrb[0].mxu0
    %3199 = vdwg.mxu0
    %s3200 = scalar_lea.vmem %s7, 12
    %v3201 = vld [vmem:[%s3200] sm:$0xf]
    %v3202 = vld [vmem:[%s3200 + $0x4] sm:$0xf]
    %v3203 = vld [vmem:[%s3200 + $0x8] sm:$0x1]
    %v3207 = vunpack.c.l.b16 %v3201
    %v3208 = vunpack.c.l.b16 %v3202
    %v3209 = vunpack.c.l.b16 %v3203
    %v3210 = vpack.c.b16 %v3208, %v3207
    %v3211 = vpack.c.b16 %v3209, %v3209
    %v3213 = vsel %vm3084, %v3210, 0
    %v3216 = vsel %vm3084, %v3211, 0
    %3218 = vmatprep.subr.bf16.mxu0 %v3065
    %3219 = vmatpush1.bf16.msra.mxu0 %v3064
    %3220 = vmatprep.subr.bf16.mxu0 %v3068
    %3221 = vmatpush1.bf16.msra.mxu0 %v3067
    %3222 = vmatprep.subr.bf16.mxu0 %v3096
    %3223 = vmatpush1.bf16.msra.mxu0 %v3093
    %3224 = vmatprep.subr.bf16.mxu0 0
    %3225 = vmatpush1.bf16.msra.mxu0 0
    %3226 = vmatprep.subr.bf16.mxu0 0
    %3227 = vmatpush1.bf16.msra.mxu0 0
    %3228 = vmatprep.subr.bf16.mxu0 0
    %3229 = vmatpush1.bf16.msra.mxu0 0
    %3230 = vmatprep.subr.bf16.mxu0 0
    %3231 = vmatpush1.bf16.msra.mxu0 0
    %3232 = vmatprep.subr.bf16.mxu0 0
    %3233 = vmatpush1.bf16.msra.mxu0 0
    %3234 = vmatprep.subr.bf16.mxu0 0
    %3235 = vmatpush1.bf16.msra.mxu0 0
    %3236 = vmatprep.subr.bf16.mxu0 0
    %3237 = vmatpush1.bf16.msra.mxu0 0
    %3238 = vmatprep.subr.bf16.mxu0 0
    %3239 = vmatpush1.bf16.msra.mxu0 0
    %3240 = vmatprep.subr.bf16.mxu0 0
    %3241 = vmatpush1.bf16.msra.mxu0 0
    %3242 = vmatprep.subr.bf16.mxu0 0
    %3243 = vmatpush1.bf16.msra.mxu0 0
    %3244 = vmatprep.subr.bf16.mxu0 0
    %3245 = vmatpush1.bf16.msra.mxu0 0
    %3246 = vmatprep.subr.bf16.mxu0 0
    %3247 = vmatpush1.bf16.msra.mxu0 0
    %3248 = vmatprep.subr.bf16.mxu0 0
    %3249 = vmatpush1.bf16.msra.mxu0 0
    %3250 = vmatprep.mubr.bf16.mxu0 0
    %3251 = vmatmul.mubr.bf16.gmra.mrb[0].mxu0 %v3213
    %v3252 = vpop.f32.mrb[0].mxu0
    %v3253 = vadd.f32 0.0, %v3252
    %v3254 = vpop.f32.mrb[0].mxu0
    %v3255 = vadd.f32 0.0, %v3254
    %v3256 = vpop.f32.mrb[0].mxu0
    %v3257 = vadd.f32 0.0, %v3256
    %v3258 = vpop.f32.mrb[0].mxu0
    %v3259 = vadd.f32 0.0, %v3258
    %3260 = vmatprep.mubr.bf16.mxu0 0
    %3261 = vmatmul.mubr.bf16.gmra.mrb[0].mxu0 %v3216
    %v3262 = vpop.f32.mrb[0].mxu0
    %v3263 = vadd.f32 0.0, %v3262
    %v3264 = vpop.f32.mrb[0].mxu0
    %v3265 = vadd.f32 0.0, %v3264
    %v3266 = vpop.f32.mrb[0].mxu0
    %v3267 = vpop.f32.mrb[0].mxu0
    %3268 = vdwg.mxu0
    %3269 = vmatprep.subr.bf16.mxu0 0
    %3270 = vmatpush1.bf16.msra.mxu0 %v3066
    %3271 = vmatprep.subr.bf16.mxu0 0
    %3272 = vmatpush1.bf16.msra.mxu0 %v3069
    %3273 = vmatprep.subr.bf16.mxu0 0
    %3274 = vmatpush1.bf16.msra.mxu0 %v3099
    %3275 = vmatprep.subr.bf16.mxu0 0
    %3276 = vmatpush1.bf16.msra.mxu0 0
    %3277 = vmatprep.subr.bf16.mxu0 0
    %3278 = vmatpush1.bf16.msra.mxu0 0
    %3279 = vmatprep.subr.bf16.mxu0 0
    %3280 = vmatpush1.bf16.msra.mxu0 0
    %3281 = vmatprep.subr.bf16.mxu0 0
    %3282 = vmatpush1.bf16.msra.mxu0 0
    %3283 = vmatprep.subr.bf16.mxu0 0
    %3284 = vmatpush1.bf16.msra.mxu0 0
    %3285 = vmatprep.subr.bf16.mxu0 0
    %3286 = vmatpush1.bf16.msra.mxu0 0
    %3287 = vmatprep.subr.bf16.mxu0 0
    %3288 = vmatpush1.bf16.msra.mxu0 0
    %3289 = vmatprep.subr.bf16.mxu0 0
    %3290 = vmatpush1.bf16.msra.mxu0 0
    %3291 = vmatprep.subr.bf16.mxu0 0
    %3292 = vmatpush1.bf16.msra.mxu0 0
    %3293 = vmatprep.subr.bf16.mxu0 0
    %3294 = vmatpush1.bf16.msra.mxu0 0
    %3295 = vmatprep.subr.bf16.mxu0 0
    %3296 = vmatpush1.bf16.msra.mxu0 0
    %3297 = vmatprep.subr.bf16.mxu0 0
    %3298 = vmatpush1.bf16.msra.mxu0 0
    %3299 = vmatprep.subr.bf16.mxu0 0
    %3300 = vmatpush1.bf16.msra.mxu0 0
    %3301 = vmatprep.mubr.bf16.mxu0 0
    %3302 = vmatmul.mubr.bf16.gmra.mrb[0].mxu0 %v3213
    %v3303 = vpop.f32.mrb[0].mxu0
    %v3304 = vadd.f32 0.0, %v3303
    %v3305 = vpop.f32.mrb[0].mxu0
    %v3306 = vpop.f32.mrb[0].mxu0
    %v3307 = vadd.f32 0.0, %v3306
    %v3308 = vpop.f32.mrb[0].mxu0
    %3309 = vmatprep.mubr.bf16.mxu0 0
    %3310 = vmatmul.mubr.bf16.gmra.mrb[0].mxu0 %v3216
    %v3311 = vpop.f32.mrb[0].mxu0
    %v3312 = vadd.f32 0.0, %v3311
    %v3313 = vpop.f32.mrb[0].mxu0
    %v3314 = vpop.f32.mrb[0].mxu0
    %v3315 = vpop.f32.mrb[0].mxu0
    %3316 = vdwg.mxu0
    %v3317 = vmax.f32 %v3136, %v3253
    %v3318 = vmax.f32 %v3138, %v3255
    %v3319 = vmax.f32 %v3187, %v3304
    %v3320 = vmax.f32 %v3140, %v3257
    %v3321 = vmax.f32 %v3142, %v3259
    %v3322 = vmax.f32 %v3190, %v3307
    %v3323 = vmax.f32 %v3146, %v3263
    %v3324 = vmax.f32 %v3148, %v3265
    %v3325 = vmax.f32 %v3195, %v3312
    %v3326 = vpack.c.bf16 %v3320, %v3317
    %v3327 = vpack.c.bf16 %v3321, %v3318
    %v3328 = vpack.c.bf16 %v3322, %v3319
    %v3329 = vpack.c.bf16 %v3323, %v3323
    %v3330 = vpack.c.bf16 %v3324, %v3324
    %v3331 = vpack.c.bf16 %v3325, %v3325
    %v3332 = vld [vmem:[%s8] sm:$0xff]
    %v3333 = vld [vmem:[%s8 + $0x8] sm:$0xff]
    %v3334 = vld [vmem:[%s8 + $0x10] sm:$0xff]
    %v3335 = vld [vmem:[%s8 + $0x18] sm:$0xff]
    %v3336 = vld [vmem:[%s8 + $0x20] sm:$0xff]
    %v3337 = vld [vmem:[%s8 + $0x28] sm:$0xff]
    %v3338 = vld [vmem:[%s8 + $0x30] sm:$0xff]
    %v3339 = vld [vmem:[%s8 + $0x38] sm:$0xff]
    %v3340 = vld [vmem:[%s8 + $0x40] sm:$0xff]
    %v3341 = vld [vmem:[%s8 + $0x48] sm:$0xff]
    %v3342 = vld [vmem:[%s8 + $0x50] sm:$0xff]
    %v3343 = vld [vmem:[%s8 + $0x58] sm:$0xff]
    %v3344 = vld [vmem:[%s8 + $0x60] sm:$0xff]
    %v3345 = vld [vmem:[%s8 + $0x68] sm:$0xff]
    %v3346 = vld [vmem:[%s8 + $0x70] sm:$0xff]
    %v3347 = vld [vmem:[%s8 + $0x78] sm:$0xff]
    %v3348 = vld [vmem:[%s8 + $0x80] sm:$0xff]
    %v3349 = vld [vmem:[%s8 + $0x88] sm:$0xff]
    %v3350 = vld [vmem:[%s8 + $0x90] sm:$0xff]
    %v3351 = vld [vmem:[%s8 + $0x98] sm:$0xff]
    %v3352 = vld [vmem:[%s8 + $0xa0] sm:$0xff]
    %v3353 = vld [vmem:[%s8 + $0xa8] sm:$0xff]
    %v3354 = vld [vmem:[%s8 + $0xb0] sm:$0xff]
    %v3355 = vld [vmem:[%s8 + $0xb8] sm:$0xff]
    %v3356 = vld [vmem:[%s8 + $0xc0] sm:$0xff]
    %v3357 = vld [vmem:[%s8 + $0xc8] sm:$0xff]
    %v3358 = vld [vmem:[%s8 + $0xd0] sm:$0xff]
    %v3359 = vld [vmem:[%s8 + $0xd8] sm:$0xff]
    %v3360 = vld [vmem:[%s8 + $0xe0] sm:$0xff]
    %v3361 = vld [vmem:[%s8 + $0xe8] sm:$0xff]
    %v3362 = vld [vmem:[%s8 + $0xf0] sm:$0xff]
    %v3363 = vld [vmem:[%s8 + $0xf8] sm:$0xff]
    %v3364 = vld [vmem:[%s8 + $0x100] sm:$0xff]
    %v3365 = vld [vmem:[%s8 + $0x108] sm:$0xff]
    %v3366 = vld [vmem:[%s8 + $0x110] sm:$0xff]
    %v3367 = vld [vmem:[%s8 + $0x118] sm:$0xff]
    %v3368 = vld [vmem:[%s8 + $0x120] sm:$0xff]
    %v3369 = vld [vmem:[%s8 + $0x128] sm:$0xff]
    %v3370 = vld [vmem:[%s8 + $0x130] sm:$0xff]
    %v3371 = vld [vmem:[%s8 + $0x138] sm:$0xff]
    %v3372 = vld [vmem:[%s8 + $0x140] sm:$0xff]
    %v3373 = vld [vmem:[%s8 + $0x148] sm:$0xff]
    %v3374 = vld [vmem:[%s8 + $0x150] sm:$0xff]
    %v3375 = vld [vmem:[%s8 + $0x158] sm:$0xff]
    %v3420 = vunpack.c.l.b16 %v3332
    %v3421 = vunpack.c.h.b16 %v3332
    %v3422 = vunpack.c.l.b16 %v3333
    %v3423 = vunpack.c.h.b16 %v3333
    %v3424 = vunpack.c.l.b16 %v3334
    %v3425 = vunpack.c.h.b16 %v3334
    %v3426 = vunpack.c.l.b16 %v3335
    %v3427 = vunpack.c.h.b16 %v3335
    %v3428 = vunpack.c.l.b16 %v3336
    %v3429 = vunpack.c.h.b16 %v3336
    %v3430 = vunpack.c.l.b16 %v3337
    %v3431 = vunpack.c.h.b16 %v3337
    %v3432 = vunpack.c.l.b16 %v3338
    %v3433 = vunpack.c.h.b16 %v3338
    %v3434 = vunpack.c.l.b16 %v3339
    %v3435 = vunpack.c.h.b16 %v3339
    %v3436 = vunpack.c.l.b16 %v3340
    %v3437 = vunpack.c.h.b16 %v3340
    %v3438 = vunpack.c.l.b16 %v3341
    %v3439 = vunpack.c.h.b16 %v3341
    %v3440 = vunpack.c.l.b16 %v3342
    %v3441 = vunpack.c.h.b16 %v3342
    %v3442 = vunpack.c.l.b16 %v3343
    %v3443 = vunpack.c.h.b16 %v3343
    %v3444 = vunpack.c.l.b16 %v3344
    %v3445 = vunpack.c.h.b16 %v3344
    %v3446 = vunpack.c.l.b16 %v3345
    %v3447 = vunpack.c.h.b16 %v3345
    %v3448 = vunpack.c.l.b16 %v3346
    %v3449 = vunpack.c.h.b16 %v3346
    %v3450 = vunpack.c.l.b16 %v3347
    %v3451 = vunpack.c.h.b16 %v3347
    %v3452 = vunpack.c.l.b16 %v3348
    %v3453 = vunpack.c.h.b16 %v3348
    %v3454 = vunpack.c.l.b16 %v3349
    %v3455 = vunpack.c.h.b16 %v3349
    %v3456 = vunpack.c.l.b16 %v3350
    %v3457 = vunpack.c.h.b16 %v3350
    %v3458 = vunpack.c.l.b16 %v3351
    %v3459 = vunpack.c.h.b16 %v3351
    %v3460 = vunpack.c.l.b16 %v3352
    %v3461 = vunpack.c.h.b16 %v3352
    %v3462 = vunpack.c.l.b16 %v3353
    %v3463 = vunpack.c.h.b16 %v3353
    %v3464 = vunpack.c.l.b16 %v3354
    %v3465 = vunpack.c.h.b16 %v3354
    %v3466 = vunpack.c.l.b16 %v3355
    %v3467 = vunpack.c.h.b16 %v3355
    %v3468 = vunpack.c.l.b16 %v3356
    %v3469 = vunpack.c.h.b16 %v3356
    %v3470 = vunpack.c.l.b16 %v3357
    %v3471 = vunpack.c.h.b16 %v3357
    %v3472 = vunpack.c.l.b16 %v3358
    %v3473 = vunpack.c.h.b16 %v3358
    %v3474 = vunpack.c.l.b16 %v3359
    %v3475 = vunpack.c.h.b16 %v3359
    %v3476 = vunpack.c.l.b16 %v3360
    %v3477 = vunpack.c.h.b16 %v3360
    %v3478 = vunpack.c.l.b16 %v3361
    %v3479 = vunpack.c.h.b16 %v3361
    %v3480 = vunpack.c.l.b16 %v3362
    %v3481 = vunpack.c.h.b16 %v3362
    %v3482 = vunpack.c.l.b16 %v3363
    %v3483 = vunpack.c.h.b16 %v3363
    %v3484 = vunpack.c.l.b16 %v3364
    %v3485 = vunpack.c.h.b16 %v3364
    %v3486 = vunpack.c.l.b16 %v3365
    %v3487 = vunpack.c.h.b16 %v3365
    %v3488 = vunpack.c.l.b16 %v3366
    %v3489 = vunpack.c.h.b16 %v3366
    %v3490 = vunpack.c.l.b16 %v3367
    %v3491 = vunpack.c.h.b16 %v3367
    %v3492 = vunpack.c.l.b16 %v3368
    %v3493 = vunpack.c.h.b16 %v3368
    %v3494 = vunpack.c.l.b16 %v3369
    %v3495 = vunpack.c.h.b16 %v3369
    %v3496 = vunpack.c.l.b16 %v3370
    %v3497 = vunpack.c.h.b16 %v3370
    %v3498 = vunpack.c.l.b16 %v3371
    %v3499 = vunpack.c.h.b16 %v3371
    %v3500 = vunpack.c.l.b16 %v3372
    %v3501 = vunpack.c.h.b16 %v3372
    %v3502 = vunpack.c.l.b16 %v3373
    %v3503 = vunpack.c.h.b16 %v3373
    %v3504 = vunpack.c.l.b16 %v3374
    %v3505 = vunpack.c.h.b16 %v3374
    %v3506 = vunpack.c.l.b16 %v3375
    %v3507 = vunpack.c.h.b16 %v3375
    %v3508 = vpack.c.b16 %v3422, %v3420
    %v3509 = vpack.c.b16 %v3423, %v3421
    %v3510 = vpack.c.b16 %v3426, %v3424
    %v3511 = vpack.c.b16 %v3427, %v3425
    %v3512 = vpack.c.b16 %v3430, %v3428
    %v3513 = vpack.c.b16 %v3431, %v3429
    %v3514 = vpack.c.b16 %v3434, %v3432
    %v3515 = vpack.c.b16 %v3435, %v3433
    %v3516 = vpack.c.b16 %v3438, %v3436
    %v3517 = vpack.c.b16 %v3439, %v3437
    %v3518 = vpack.c.b16 %v3442, %v3440
    %v3519 = vpack.c.b16 %v3443, %v3441
    %v3520 = vpack.c.b16 %v3446, %v3444
    %v3521 = vpack.c.b16 %v3447, %v3445
    %v3522 = vpack.c.b16 %v3450, %v3448
    %v3523 = vpack.c.b16 %v3451, %v3449
    %v3524 = vpack.c.b16 %v3454, %v3452
    %v3525 = vpack.c.b16 %v3455, %v3453
    %v3526 = vpack.c.b16 %v3458, %v3456
    %v3527 = vpack.c.b16 %v3459, %v3457
    %v3528 = vpack.c.b16 %v3462, %v3460
    %v3529 = vpack.c.b16 %v3463, %v3461
    %v3530 = vpack.c.b16 %v3466, %v3464
    %v3531 = vpack.c.b16 %v3467, %v3465
    %v3532 = vpack.c.b16 %v3470, %v3468
    %v3533 = vpack.c.b16 %v3471, %v3469
    %v3534 = vpack.c.b16 %v3474, %v3472
    %v3535 = vpack.c.b16 %v3475, %v3473
    %v3536 = vpack.c.b16 %v3478, %v3476
    %v3537 = vpack.c.b16 %v3479, %v3477
    %v3538 = vpack.c.b16 %v3482, %v3480
    %v3539 = vpack.c.b16 %v3483, %v3481
    %v3540 = vpack.c.b16 %v3486, %v3484
    %v3541 = vpack.c.b16 %v3487, %v3485
    %v3542 = vpack.c.b16 %v3490, %v3488
    %v3543 = vpack.c.b16 %v3491, %v3489
    %v3544 = vpack.c.b16 %v3494, %v3492
    %v3545 = vpack.c.b16 %v3495, %v3493
    %v3546 = vpack.c.b16 %v3498, %v3496
    %v3547 = vpack.c.b16 %v3499, %v3497
    %v3548 = vpack.c.b16 %v3502, %v3500
    %v3549 = vpack.c.b16 %v3503, %v3501
    %v3550 = vpack.c.b16 %v3506, %v3504
    %v3551 = vpack.c.b16 %v3507, %v3505
    %vm3596 = vcmask 785408
    %v3598 = vsel %vm3596, %v3328, 0
    %v3601 = vsel %vm3596, %v3331, 0
    %3603 = vmatprep.subr.bf16.mxu0 %v3509
    %3604 = vmatpush1.bf16.msra.mxu0 %v3508
    %3605 = vmatprep.subr.bf16.mxu0 %v3511
    %3606 = vmatpush1.bf16.msra.mxu0 %v3510
    %3607 = vmatprep.subr.bf16.mxu0 %v3513
    %3608 = vmatpush1.bf16.msra.mxu0 %v3512
    %3609 = vmatprep.subr.bf16.mxu0 %v3515
    %3610 = vmatpush1.bf16.msra.mxu0 %v3514
    %3611 = vmatprep.subr.bf16.mxu0 %v3517
    %3612 = vmatpush1.bf16.msra.mxu0 %v3516
    %3613 = vmatprep.subr.bf16.mxu0 %v3519
    %3614 = vmatpush1.bf16.msra.mxu0 %v3518
    %3615 = vmatprep.subr.bf16.mxu0 %v3521
    %3616 = vmatpush1.bf16.msra.mxu0 %v3520
    %3617 = vmatprep.subr.bf16.mxu0 %v3523
    %3618 = vmatpush1.bf16.msra.mxu0 %v3522
    %3619 = vmatprep.subr.bf16.mxu0 %v3525
    %3620 = vmatpush1.bf16.msra.mxu0 %v3524
    %3621 = vmatprep.subr.bf16.mxu0 %v3527
    %3622 = vmatpush1.bf16.msra.mxu0 %v3526
    %3623 = vmatprep.subr.bf16.mxu0 %v3529
    %3624 = vmatpush1.bf16.msra.mxu0 %v3528
    %3625 = vmatprep.subr.bf16.mxu0 %v3531
    %3626 = vmatpush1.bf16.msra.mxu0 %v3530
    %3627 = vmatprep.subr.bf16.mxu0 %v3533
    %3628 = vmatpush1.bf16.msra.mxu0 %v3532
    %3629 = vmatprep.subr.bf16.mxu0 %v3535
    %3630 = vmatpush1.bf16.msra.mxu0 %v3534
    %3631 = vmatprep.subr.bf16.mxu0 %v3537
    %3632 = vmatpush1.bf16.msra.mxu0 %v3536
    %3633 = vmatprep.subr.bf16.mxu0 %v3539
    %3634 = vmatpush1.bf16.msra.mxu0 %v3538
    %3635 = vmatprep.mubr.bf16.mxu0 %v3327
    %3636 = vmatmul.mubr.bf16.gmra.mrb[0].mxu0 %v3326
    %v3637 = vpop.f32.mrb[0].mxu0
    %v3638 = vadd.f32 0.0, %v3637
    %v3639 = vpop.f32.mrb[0].mxu0
    %v3640 = vadd.f32 0.0, %v3639
    %v3641 = vpop.f32.mrb[0].mxu0
    %v3642 = vadd.f32 0.0, %v3641
    %v3643 = vpop.f32.mrb[0].mxu0
    %v3644 = vadd.f32 0.0, %v3643
    %3645 = vmatprep.mubr.bf16.mxu0 %v3330
    %3646 = vmatmul.mubr.bf16.gmra.mrb[0].mxu0 %v3329
    %v3647 = vpop.f32.mrb[0].mxu0
    %v3648 = vadd.f32 0.0, %v3647
    %v3649 = vpop.f32.mrb[0].mxu0
    %v3650 = vadd.f32 0.0, %v3649
    %v3651 = vpop.f32.mrb[0].mxu0
    %v3652 = vpop.f32.mrb[0].mxu0
    %3653 = vdwg.mxu0
    %3654 = vmatprep.subr.bf16.mxu0 %v3541
    %3655 = vmatpush1.bf16.msra.mxu0 %v3540
    %3656 = vmatprep.subr.bf16.mxu0 %v3543
    %3657 = vmatpush1.bf16.msra.mxu0 %v3542
    %3658 = vmatprep.subr.bf16.mxu0 %v3545
    %3659 = vmatpush1.bf16.msra.mxu0 %v3544
    %3660 = vmatprep.subr.bf16.mxu0 %v3547
    %3661 = vmatpush1.bf16.msra.mxu0 %v3546
    %3662 = vmatprep.subr.bf16.mxu0 %v3549
    %3663 = vmatpush1.bf16.msra.mxu0 %v3548
    %3664 = vmatprep.subr.bf16.mxu0 %v3551
    %3665 = vmatpush1.bf16.msra.mxu0 %v3550
    %3666 = vmatprep.subr.bf16.mxu0 0
    %3667 = vmatpush1.bf16.msra.mxu0 0
    %3668 = vmatprep.subr.bf16.mxu0 0
    %3669 = vmatpush1.bf16.msra.mxu0 0
    %3670 = vmatprep.subr.bf16.mxu0 0
    %3671 = vmatpush1.bf16.msra.mxu0 0
    %3672 = vmatprep.subr.bf16.mxu0 0
    %3673 = vmatpush1.bf16.msra.mxu0 0
    %3674 = vmatprep.subr.bf16.mxu0 0
    %3675 = vmatpush1.bf16.msra.mxu0 0
    %3676 = vmatprep.subr.bf16.mxu0 0
    %3677 = vmatpush1.bf16.msra.mxu0 0
    %3678 = vmatprep.subr.bf16.mxu0 0
    %3679 = vmatpush1.bf16.msra.mxu0 0
    %3680 = vmatprep.subr.bf16.mxu0 0
    %3681 = vmatpush1.bf16.msra.mxu0 0
    %3682 = vmatprep.subr.bf16.mxu0 0
    %3683 = vmatpush1.bf16.msra.mxu0 0
    %3684 = vmatprep.subr.bf16.mxu0 0
    %3685 = vmatpush1.bf16.msra.mxu0 0
    %3686 = vmatprep.mubr.bf16.mxu0 0
    %3687 = vmatmul.mubr.bf16.gmra.mrb[0].mxu0 %v3598
    %v3688 = vpop.f32.mrb[0].mxu0
    %v3689 = vadd.f32 %v3638, %v3688
    %v3690 = vpop.f32.mrb[0].mxu0
    %v3691 = vadd.f32 %v3640, %v3690
    %v3692 = vpop.f32.mrb[0].mxu0
    %v3693 = vadd.f32 %v3642, %v3692
    %v3694 = vpop.f32.mrb[0].mxu0
    %v3695 = vadd.f32 %v3644, %v3694
    %3696 = vmatprep.mubr.bf16.mxu0 0
    %3697 = vmatmul.mubr.bf16.gmra.mrb[0].mxu0 %v3601
    %v3698 = vpop.f32.mrb[0].mxu0
    %v3699 = vadd.f32 %v3648, %v3698
    %v3700 = vpop.f32.mrb[0].mxu0
    %v3701 = vadd.f32 %v3650, %v3700
    %v3702 = vpop.f32.mrb[0].mxu0
    %v3703 = vpop.f32.mrb[0].mxu0
    %3704 = vdwg.mxu0
    %s3705 = scalar_lea.vmem %s8, 352
    %v3706 = vld [vmem:[%s3705] sm:$0xff]
    %v3707 = vld [vmem:[%s3705 + $0x8] sm:$0xff]
    %v3708 = vld [vmem:[%s3705 + $0x10] sm:$0xff]
    %v3709 = vld [vmem:[%s3705 + $0x18] sm:$0xff]
    %v3710 = vld [vmem:[%s3705 + $0x20] sm:$0xff]
    %v3711 = vld [vmem:[%s3705 + $0x28] sm:$0xff]
    %v3712 = vld [vmem:[%s3705 + $0x30] sm:$0xff]
    %v3713 = vld [vmem:[%s3705 + $0x38] sm:$0xff]
    %v3714 = vld [vmem:[%s3705 + $0x40] sm:$0xff]
    %v3715 = vld [vmem:[%s3705 + $0x48] sm:$0xff]
    %v3716 = vld [vmem:[%s3705 + $0x50] sm:$0xff]
    %v3717 = vld [vmem:[%s3705 + $0x58] sm:$0xff]
    %v3718 = vld [vmem:[%s3705 + $0x60] sm:$0xff]
    %v3719 = vld [vmem:[%s3705 + $0x68] sm:$0xff]
    %v3720 = vld [vmem:[%s3705 + $0x70] sm:$0xff]
    %v3721 = vld [vmem:[%s3705 + $0x78] sm:$0xff]
    %v3722 = vld [vmem:[%s3705 + $0x80] sm:$0xff]
    %v3723 = vld [vmem:[%s3705 + $0x88] sm:$0xff]
    %v3724 = vld [vmem:[%s3705 + $0x90] sm:$0xff]
    %v3725 = vld [vmem:[%s3705 + $0x98] sm:$0xff]
    %v3726 = vld [vmem:[%s3705 + $0xa0] sm:$0xff]
    %v3727 = vld [vmem:[%s3705 + $0xa8] sm:$0xff]
    %v3728 = vld [vmem:[%s3705 + $0xb0] sm:$0xff]
    %v3729 = vld [vmem:[%s3705 + $0xb8] sm:$0xff]
    %v3730 = vld [vmem:[%s3705 + $0xc0] sm:$0xff]
    %v3731 = vld [vmem:[%s3705 + $0xc8] sm:$0xff]
    %v3732 = vld [vmem:[%s3705 + $0xd0] sm:$0xff]
    %v3733 = vld [vmem:[%s3705 + $0xd8] sm:$0xff]
    %v3734 = vld [vmem:[%s3705 + $0xe0] sm:$0xff]
    %v3735 = vld [vmem:[%s3705 + $0xe8] sm:$0xff]
    %v3736 = vld [vmem:[%s3705 + $0xf0] sm:$0xff]
    %v3737 = vld [vmem:[%s3705 + $0xf8] sm:$0xff]
    %v3738 = vld [vmem:[%s3705 + $0x100] sm:$0xff]
    %v3739 = vld [vmem:[%s3705 + $0x108] sm:$0xff]
    %v3740 = vld [vmem:[%s3705 + $0x110] sm:$0xff]
    %v3741 = vld [vmem:[%s3705 + $0x118] sm:$0xff]
    %v3742 = vld [vmem:[%s3705 + $0x120] sm:$0xff]
    %v3743 = vld [vmem:[%s3705 + $0x128] sm:$0xff]
    %v3744 = vld [vmem:[%s3705 + $0x130] sm:$0xff]
    %v3745 = vld [vmem:[%s3705 + $0x138] sm:$0xff]
    %v3746 = vld [vmem:[%s3705 + $0x140] sm:$0xff]
    %v3747 = vld [vmem:[%s3705 + $0x148] sm:$0xff]
    %v3748 = vld [vmem:[%s3705 + $0x150] sm:$0xff]
    %v3749 = vld [vmem:[%s3705 + $0x158] sm:$0xff]
    %v3794 = vunpack.c.l.b16 %v3706
    %v3795 = vunpack.c.h.b16 %v3706
    %v3796 = vunpack.c.l.b16 %v3707
    %v3797 = vunpack.c.h.b16 %v3707
    %v3798 = vunpack.c.l.b16 %v3708
    %v3799 = vunpack.c.h.b16 %v3708
    %v3800 = vunpack.c.l.b16 %v3709
    %v3801 = vunpack.c.h.b16 %v3709
    %v3802 = vunpack.c.l.b16 %v3710
    %v3803 = vunpack.c.h.b16 %v3710
    %v3804 = vunpack.c.l.b16 %v3711
    %v3805 = vunpack.c.h.b16 %v3711
    %v3806 = vunpack.c.l.b16 %v3712
    %v3807 = vunpack.c.h.b16 %v3712
    %v3808 = vunpack.c.l.b16 %v3713
    %v3809 = vunpack.c.h.b16 %v3713
    %v3810 = vunpack.c.l.b16 %v3714
    %v3811 = vunpack.c.h.b16 %v3714
    %v3812 = vunpack.c.l.b16 %v3715
    %v3813 = vunpack.c.h.b16 %v3715
    %v3814 = vunpack.c.l.b16 %v3716
    %v3815 = vunpack.c.h.b16 %v3716
    %v3816 = vunpack.c.l.b16 %v3717
    %v3817 = vunpack.c.h.b16 %v3717
    %v3818 = vunpack.c.l.b16 %v3718
    %v3819 = vunpack.c.h.b16 %v3718
    %v3820 = vunpack.c.l.b16 %v3719
    %v3821 = vunpack.c.h.b16 %v3719
    %v3822 = vunpack.c.l.b16 %v3720
    %v3823 = vunpack.c.h.b16 %v3720
    %v3824 = vunpack.c.l.b16 %v3721
    %v3825 = vunpack.c.h.b16 %v3721
    %v3826 = vunpack.c.l.b16 %v3722
    %v3827 = vunpack.c.h.b16 %v3722
    %v3828 = vunpack.c.l.b16 %v3723
    %v3829 = vunpack.c.h.b16 %v3723
    %v3830 = vunpack.c.l.b16 %v3724
    %v3831 = vunpack.c.h.b16 %v3724
    %v3832 = vunpack.c.l.b16 %v3725
    %v3833 = vunpack.c.h.b16 %v3725
    %v3834 = vunpack.c.l.b16 %v3726
    %v3835 = vunpack.c.h.b16 %v3726
    %v3836 = vunpack.c.l.b16 %v3727
    %v3837 = vunpack.c.h.b16 %v3727
    %v3838 = vunpack.c.l.b16 %v3728
    %v3839 = vunpack.c.h.b16 %v3728
    %v3840 = vunpack.c.l.b16 %v3729
    %v3841 = vunpack.c.h.b16 %v3729
    %v3842 = vunpack.c.l.b16 %v3730
    %v3843 = vunpack.c.h.b16 %v3730
    %v3844 = vunpack.c.l.b16 %v3731
    %v3845 = vunpack.c.h.b16 %v3731
    %v3846 = vunpack.c.l.b16 %v3732
    %v3847 = vunpack.c.h.b16 %v3732
    %v3848 = vunpack.c.l.b16 %v3733
    %v3849 = vunpack.c.h.b16 %v3733
    %v3850 = vunpack.c.l.b16 %v3734
    %v3851 = vunpack.c.h.b16 %v3734
    %v3852 = vunpack.c.l.b16 %v3735
    %v3853 = vunpack.c.h.b16 %v3735
    %v3854 = vunpack.c.l.b16 %v3736
    %v3855 = vunpack.c.h.b16 %v3736
    %v3856 = vunpack.c.l.b16 %v3737
    %v3857 = vunpack.c.h.b16 %v3737
    %v3858 = vunpack.c.l.b16 %v3738
    %v3859 = vunpack.c.h.b16 %v3738
    %v3860 = vunpack.c.l.b16 %v3739
    %v3861 = vunpack.c.h.b16 %v3739
    %v3862 = vunpack.c.l.b16 %v3740
    %v3863 = vunpack.c.h.b16 %v3740
    %v3864 = vunpack.c.l.b16 %v3741
    %v3865 = vunpack.c.h.b16 %v3741
    %v3866 = vunpack.c.l.b16 %v3742
    %v3867 = vunpack.c.h.b16 %v3742
    %v3868 = vunpack.c.l.b16 %v3743
    %v3869 = vunpack.c.h.b16 %v3743
    %v3870 = vunpack.c.l.b16 %v3744
    %v3871 = vunpack.c.h.b16 %v3744
    %v3872 = vunpack.c.l.b16 %v3745
    %v3873 = vunpack.c.h.b16 %v3745
    %v3874 = vunpack.c.l.b16 %v3746
    %v3875 = vunpack.c.h.b16 %v3746
    %v3876 = vunpack.c.l.b16 %v3747
    %v3877 = vunpack.c.h.b16 %v3747
    %v3878 = vunpack.c.l.b16 %v3748
    %v3879 = vunpack.c.h.b16 %v3748
    %v3880 = vunpack.c.l.b16 %v3749
    %v3881 = vunpack.c.h.b16 %v3749
    %v3882 = vpack.c.b16 %v3796, %v3794
    %v3883 = vpack.c.b16 %v3797, %v3795
    %v3884 = vpack.c.b16 %v3800, %v3798
    %v3885 = vpack.c.b16 %v3801, %v3799
    %v3886 = vpack.c.b16 %v3804, %v3802
    %v3887 = vpack.c.b16 %v3805, %v3803
    %v3888 = vpack.c.b16 %v3808, %v3806
    %v3889 = vpack.c.b16 %v3809, %v3807
    %v3890 = vpack.c.b16 %v3812, %v3810
    %v3891 = vpack.c.b16 %v3813, %v3811
    %v3892 = vpack.c.b16 %v3816, %v3814
    %v3893 = vpack.c.b16 %v3817, %v3815
    %v3894 = vpack.c.b16 %v3820, %v3818
    %v3895 = vpack.c.b16 %v3821, %v3819
    %v3896 = vpack.c.b16 %v3824, %v3822
    %v3897 = vpack.c.b16 %v3825, %v3823
    %v3898 = vpack.c.b16 %v3828, %v3826
    %v3899 = vpack.c.b16 %v3829, %v3827
    %v3900 = vpack.c.b16 %v3832, %v3830
    %v3901 = vpack.c.b16 %v3833, %v3831
    %v3902 = vpack.c.b16 %v3836, %v3834
    %v3903 = vpack.c.b16 %v3837, %v3835
    %v3904 = vpack.c.b16 %v3840, %v3838
    %v3905 = vpack.c.b16 %v3841, %v3839
    %v3906 = vpack.c.b16 %v3844, %v3842
    %v3907 = vpack.c.b16 %v3845, %v3843
    %v3908 = vpack.c.b16 %v3848, %v3846
    %v3909 = vpack.c.b16 %v3849, %v3847
    %v3910 = vpack.c.b16 %v3852, %v3850
    %v3911 = vpack.c.b16 %v3853, %v3851
    %v3912 = vpack.c.b16 %v3856, %v3854
    %v3913 = vpack.c.b16 %v3857, %v3855
    %v3914 = vpack.c.b16 %v3860, %v3858
    %v3915 = vpack.c.b16 %v3861, %v3859
    %v3916 = vpack.c.b16 %v3864, %v3862
    %v3917 = vpack.c.b16 %v3865, %v3863
    %v3918 = vpack.c.b16 %v3868, %v3866
    %v3919 = vpack.c.b16 %v3869, %v3867
    %v3920 = vpack.c.b16 %v3872, %v3870
    %v3921 = vpack.c.b16 %v3873, %v3871
    %v3922 = vpack.c.b16 %v3876, %v3874
    %v3923 = vpack.c.b16 %v3877, %v3875
    %v3924 = vpack.c.b16 %v3880, %v3878
    %v3925 = vpack.c.b16 %v3881, %v3879
    %3970 = vmatprep.subr.bf16.mxu0 %v3883
    %3971 = vmatpush1.bf16.msra.mxu0 %v3882
    %3972 = vmatprep.subr.bf16.mxu0 %v3885
    %3973 = vmatpush1.bf16.msra.mxu0 %v3884
    %3974 = vmatprep.subr.bf16.mxu0 %v3887
    %3975 = vmatpush1.bf16.msra.mxu0 %v3886
    %3976 = vmatprep.subr.bf16.mxu0 %v3889
    %3977 = vmatpush1.bf16.msra.mxu0 %v3888
    %3978 = vmatprep.subr.bf16.mxu0 %v3891
    %3979 = vmatpush1.bf16.msra.mxu0 %v3890
    %3980 = vmatprep.subr.bf16.mxu0 %v3893
    %3981 = vmatpush1.bf16.msra.mxu0 %v3892
    %3982 = vmatprep.subr.bf16.mxu0 %v3895
    %3983 = vmatpush1.bf16.msra.mxu0 %v3894
    %3984 = vmatprep.subr.bf16.mxu0 %v3897
    %3985 = vmatpush1.bf16.msra.mxu0 %v3896
    %3986 = vmatprep.subr.bf16.mxu0 %v3899
    %3987 = vmatpush1.bf16.msra.mxu0 %v3898
    %3988 = vmatprep.subr.bf16.mxu0 %v3901
    %3989 = vmatpush1.bf16.msra.mxu0 %v3900
    %3990 = vmatprep.subr.bf16.mxu0 %v3903
    %3991 = vmatpush1.bf16.msra.mxu0 %v3902
    %3992 = vmatprep.subr.bf16.mxu0 %v3905
    %3993 = vmatpush1.bf16.msra.mxu0 %v3904
    %3994 = vmatprep.subr.bf16.mxu0 %v3907
    %3995 = vmatpush1.bf16.msra.mxu0 %v3906
    %3996 = vmatprep.subr.bf16.mxu0 %v3909
    %3997 = vmatpush1.bf16.msra.mxu0 %v3908
    %3998 = vmatprep.subr.bf16.mxu0 %v3911
    %3999 = vmatpush1.bf16.msra.mxu0 %v3910
    %4000 = vmatprep.subr.bf16.mxu0 %v3913
    %4001 = vmatpush1.bf16.msra.mxu0 %v3912
    %4002 = vmatprep.mubr.bf16.mxu0 %v3327
    %4003 = vmatmul.mubr.bf16.gmra.mrb[0].mxu0 %v3326
    %v4004 = vpop.f32.mrb[0].mxu0
    %v4005 = vadd.f32 0.0, %v4004
    %v4006 = vpop.f32.mrb[0].mxu0
    %v4007 = vadd.f32 0.0, %v4006
    %v4008 = vpop.f32.mrb[0].mxu0
    %v4009 = vadd.f32 0.0, %v4008
    %v4010 = vpop.f32.mrb[0].mxu0
    %v4011 = vadd.f32 0.0, %v4010
    %4012 = vmatprep.mubr.bf16.mxu0 %v3330
    %4013 = vmatmul.mubr.bf16.gmra.mrb[0].mxu0 %v3329
    %v4014 = vpop.f32.mrb[0].mxu0
    %v4015 = vadd.f32 0.0, %v4014
    %v4016 = vpop.f32.mrb[0].mxu0
    %v4017 = vadd.f32 0.0, %v4016
    %v4018 = vpop.f32.mrb[0].mxu0
    %v4019 = vpop.f32.mrb[0].mxu0
    %4020 = vdwg.mxu0
    %4021 = vmatprep.subr.bf16.mxu0 %v3915
    %4022 = vmatpush1.bf16.msra.mxu0 %v3914
    %4023 = vmatprep.subr.bf16.mxu0 %v3917
    %4024 = vmatpush1.bf16.msra.mxu0 %v3916
    %4025 = vmatprep.subr.bf16.mxu0 %v3919
    %4026 = vmatpush1.bf16.msra.mxu0 %v3918
    %4027 = vmatprep.subr.bf16.mxu0 %v3921
    %4028 = vmatpush1.bf16.msra.mxu0 %v3920
    %4029 = vmatprep.subr.bf16.mxu0 %v3923
    %4030 = vmatpush1.bf16.msra.mxu0 %v3922
    %4031 = vmatprep.subr.bf16.mxu0 %v3925
    %4032 = vmatpush1.bf16.msra.mxu0 %v3924
    %4033 = vmatprep.subr.bf16.mxu0 0
    %4034 = vmatpush1.bf16.msra.mxu0 0
    %4035 = vmatprep.subr.bf16.mxu0 0
    %4036 = vmatpush1.bf16.msra.mxu0 0
    %4037 = vmatprep.subr.bf16.mxu0 0
    %4038 = vmatpush1.bf16.msra.mxu0 0
    %4039 = vmatprep.subr.bf16.mxu0 0
    %4040 = vmatpush1.bf16.msra.mxu0 0
    %4041 = vmatprep.subr.bf16.mxu0 0
    %4042 = vmatpush1.bf16.msra.mxu0 0
    %4043 = vmatprep.subr.bf16.mxu0 0
    %4044 = vmatpush1.bf16.msra.mxu0 0
    %4045 = vmatprep.subr.bf16.mxu0 0
    %4046 = vmatpush1.bf16.msra.mxu0 0
    %4047 = vmatprep.subr.bf16.mxu0 0
    %4048 = vmatpush1.bf16.msra.mxu0 0
    %4049 = vmatprep.subr.bf16.mxu0 0
    %4050 = vmatpush1.bf16.msra.mxu0 0
    %4051 = vmatprep.subr.bf16.mxu0 0
    %4052 = vmatpush1.bf16.msra.mxu0 0
    %4053 = vmatprep.mubr.bf16.mxu0 0
    %4054 = vmatmul.mubr.bf16.gmra.mrb[0].mxu0 %v3598
    %v4055 = vpop.f32.mrb[0].mxu0
    %v4056 = vadd.f32 %v4005, %v4055
    %v4057 = vpop.f32.mrb[0].mxu0
    %v4058 = vadd.f32 %v4007, %v4057
    %v4059 = vpop.f32.mrb[0].mxu0
    %v4060 = vadd.f32 %v4009, %v4059
    %v4061 = vpop.f32.mrb[0].mxu0
    %v4062 = vadd.f32 %v4011, %v4061
    %4063 = vmatprep.mubr.bf16.mxu0 0
    %4064 = vmatmul.mubr.bf16.gmra.mrb[0].mxu0 %v3601
    %v4065 = vpop.f32.mrb[0].mxu0
    %v4066 = vadd.f32 %v4015, %v4065
    %v4067 = vpop.f32.mrb[0].mxu0
    %v4068 = vadd.f32 %v4017, %v4067
    %v4069 = vpop.f32.mrb[0].mxu0
    %v4070 = vpop.f32.mrb[0].mxu0
    %4071 = vdwg.mxu0
    %v4072 = vmax.f32 %v3689, %v4056
    %v4073 = vmax.f32 %v3691, %v4058
    %v4074 = vmax.f32 %v3693, %v4060
    %v4075 = vmax.f32 %v3695, %v4062
    %v4076 = vmax.f32 %v3699, %v4066
    %v4077 = vmax.f32 %v3701, %v4068
    %v4078 = vpack.c.bf16 %v4072, %v4072
    %v4079 = vpack.c.bf16 %v4073, %v4073
    %v4080 = vld [vmem:[#allocation2] sm:$0xf]
    %v4081 = vld [vmem:[#allocation2 + $0x4] sm:$0xf]
    %v4082 = vld [vmem:[#allocation2 + $0x8] sm:$0xf]
    %v4083 = vld [vmem:[#allocation2 + $0xc] sm:$0xf]
    %v4084 = vld [vmem:[#allocation2 + $0x10] sm:$0xf]
    %v4085 = vld [vmem:[#allocation2 + $0x14] sm:$0xf]
    %v4086 = vld [vmem:[#allocation2 + $0x18] sm:$0xf]
    %v4087 = vld [vmem:[#allocation2 + $0x1c] sm:$0xf]
    %v4088 = vld [vmem:[#allocation2 + $0x20] sm:$0xf]
    %v4089 = vld [vmem:[#allocation2 + $0x24] sm:$0xf]
    %v4090 = vld [vmem:[#allocation2 + $0x28] sm:$0xf]
    %v4091 = vld [vmem:[#allocation2 + $0x2c] sm:$0xf]
    %v4092 = vld [vmem:[#allocation2 + $0x30] sm:$0xf]
    %v4093 = vld [vmem:[#allocation2 + $0x34] sm:$0xf]
    %v4094 = vld [vmem:[#allocation2 + $0x38] sm:$0xf]
    %v4095 = vld [vmem:[#allocation2 + $0x3c] sm:$0xf]
    %v4096 = vld [vmem:[#allocation2 + $0x40] sm:$0xf]
    %v4097 = vld [vmem:[#allocation2 + $0x44] sm:$0xf]
    %v4098 = vld [vmem:[#allocation2 + $0x48] sm:$0xf]
    %v4099 = vld [vmem:[#allocation2 + $0x4c] sm:$0xf]
    %s4100 = scalar_lea.vmem [#allocation2], 80
    %v4101 = vld [vmem:[%s4100] sm:$0xf]
    %v4102 = vld [vmem:[%s4100 + $0x4] sm:$0xf]
    %v4103 = vld [vmem:[%s4100 + $0x8] sm:$0xf]
    %v4104 = vld [vmem:[%s4100 + $0xc] sm:$0xf]
    %v4105 = vld [vmem:[%s4100 + $0x10] sm:$0xf]
    %v4106 = vld [vmem:[%s4100 + $0x14] sm:$0xf]
    %v4107 = vld [vmem:[%s4100 + $0x18] sm:$0xf]
    %v4108 = vld [vmem:[%s4100 + $0x1c] sm:$0xf]
    %v4109 = vld [vmem:[%s4100 + $0x20] sm:$0xf]
    %v4110 = vld [vmem:[%s4100 + $0x24] sm:$0xf]
    %v4111 = vld [vmem:[%s4100 + $0x28] sm:$0xf]
    %v4112 = vld [vmem:[%s4100 + $0x2c] sm:$0xf]
    %v4113 = vld [vmem:[%s4100 + $0x30] sm:$0xf]
    %v4114 = vld [vmem:[%s4100 + $0x34] sm:$0xf]
    %v4115 = vld [vmem:[%s4100 + $0x38] sm:$0xf]
    %v4116 = vld [vmem:[%s4100 + $0x3c] sm:$0xf]
    %v4117 = vld [vmem:[%s4100 + $0x40] sm:$0xf]
    %v4118 = vld [vmem:[%s4100 + $0x44] sm:$0xf]
    %v4119 = vld [vmem:[%s4100 + $0x48] sm:$0xf]
    %v4120 = vld [vmem:[%s4100 + $0x4c] sm:$0xf]
    %v4123 = vrot.slane %v4078, 1
    %v4124 = vrot.slane %v4079, 1
    %v4146 = vunpack.c.l.b16 %v4101
    %v4147 = vunpack.c.l.b16 %v4102
    %v4148 = vunpack.c.l.b16 %v4103
    %v4149 = vunpack.c.l.b16 %v4104
    %v4150 = vunpack.c.l.b16 %v4105
    %v4151 = vunpack.c.l.b16 %v4106
    %v4152 = vunpack.c.l.b16 %v4107
    %v4153 = vunpack.c.l.b16 %v4108
    %v4154 = vunpack.c.l.b16 %v4109
    %v4155 = vunpack.c.l.b16 %v4110
    %v4156 = vunpack.c.l.b16 %v4111
    %v4157 = vunpack.c.l.b16 %v4112
    %v4158 = vunpack.c.l.b16 %v4113
    %v4159 = vunpack.c.l.b16 %v4114
    %v4160 = vunpack.c.l.b16 %v4115
    %v4161 = vunpack.c.l.b16 %v4116
    %v4162 = vunpack.c.l.b16 %v4117
    %v4163 = vunpack.c.l.b16 %v4118
    %v4164 = vunpack.c.l.b16 %v4119
    %v4165 = vunpack.c.l.b16 %v4120
    %v4166 = vpack.c.b16 %v4147, %v4146
    %v4167 = vpack.c.b16 %v4149, %v4148
    %v4168 = vpack.c.b16 %v4151, %v4150
    %v4169 = vpack.c.b16 %v4153, %v4152
    %v4170 = vpack.c.b16 %v4155, %v4154
    %v4171 = vpack.c.b16 %v4157, %v4156
    %v4172 = vpack.c.b16 %v4159, %v4158
    %v4173 = vpack.c.b16 %v4161, %v4160
    %v4174 = vpack.c.b16 %v4163, %v4162
    %v4175 = vpack.c.b16 %v4165, %v4164
    %v4187 = vsel %vm1191, %v4124, 0
    %4189 = vmatprep.subr.bf16.mxu0 0
    %4190 = vmatpush1.bf16.msra.mxu0 %v4166
    %4191 = vmatprep.subr.bf16.mxu0 0
    %4192 = vmatpush1.bf16.msra.mxu0 %v4167
    %4193 = vmatprep.subr.bf16.mxu0 0
    %4194 = vmatpush1.bf16.msra.mxu0 %v4168
    %4195 = vmatprep.subr.bf16.mxu0 0
    %4196 = vmatpush1.bf16.msra.mxu0 %v4169
    %4197 = vmatprep.subr.bf16.mxu0 0
    %4198 = vmatpush1.bf16.msra.mxu0 %v4170
    %4199 = vmatprep.subr.bf16.mxu0 0
    %4200 = vmatpush1.bf16.msra.mxu0 %v4171
    %4201 = vmatprep.subr.bf16.mxu0 0
    %4202 = vmatpush1.bf16.msra.mxu0 %v4172
    %4203 = vmatprep.subr.bf16.mxu0 0
    %4204 = vmatpush1.bf16.msra.mxu0 %v4173
    %4205 = vmatprep.subr.bf16.mxu0 0
    %4206 = vmatpush1.bf16.msra.mxu0 %v4174
    %4207 = vmatprep.subr.bf16.mxu0 0
    %4208 = vmatpush1.bf16.msra.mxu0 %v4175
    %4209 = vmatprep.subr.bf16.mxu0 0
    %4210 = vmatpush1.bf16.msra.mxu0 0
    %4211 = vmatprep.subr.bf16.mxu0 0
    %4212 = vmatpush1.bf16.msra.mxu0 0
    %4213 = vmatprep.subr.bf16.mxu0 0
    %4214 = vmatpush1.bf16.msra.mxu0 0
    %4215 = vmatprep.subr.bf16.mxu0 0
    %4216 = vmatpush1.bf16.msra.mxu0 0
    %4217 = vmatprep.subr.bf16.mxu0 0
    %4218 = vmatpush1.bf16.msra.mxu0 0
    %4219 = vmatprep.subr.bf16.mxu0 0
    %4220 = vmatpush1.bf16.msra.mxu0 0
    %4221 = vmatprep.mubr.bf16.mxu0 %v4187
    %4222 = vmatmul.mubr.bf16.gmra.mrb[0].mxu0 %v4123
    %v4223 = vpop.f32.mrb[0].mxu0
    %v4224 = vadd.f32 0.0, %v4223
    %v4225 = vpop.f32.mrb[0].mxu0
    %v4226 = vpop.f32.mrb[0].mxu0
    %v4227 = vpop.f32.mrb[0].mxu0
    %4228 = vdwg.mxu0
    %s4229 = scalar_lea.vmem [#allocation2], 160
    %v4230 = vld [vmem:[%s4229] sm:$0xf]
    %v4231 = vld [vmem:[%s4229 + $0x4] sm:$0xf]
    %v4232 = vld [vmem:[%s4229 + $0x8] sm:$0xf]
    %v4233 = vld [vmem:[%s4229 + $0xc] sm:$0xf]
    %v4234 = vld [vmem:[%s4229 + $0x10] sm:$0xf]
    %v4235 = vld [vmem:[%s4229 + $0x14] sm:$0xf]
    %v4236 = vld [vmem:[%s4229 + $0x18] sm:$0xf]
    %v4237 = vld [vmem:[%s4229 + $0x1c] sm:$0xf]
    %v4238 = vld [vmem:[%s4229 + $0x20] sm:$0xf]
    %v4239 = vld [vmem:[%s4229 + $0x24] sm:$0xf]
    %v4240 = vld [vmem:[%s4229 + $0x28] sm:$0xf]
    %v4241 = vld [vmem:[%s4229 + $0x2c] sm:$0xf]
    %v4242 = vld [vmem:[%s4229 + $0x30] sm:$0xf]
    %v4243 = vld [vmem:[%s4229 + $0x34] sm:$0xf]
    %v4244 = vld [vmem:[%s4229 + $0x38] sm:$0xf]
    %v4245 = vld [vmem:[%s4229 + $0x3c] sm:$0xf]
    %v4246 = vld [vmem:[%s4229 + $0x40] sm:$0xf]
    %v4247 = vld [vmem:[%s4229 + $0x44] sm:$0xf]
    %v4248 = vld [vmem:[%s4229 + $0x48] sm:$0xf]
    %v4249 = vld [vmem:[%s4229 + $0x4c] sm:$0xf]
    %s4250 = scalar_lea.vmem [#allocation2], 240
    %v4251 = vld [vmem:[%s4250] sm:$0xf]
    %v4252 = vld [vmem:[%s4250 + $0x4] sm:$0xf]
    %v4253 = vld [vmem:[%s4250 + $0x8] sm:$0xf]
    %v4254 = vld [vmem:[%s4250 + $0xc] sm:$0xf]
    %v4255 = vld [vmem:[%s4250 + $0x10] sm:$0xf]
    %v4256 = vld [vmem:[%s4250 + $0x14] sm:$0xf]
    %v4257 = vld [vmem:[%s4250 + $0x18] sm:$0xf]
    %v4258 = vld [vmem:[%s4250 + $0x1c] sm:$0xf]
    %v4259 = vld [vmem:[%s4250 + $0x20] sm:$0xf]
    %v4260 = vld [vmem:[%s4250 + $0x24] sm:$0xf]
    %v4261 = vld [vmem:[%s4250 + $0x28] sm:$0xf]
    %v4262 = vld [vmem:[%s4250 + $0x2c] sm:$0xf]
    %v4263 = vld [vmem:[%s4250 + $0x30] sm:$0xf]
    %v4264 = vld [vmem:[%s4250 + $0x34] sm:$0xf]
    %v4265 = vld [vmem:[%s4250 + $0x38] sm:$0xf]
    %v4266 = vld [vmem:[%s4250 + $0x3c] sm:$0xf]
    %v4267 = vld [vmem:[%s4250 + $0x40] sm:$0xf]
    %v4268 = vld [vmem:[%s4250 + $0x44] sm:$0xf]
    %v4269 = vld [vmem:[%s4250 + $0x48] sm:$0xf]
    %v4270 = vld [vmem:[%s4250 + $0x4c] sm:$0xf]
    %v4271 = vrot.slane %v4078, 3
    %v4272 = vrot.slane %v4079, 3
    %v4294 = vunpack.c.l.b16 %v4251
    %v4295 = vunpack.c.l.b16 %v4252
    %v4296 = vunpack.c.l.b16 %v4253
    %v4297 = vunpack.c.l.b16 %v4254
    %v4298 = vunpack.c.l.b16 %v4255
    %v4299 = vunpack.c.l.b16 %v4256
    %v4300 = vunpack.c.l.b16 %v4257
    %v4301 = vunpack.c.l.b16 %v4258
    %v4302 = vunpack.c.l.b16 %v4259
    %v4303 = vunpack.c.l.b16 %v4260
    %v4304 = vunpack.c.l.b16 %v4261
    %v4305 = vunpack.c.l.b16 %v4262
    %v4306 = vunpack.c.l.b16 %v4263
    %v4307 = vunpack.c.l.b16 %v4264
    %v4308 = vunpack.c.l.b16 %v4265
    %v4309 = vunpack.c.l.b16 %v4266
    %v4310 = vunpack.c.l.b16 %v4267
    %v4311 = vunpack.c.l.b16 %v4268
    %v4312 = vunpack.c.l.b16 %v4269
    %v4313 = vunpack.c.l.b16 %v4270
    %v4314 = vpack.c.b16 %v4295, %v4294
    %v4315 = vpack.c.b16 %v4297, %v4296
    %v4316 = vpack.c.b16 %v4299, %v4298
    %v4317 = vpack.c.b16 %v4301, %v4300
    %v4318 = vpack.c.b16 %v4303, %v4302
    %v4319 = vpack.c.b16 %v4305, %v4304
    %v4320 = vpack.c.b16 %v4307, %v4306
    %v4321 = vpack.c.b16 %v4309, %v4308
    %v4322 = vpack.c.b16 %v4311, %v4310
    %v4323 = vpack.c.b16 %v4313, %v4312
    %v4335 = vsel %vm1191, %v4272, 0
    %4337 = vmatprep.subr.bf16.mxu0 0
    %4338 = vmatpush1.bf16.msra.mxu0 %v4314
    %4339 = vmatprep.subr.bf16.mxu0 0
    %4340 = vmatpush1.bf16.msra.mxu0 %v4315
    %4341 = vmatprep.subr.bf16.mxu0 0
    %4342 = vmatpush1.bf16.msra.mxu0 %v4316
    %4343 = vmatprep.subr.bf16.mxu0 0
    %4344 = vmatpush1.bf16.msra.mxu0 %v4317
    %4345 = vmatprep.subr.bf16.mxu0 0
    %4346 = vmatpush1.bf16.msra.mxu0 %v4318
    %4347 = vmatprep.subr.bf16.mxu0 0
    %4348 = vmatpush1.bf16.msra.mxu0 %v4319
    %4349 = vmatprep.subr.bf16.mxu0 0
    %4350 = vmatpush1.bf16.msra.mxu0 %v4320
    %4351 = vmatprep.subr.bf16.mxu0 0
    %4352 = vmatpush1.bf16.msra.mxu0 %v4321
    %4353 = vmatprep.subr.bf16.mxu0 0
    %4354 = vmatpush1.bf16.msra.mxu0 %v4322
    %4355 = vmatprep.subr.bf16.mxu0 0
    %4356 = vmatpush1.bf16.msra.mxu0 %v4323
    %4357 = vmatprep.subr.bf16.mxu0 0
    %4358 = vmatpush1.bf16.msra.mxu0 0
    %4359 = vmatprep.subr.bf16.mxu0 0
    %4360 = vmatpush1.bf16.msra.mxu0 0
    %4361 = vmatprep.subr.bf16.mxu0 0
    %4362 = vmatpush1.bf16.msra.mxu0 0
    %4363 = vmatprep.subr.bf16.mxu0 0
    %4364 = vmatpush1.bf16.msra.mxu0 0
    %4365 = vmatprep.subr.bf16.mxu0 0
    %4366 = vmatpush1.bf16.msra.mxu0 0
    %4367 = vmatprep.subr.bf16.mxu0 0
    %4368 = vmatpush1.bf16.msra.mxu0 0
    %4369 = vmatprep.mubr.bf16.mxu0 %v4335
    %4370 = vmatmul.mubr.bf16.gmra.mrb[0].mxu0 %v4271
    %v4371 = vpop.f32.mrb[0].mxu0
    %v4372 = vadd.f32 0.0, %v4371
    %v4373 = vpop.f32.mrb[0].mxu0
    %v4374 = vpop.f32.mrb[0].mxu0
    %v4375 = vpop.f32.mrb[0].mxu0
    %4376 = vdwg.mxu0
    %v4377 = vpack.c.bf16 %v4074, %v4074
    %v4378 = vpack.c.bf16 %v4075, %v4075
    %s4379 = scalar_lea.vmem [#allocation2], 320
    %v4380 = vld [vmem:[%s4379] sm:$0xf]
    %v4381 = vld [vmem:[%s4379 + $0x4] sm:$0xf]
    %v4382 = vld [vmem:[%s4379 + $0x8] sm:$0xf]
    %v4383 = vld [vmem:[%s4379 + $0xc] sm:$0xf]
    %v4384 = vld [vmem:[%s4379 + $0x10] sm:$0xf]
    %v4385 = vld [vmem:[%s4379 + $0x14] sm:$0xf]
    %v4386 = vld [vmem:[%s4379 + $0x18] sm:$0xf]
    %v4387 = vld [vmem:[%s4379 + $0x1c] sm:$0xf]
    %v4388 = vld [vmem:[%s4379 + $0x20] sm:$0xf]
    %v4389 = vld [vmem:[%s4379 + $0x24] sm:$0xf]
    %v4390 = vld [vmem:[%s4379 + $0x28] sm:$0xf]
    %v4391 = vld [vmem:[%s4379 + $0x2c] sm:$0xf]
    %v4392 = vld [vmem:[%s4379 + $0x30] sm:$0xf]
    %v4393 = vld [vmem:[%s4379 + $0x34] sm:$0xf]
    %v4394 = vld [vmem:[%s4379 + $0x38] sm:$0xf]
    %v4395 = vld [vmem:[%s4379 + $0x3c] sm:$0xf]
    %v4396 = vld [vmem:[%s4379 + $0x40] sm:$0xf]
    %v4397 = vld [vmem:[%s4379 + $0x44] sm:$0xf]
    %v4398 = vld [vmem:[%s4379 + $0x48] sm:$0xf]
    %v4399 = vld [vmem:[%s4379 + $0x4c] sm:$0xf]
    %s4400 = scalar_lea.vmem [#allocation2], 400
    %v4401 = vld [vmem:[%s4400] sm:$0xf]
    %v4402 = vld [vmem:[%s4400 + $0x4] sm:$0xf]
    %v4403 = vld [vmem:[%s4400 + $0x8] sm:$0xf]
    %v4404 = vld [vmem:[%s4400 + $0xc] sm:$0xf]
    %v4405 = vld [vmem:[%s4400 + $0x10] sm:$0xf]
    %v4406 = vld [vmem:[%s4400 + $0x14] sm:$0xf]
    %v4407 = vld [vmem:[%s4400 + $0x18] sm:$0xf]
    %v4408 = vld [vmem:[%s4400 + $0x1c] sm:$0xf]
    %v4409 = vld [vmem:[%s4400 + $0x20] sm:$0xf]
    %v4410 = vld [vmem:[%s4400 + $0x24] sm:$0xf]
    %v4411 = vld [vmem:[%s4400 + $0x28] sm:$0xf]
    %v4412 = vld [vmem:[%s4400 + $0x2c] sm:$0xf]
    %v4413 = vld [vmem:[%s4400 + $0x30] sm:$0xf]
    %v4414 = vld [vmem:[%s4400 + $0x34] sm:$0xf]
    %v4415 = vld [vmem:[%s4400 + $0x38] sm:$0xf]
    %v4416 = vld [vmem:[%s4400 + $0x3c] sm:$0xf]
    %v4417 = vld [vmem:[%s4400 + $0x40] sm:$0xf]
    %v4418 = vld [vmem:[%s4400 + $0x44] sm:$0xf]
    %v4419 = vld [vmem:[%s4400 + $0x48] sm:$0xf]
    %v4420 = vld [vmem:[%s4400 + $0x4c] sm:$0xf]
    %v4423 = vrot.slane %v4377, 1
    %v4424 = vrot.slane %v4378, 1
    %v4446 = vunpack.c.l.b16 %v4401
    %v4447 = vunpack.c.l.b16 %v4402
    %v4448 = vunpack.c.l.b16 %v4403
    %v4449 = vunpack.c.l.b16 %v4404
    %v4450 = vunpack.c.l.b16 %v4405
    %v4451 = vunpack.c.l.b16 %v4406
    %v4452 = vunpack.c.l.b16 %v4407
    %v4453 = vunpack.c.l.b16 %v4408
    %v4454 = vunpack.c.l.b16 %v4409
    %v4455 = vunpack.c.l.b16 %v4410
    %v4456 = vunpack.c.l.b16 %v4411
    %v4457 = vunpack.c.l.b16 %v4412
    %v4458 = vunpack.c.l.b16 %v4413
    %v4459 = vunpack.c.l.b16 %v4414
    %v4460 = vunpack.c.l.b16 %v4415
    %v4461 = vunpack.c.l.b16 %v4416
    %v4462 = vunpack.c.l.b16 %v4417
    %v4463 = vunpack.c.l.b16 %v4418
    %v4464 = vunpack.c.l.b16 %v4419
    %v4465 = vunpack.c.l.b16 %v4420
    %v4466 = vpack.c.b16 %v4447, %v4446
    %v4467 = vpack.c.b16 %v4449, %v4448
    %v4468 = vpack.c.b16 %v4451, %v4450
    %v4469 = vpack.c.b16 %v4453, %v4452
    %v4470 = vpack.c.b16 %v4455, %v4454
    %v4471 = vpack.c.b16 %v4457, %v4456
    %v4472 = vpack.c.b16 %v4459, %v4458
    %v4473 = vpack.c.b16 %v4461, %v4460
    %v4474 = vpack.c.b16 %v4463, %v4462
    %v4475 = vpack.c.b16 %v4465, %v4464
    %v4487 = vsel %vm1191, %v4424, 0
    %4489 = vmatprep.subr.bf16.mxu0 0
    %4490 = vmatpush1.bf16.msra.mxu0 %v4466
    %4491 = vmatprep.subr.bf16.mxu0 0
    %4492 = vmatpush1.bf16.msra.mxu0 %v4467
    %4493 = vmatprep.subr.bf16.mxu0 0
    %4494 = vmatpush1.bf16.msra.mxu0 %v4468
    %4495 = vmatprep.subr.bf16.mxu0 0
    %4496 = vmatpush1.bf16.msra.mxu0 %v4469
    %4497 = vmatprep.subr.bf16.mxu0 0
    %4498 = vmatpush1.bf16.msra.mxu0 %v4470
    %4499 = vmatprep.subr.bf16.mxu0 0
    %4500 = vmatpush1.bf16.msra.mxu0 %v4471
    %4501 = vmatprep.subr.bf16.mxu0 0
    %4502 = vmatpush1.bf16.msra.mxu0 %v4472
    %4503 = vmatprep.subr.bf16.mxu0 0
    %4504 = vmatpush1.bf16.msra.mxu0 %v4473
    %4505 = vmatprep.subr.bf16.mxu0 0
    %4506 = vmatpush1.bf16.msra.mxu0 %v4474
    %4507 = vmatprep.subr.bf16.mxu0 0
    %4508 = vmatpush1.bf16.msra.mxu0 %v4475
    %4509 = vmatprep.subr.bf16.mxu0 0
    %4510 = vmatpush1.bf16.msra.mxu0 0
    %4511 = vmatprep.subr.bf16.mxu0 0
    %4512 = vmatpush1.bf16.msra.mxu0 0
    %4513 = vmatprep.subr.bf16.mxu0 0
    %4514 = vmatpush1.bf16.msra.mxu0 0
    %4515 = vmatprep.subr.bf16.mxu0 0
    %4516 = vmatpush1.bf16.msra.mxu0 0
    %4517 = vmatprep.subr.bf16.mxu0 0
    %4518 = vmatpush1.bf16.msra.mxu0 0
    %4519 = vmatprep.subr.bf16.mxu0 0
    %4520 = vmatpush1.bf16.msra.mxu0 0
    %4521 = vmatprep.mubr.bf16.mxu0 %v4487
    %4522 = vmatmul.mubr.bf16.gmra.mrb[0].mxu0 %v4423
    %v4523 = vpop.f32.mrb[0].mxu0
    %v4524 = vadd.f32 0.0, %v4523
    %v4525 = vpop.f32.mrb[0].mxu0
    %v4526 = vpop.f32.mrb[0].mxu0
    %v4527 = vpop.f32.mrb[0].mxu0
    %4528 = vdwg.mxu0
    %s4529 = scalar_lea.vmem [#allocation2], 480
    %v4530 = vld [vmem:[%s4529] sm:$0xf]
    %v4531 = vld [vmem:[%s4529 + $0x4] sm:$0xf]
    %v4532 = vld [vmem:[%s4529 + $0x8] sm:$0xf]
    %v4533 = vld [vmem:[%s4529 + $0xc] sm:$0xf]
    %v4534 = vld [vmem:[%s4529 + $0x10] sm:$0xf]
    %v4535 = vld [vmem:[%s4529 + $0x14] sm:$0xf]
    %v4536 = vld [vmem:[%s4529 + $0x18] sm:$0xf]
    %v4537 = vld [vmem:[%s4529 + $0x1c] sm:$0xf]
    %v4538 = vld [vmem:[%s4529 + $0x20] sm:$0xf]
    %v4539 = vld [vmem:[%s4529 + $0x24] sm:$0xf]
    %v4540 = vld [vmem:[%s4529 + $0x28] sm:$0xf]
    %v4541 = vld [vmem:[%s4529 + $0x2c] sm:$0xf]
    %v4542 = vld [vmem:[%s4529 + $0x30] sm:$0xf]
    %v4543 = vld [vmem:[%s4529 + $0x34] sm:$0xf]
    %v4544 = vld [vmem:[%s4529 + $0x38] sm:$0xf]
    %v4545 = vld [vmem:[%s4529 + $0x3c] sm:$0xf]
    %v4546 = vld [vmem:[%s4529 + $0x40] sm:$0xf]
    %v4547 = vld [vmem:[%s4529 + $0x44] sm:$0xf]
    %v4548 = vld [vmem:[%s4529 + $0x48] sm:$0xf]
    %v4549 = vld [vmem:[%s4529 + $0x4c] sm:$0xf]
    %s4550 = scalar_lea.vmem [#allocation2], 560
    %v4551 = vld [vmem:[%s4550] sm:$0xf]
    %v4552 = vld [vmem:[%s4550 + $0x4] sm:$0xf]
    %v4553 = vld [vmem:[%s4550 + $0x8] sm:$0xf]
    %v4554 = vld [vmem:[%s4550 + $0xc] sm:$0xf]
    %v4555 = vld [vmem:[%s4550 + $0x10] sm:$0xf]
    %v4556 = vld [vmem:[%s4550 + $0x14] sm:$0xf]
    %v4557 = vld [vmem:[%s4550 + $0x18] sm:$0xf]
    %v4558 = vld [vmem:[%s4550 + $0x1c] sm:$0xf]
    %v4559 = vld [vmem:[%s4550 + $0x20] sm:$0xf]
    %v4560 = vld [vmem:[%s4550 + $0x24] sm:$0xf]
    %v4561 = vld [vmem:[%s4550 + $0x28] sm:$0xf]
    %v4562 = vld [vmem:[%s4550 + $0x2c] sm:$0xf]
    %v4563 = vld [vmem:[%s4550 + $0x30] sm:$0xf]
    %v4564 = vld [vmem:[%s4550 + $0x34] sm:$0xf]
    %v4565 = vld [vmem:[%s4550 + $0x38] sm:$0xf]
    %v4566 = vld [vmem:[%s4550 + $0x3c] sm:$0xf]
    %v4567 = vld [vmem:[%s4550 + $0x40] sm:$0xf]
    %v4568 = vld [vmem:[%s4550 + $0x44] sm:$0xf]
    %v4569 = vld [vmem:[%s4550 + $0x48] sm:$0xf]
    %v4570 = vld [vmem:[%s4550 + $0x4c] sm:$0xf]
    %v4571 = vrot.slane %v4377, 3
    %v4572 = vrot.slane %v4378, 3
    %v4594 = vunpack.c.l.b16 %v4551
    %v4595 = vunpack.c.l.b16 %v4552
    %v4596 = vunpack.c.l.b16 %v4553
    %v4597 = vunpack.c.l.b16 %v4554
    %v4598 = vunpack.c.l.b16 %v4555
    %v4599 = vunpack.c.l.b16 %v4556
    %v4600 = vunpack.c.l.b16 %v4557
    %v4601 = vunpack.c.l.b16 %v4558
    %v4602 = vunpack.c.l.b16 %v4559
    %v4603 = vunpack.c.l.b16 %v4560
    %v4604 = vunpack.c.l.b16 %v4561
    %v4605 = vunpack.c.l.b16 %v4562
    %v4606 = vunpack.c.l.b16 %v4563
    %v4607 = vunpack.c.l.b16 %v4564
    %v4608 = vunpack.c.l.b16 %v4565
    %v4609 = vunpack.c.l.b16 %v4566
    %v4610 = vunpack.c.l.b16 %v4567
    %v4611 = vunpack.c.l.b16 %v4568
    %v4612 = vunpack.c.l.b16 %v4569
    %v4613 = vunpack.c.l.b16 %v4570
    %v4614 = vpack.c.b16 %v4595, %v4594
    %v4615 = vpack.c.b16 %v4597, %v4596
    %v4616 = vpack.c.b16 %v4599, %v4598
    %v4617 = vpack.c.b16 %v4601, %v4600
    %v4618 = vpack.c.b16 %v4603, %v4602
    %v4619 = vpack.c.b16 %v4605, %v4604
    %v4620 = vpack.c.b16 %v4607, %v4606
    %v4621 = vpack.c.b16 %v4609, %v4608
    %v4622 = vpack.c.b16 %v4611, %v4610
    %v4623 = vpack.c.b16 %v4613, %v4612
    %v4635 = vsel %vm1191, %v4572, 0
    %4637 = vmatprep.subr.bf16.mxu0 0
    %4638 = vmatpush1.bf16.msra.mxu0 %v4614
    %4639 = vmatprep.subr.bf16.mxu0 0
    %4640 = vmatpush1.bf16.msra.mxu0 %v4615
    %4641 = vmatprep.subr.bf16.mxu0 0
    %4642 = vmatpush1.bf16.msra.mxu0 %v4616
    %4643 = vmatprep.subr.bf16.mxu0 0
    %4644 = vmatpush1.bf16.msra.mxu0 %v4617
    %4645 = vmatprep.subr.bf16.mxu0 0
    %4646 = vmatpush1.bf16.msra.mxu0 %v4618
    %4647 = vmatprep.subr.bf16.mxu0 0
    %4648 = vmatpush1.bf16.msra.mxu0 %v4619
    %4649 = vmatprep.subr.bf16.mxu0 0
    %4650 = vmatpush1.bf16.msra.mxu0 %v4620
    %4651 = vmatprep.subr.bf16.mxu0 0
    %4652 = vmatpush1.bf16.msra.mxu0 %v4621
    %4653 = vmatprep.subr.bf16.mxu0 0
    %4654 = vmatpush1.bf16.msra.mxu0 %v4622
    %4655 = vmatprep.subr.bf16.mxu0 0
    %4656 = vmatpush1.bf16.msra.mxu0 %v4623
    %4657 = vmatprep.subr.bf16.mxu0 0
    %4658 = vmatpush1.bf16.msra.mxu0 0
    %4659 = vmatprep.subr.bf16.mxu0 0
    %4660 = vmatpush1.bf16.msra.mxu0 0
    %4661 = vmatprep.subr.bf16.mxu0 0
    %4662 = vmatpush1.bf16.msra.mxu0 0
    %4663 = vmatprep.subr.bf16.mxu0 0
    %4664 = vmatpush1.bf16.msra.mxu0 0
    %4665 = vmatprep.subr.bf16.mxu0 0
    %4666 = vmatpush1.bf16.msra.mxu0 0
    %4667 = vmatprep.subr.bf16.mxu0 0
    %4668 = vmatpush1.bf16.msra.mxu0 0
    %4669 = vmatprep.mubr.bf16.mxu0 %v4635
    %4670 = vmatmul.mubr.bf16.gmra.mrb[0].mxu0 %v4571
    %v4671 = vpop.f32.mrb[0].mxu0
    %v4672 = vadd.f32 0.0, %v4671
    %v4673 = vpop.f32.mrb[0].mxu0
    %v4674 = vpop.f32.mrb[0].mxu0
    %v4675 = vpop.f32.mrb[0].mxu0
    %4676 = vdwg.mxu0
    %v4677 = vpack.c.bf16 %v4076, %v4076
    %v4678 = vpack.c.bf16 %v4077, %v4077
    %s4679 = scalar_lea.vmem [#allocation2], 640
    %v4680 = vld [vmem:[%s4679] sm:$0xf]
    %v4681 = vld [vmem:[%s4679 + $0x4] sm:$0xf]
    %v4682 = vld [vmem:[%s4679 + $0x8] sm:$0xf]
    %v4683 = vld [vmem:[%s4679 + $0xc] sm:$0xf]
    %v4684 = vld [vmem:[%s4679 + $0x10] sm:$0xf]
    %v4685 = vld [vmem:[%s4679 + $0x14] sm:$0xf]
    %v4686 = vld [vmem:[%s4679 + $0x18] sm:$0xf]
    %v4687 = vld [vmem:[%s4679 + $0x1c] sm:$0xf]
    %v4688 = vld [vmem:[%s4679 + $0x20] sm:$0xf]
    %v4689 = vld [vmem:[%s4679 + $0x24] sm:$0xf]
    %v4690 = vld [vmem:[%s4679 + $0x28] sm:$0xf]
    %v4691 = vld [vmem:[%s4679 + $0x2c] sm:$0xf]
    %v4692 = vld [vmem:[%s4679 + $0x30] sm:$0xf]
    %v4693 = vld [vmem:[%s4679 + $0x34] sm:$0xf]
    %v4694 = vld [vmem:[%s4679 + $0x38] sm:$0xf]
    %v4695 = vld [vmem:[%s4679 + $0x3c] sm:$0xf]
    %v4696 = vld [vmem:[%s4679 + $0x40] sm:$0xf]
    %v4697 = vld [vmem:[%s4679 + $0x44] sm:$0xf]
    %v4698 = vld [vmem:[%s4679 + $0x48] sm:$0xf]
    %v4699 = vld [vmem:[%s4679 + $0x4c] sm:$0xf]
    %v4720 = vunpack.c.l.b16 %v4680
    %v4721 = vunpack.c.l.b16 %v4681
    %v4722 = vunpack.c.l.b16 %v4682
    %v4723 = vunpack.c.l.b16 %v4683
    %v4724 = vunpack.c.l.b16 %v4684
    %v4725 = vunpack.c.l.b16 %v4685
    %v4726 = vunpack.c.l.b16 %v4686
    %v4727 = vunpack.c.l.b16 %v4687
    %v4728 = vunpack.c.l.b16 %v4688
    %v4729 = vunpack.c.l.b16 %v4689
    %v4730 = vunpack.c.l.b16 %v4690
    %v4731 = vunpack.c.l.b16 %v4691
    %v4732 = vunpack.c.l.b16 %v4692
    %v4733 = vunpack.c.l.b16 %v4693
    %v4734 = vunpack.c.l.b16 %v4694
    %v4735 = vunpack.c.l.b16 %v4695
    %v4736 = vunpack.c.l.b16 %v4696
    %v4737 = vunpack.c.l.b16 %v4697
    %v4738 = vunpack.c.l.b16 %v4698
    %v4739 = vunpack.c.l.b16 %v4699
    %v4740 = vpack.c.b16 %v4721, %v4720
    %v4741 = vpack.c.b16 %v4723, %v4722
    %v4742 = vpack.c.b16 %v4725, %v4724
    %v4743 = vpack.c.b16 %v4727, %v4726
    %v4744 = vpack.c.b16 %v4729, %v4728
    %v4745 = vpack.c.b16 %v4731, %v4730
    %v4746 = vpack.c.b16 %v4733, %v4732
    %v4747 = vpack.c.b16 %v4735, %v4734
    %v4748 = vpack.c.b16 %v4737, %v4736
    %v4749 = vpack.c.b16 %v4739, %v4738
    %v4761 = vsel %vm1191, %v4678, 0
    %4763 = vmatprep.subr.bf16.mxu0 0
    %4764 = vmatpush1.bf16.msra.mxu0 %v4740
    %4765 = vmatprep.subr.bf16.mxu0 0
    %4766 = vmatpush1.bf16.msra.mxu0 %v4741
    %4767 = vmatprep.subr.bf16.mxu0 0
    %4768 = vmatpush1.bf16.msra.mxu0 %v4742
    %4769 = vmatprep.subr.bf16.mxu0 0
    %4770 = vmatpush1.bf16.msra.mxu0 %v4743
    %4771 = vmatprep.subr.bf16.mxu0 0
    %4772 = vmatpush1.bf16.msra.mxu0 %v4744
    %4773 = vmatprep.subr.bf16.mxu0 0
    %4774 = vmatpush1.bf16.msra.mxu0 %v4745
    %4775 = vmatprep.subr.bf16.mxu0 0
    %4776 = vmatpush1.bf16.msra.mxu0 %v4746
    %4777 = vmatprep.subr.bf16.mxu0 0
    %4778 = vmatpush1.bf16.msra.mxu0 %v4747
    %4779 = vmatprep.subr.bf16.mxu0 0
    %4780 = vmatpush1.bf16.msra.mxu0 %v4748
    %4781 = vmatprep.subr.bf16.mxu0 0
    %4782 = vmatpush1.bf16.msra.mxu0 %v4749
    %4783 = vmatprep.subr.bf16.mxu0 0
    %4784 = vmatpush1.bf16.msra.mxu0 0
    %4785 = vmatprep.subr.bf16.mxu0 0
    %4786 = vmatpush1.bf16.msra.mxu0 0
    %4787 = vmatprep.subr.bf16.mxu0 0
    %4788 = vmatpush1.bf16.msra.mxu0 0
    %4789 = vmatprep.subr.bf16.mxu0 0
    %4790 = vmatpush1.bf16.msra.mxu0 0
    %4791 = vmatprep.subr.bf16.mxu0 0
    %4792 = vmatpush1.bf16.msra.mxu0 0
    %4793 = vmatprep.subr.bf16.mxu0 0
    %4794 = vmatpush1.bf16.msra.mxu0 0
    %4795 = vmatprep.mubr.bf16.mxu0 %v4761
    %4796 = vmatmul.mubr.bf16.gmra.mrb[0].mxu0 %v4677
    %v4797 = vpop.f32.mrb[0].mxu0
    %v4798 = vadd.f32 0.0, %v4797
    %v4799 = vpop.f32.mrb[0].mxu0
    %v4800 = vpop.f32.mrb[0].mxu0
    %v4801 = vpop.f32.mrb[0].mxu0
    %4802 = vdwg.mxu0
    %v4823 = vunpack.c.l.b16 %v4080
    %v4824 = vunpack.c.l.b16 %v4081
    %v4825 = vunpack.c.l.b16 %v4082
    %v4826 = vunpack.c.l.b16 %v4083
    %v4827 = vunpack.c.l.b16 %v4084
    %v4828 = vunpack.c.l.b16 %v4085
    %v4829 = vunpack.c.l.b16 %v4086
    %v4830 = vunpack.c.l.b16 %v4087
    %v4831 = vunpack.c.l.b16 %v4088
    %v4832 = vunpack.c.l.b16 %v4089
    %v4833 = vunpack.c.l.b16 %v4090
    %v4834 = vunpack.c.l.b16 %v4091
    %v4835 = vunpack.c.l.b16 %v4092
    %v4836 = vunpack.c.l.b16 %v4093
    %v4837 = vunpack.c.l.b16 %v4094
    %v4838 = vunpack.c.l.b16 %v4095
    %v4839 = vunpack.c.l.b16 %v4096
    %v4840 = vunpack.c.l.b16 %v4097
    %v4841 = vunpack.c.l.b16 %v4098
    %v4842 = vunpack.c.l.b16 %v4099
    %v4843 = vpack.c.b16 %v4824, %v4823
    %v4844 = vpack.c.b16 %v4826, %v4825
    %v4845 = vpack.c.b16 %v4828, %v4827
    %v4846 = vpack.c.b16 %v4830, %v4829
    %v4847 = vpack.c.b16 %v4832, %v4831
    %v4848 = vpack.c.b16 %v4834, %v4833
    %v4849 = vpack.c.b16 %v4836, %v4835
    %v4850 = vpack.c.b16 %v4838, %v4837
    %v4851 = vpack.c.b16 %v4840, %v4839
    %v4852 = vpack.c.b16 %v4842, %v4841
    %v4864 = vsel %vm1191, %v4079, 0
    %4866 = vmatprep.subr.bf16.mxu0 0
    %4867 = vmatpush1.bf16.msra.mxu0 %v4843
    %4868 = vmatprep.subr.bf16.mxu0 0
    %4869 = vmatpush1.bf16.msra.mxu0 %v4844
    %4870 = vmatprep.subr.bf16.mxu0 0
    %4871 = vmatpush1.bf16.msra.mxu0 %v4845
    %4872 = vmatprep.subr.bf16.mxu0 0
    %4873 = vmatpush1.bf16.msra.mxu0 %v4846
    %4874 = vmatprep.subr.bf16.mxu0 0
    %4875 = vmatpush1.bf16.msra.mxu0 %v4847
    %4876 = vmatprep.subr.bf16.mxu0 0
    %4877 = vmatpush1.bf16.msra.mxu0 %v4848
    %4878 = vmatprep.subr.bf16.mxu0 0
    %4879 = vmatpush1.bf16.msra.mxu0 %v4849
    %4880 = vmatprep.subr.bf16.mxu0 0
    %4881 = vmatpush1.bf16.msra.mxu0 %v4850
    %4882 = vmatprep.subr.bf16.mxu0 0
    %4883 = vmatpush1.bf16.msra.mxu0 %v4851
    %4884 = vmatprep.subr.bf16.mxu0 0
    %4885 = vmatpush1.bf16.msra.mxu0 %v4852
    %4886 = vmatprep.subr.bf16.mxu0 0
    %4887 = vmatpush1.bf16.msra.mxu0 0
    %4888 = vmatprep.subr.bf16.mxu0 0
    %4889 = vmatpush1.bf16.msra.mxu0 0
    %4890 = vmatprep.subr.bf16.mxu0 0
    %4891 = vmatpush1.bf16.msra.mxu0 0
    %4892 = vmatprep.subr.bf16.mxu0 0
    %4893 = vmatpush1.bf16.msra.mxu0 0
    %4894 = vmatprep.subr.bf16.mxu0 0
    %4895 = vmatpush1.bf16.msra.mxu0 0
    %4896 = vmatprep.subr.bf16.mxu0 0
    %4897 = vmatpush1.bf16.msra.mxu0 0
    %4898 = vmatprep.mubr.bf16.mxu0 %v4864
    %4899 = vmatmul.mubr.bf16.gmra.mrb[0].mxu0 %v4078
    %v4900 = vpop.f32.mrb[0].mxu0
    %v4901 = vadd.f32 %v4224, %v4900
    %v4902 = vpop.f32.mrb[0].mxu0
    %v4903 = vpop.f32.mrb[0].mxu0
    %v4904 = vpop.f32.mrb[0].mxu0
    %4905 = vdwg.mxu0
    %v4906 = vrot.slane %v4078, 2
    %v4907 = vrot.slane %v4079, 2
    %v4929 = vunpack.c.l.b16 %v4230
    %v4930 = vunpack.c.l.b16 %v4231
    %v4931 = vunpack.c.l.b16 %v4232
    %v4932 = vunpack.c.l.b16 %v4233
    %v4933 = vunpack.c.l.b16 %v4234
    %v4934 = vunpack.c.l.b16 %v4235
    %v4935 = vunpack.c.l.b16 %v4236
    %v4936 = vunpack.c.l.b16 %v4237
    %v4937 = vunpack.c.l.b16 %v4238
    %v4938 = vunpack.c.l.b16 %v4239
    %v4939 = vunpack.c.l.b16 %v4240
    %v4940 = vunpack.c.l.b16 %v4241
    %v4941 = vunpack.c.l.b16 %v4242
    %v4942 = vunpack.c.l.b16 %v4243
    %v4943 = vunpack.c.l.b16 %v4244
    %v4944 = vunpack.c.l.b16 %v4245
    %v4945 = vunpack.c.l.b16 %v4246
    %v4946 = vunpack.c.l.b16 %v4247
    %v4947 = vunpack.c.l.b16 %v4248
    %v4948 = vunpack.c.l.b16 %v4249
    %v4949 = vpack.c.b16 %v4930, %v4929
    %v4950 = vpack.c.b16 %v4932, %v4931
    %v4951 = vpack.c.b16 %v4934, %v4933
    %v4952 = vpack.c.b16 %v4936, %v4935
    %v4953 = vpack.c.b16 %v4938, %v4937
    %v4954 = vpack.c.b16 %v4940, %v4939
    %v4955 = vpack.c.b16 %v4942, %v4941
    %v4956 = vpack.c.b16 %v4944, %v4943
    %v4957 = vpack.c.b16 %v4946, %v4945
    %v4958 = vpack.c.b16 %v4948, %v4947
    %v4970 = vsel %vm1191, %v4907, 0
    %4972 = vmatprep.subr.bf16.mxu0 0
    %4973 = vmatpush1.bf16.msra.mxu0 %v4949
    %4974 = vmatprep.subr.bf16.mxu0 0
    %4975 = vmatpush1.bf16.msra.mxu0 %v4950
    %4976 = vmatprep.subr.bf16.mxu0 0
    %4977 = vmatpush1.bf16.msra.mxu0 %v4951
    %4978 = vmatprep.subr.bf16.mxu0 0
    %4979 = vmatpush1.bf16.msra.mxu0 %v4952
    %4980 = vmatprep.subr.bf16.mxu0 0
    %4981 = vmatpush1.bf16.msra.mxu0 %v4953
    %4982 = vmatprep.subr.bf16.mxu0 0
    %4983 = vmatpush1.bf16.msra.mxu0 %v4954
    %4984 = vmatprep.subr.bf16.mxu0 0
    %4985 = vmatpush1.bf16.msra.mxu0 %v4955
    %4986 = vmatprep.subr.bf16.mxu0 0
    %4987 = vmatpush1.bf16.msra.mxu0 %v4956
    %4988 = vmatprep.subr.bf16.mxu0 0
    %4989 = vmatpush1.bf16.msra.mxu0 %v4957
    %4990 = vmatprep.subr.bf16.mxu0 0
    %4991 = vmatpush1.bf16.msra.mxu0 %v4958
    %4992 = vmatprep.subr.bf16.mxu0 0
    %4993 = vmatpush1.bf16.msra.mxu0 0
    %4994 = vmatprep.subr.bf16.mxu0 0
    %4995 = vmatpush1.bf16.msra.mxu0 0
    %4996 = vmatprep.subr.bf16.mxu0 0
    %4997 = vmatpush1.bf16.msra.mxu0 0
    %4998 = vmatprep.subr.bf16.mxu0 0
    %4999 = vmatpush1.bf16.msra.mxu0 0
    %5000 = vmatprep.subr.bf16.mxu0 0
    %5001 = vmatpush1.bf16.msra.mxu0 0
    %5002 = vmatprep.subr.bf16.mxu0 0
    %5003 = vmatpush1.bf16.msra.mxu0 0
    %5004 = vmatprep.mubr.bf16.mxu0 %v4970
    %5005 = vmatmul.mubr.bf16.gmra.mrb[0].mxu0 %v4906
    %v5006 = vpop.f32.mrb[0].mxu0
    %v5007 = vadd.f32 %v4372, %v5006
    %v5008 = vpop.f32.mrb[0].mxu0
    %v5009 = vpop.f32.mrb[0].mxu0
    %v5010 = vpop.f32.mrb[0].mxu0
    %5011 = vdwg.mxu0
    %v5012 = vadd.f32 %v4901, %v5007
    %v5033 = vunpack.c.l.b16 %v4380
    %v5034 = vunpack.c.l.b16 %v4381
    %v5035 = vunpack.c.l.b16 %v4382
    %v5036 = vunpack.c.l.b16 %v4383
    %v5037 = vunpack.c.l.b16 %v4384
    %v5038 = vunpack.c.l.b16 %v4385
    %v5039 = vunpack.c.l.b16 %v4386
    %v5040 = vunpack.c.l.b16 %v4387
    %v5041 = vunpack.c.l.b16 %v4388
    %v5042 = vunpack.c.l.b16 %v4389
    %v5043 = vunpack.c.l.b16 %v4390
    %v5044 = vunpack.c.l.b16 %v4391
    %v5045 = vunpack.c.l.b16 %v4392
    %v5046 = vunpack.c.l.b16 %v4393
    %v5047 = vunpack.c.l.b16 %v4394
    %v5048 = vunpack.c.l.b16 %v4395
    %v5049 = vunpack.c.l.b16 %v4396
    %v5050 = vunpack.c.l.b16 %v4397
    %v5051 = vunpack.c.l.b16 %v4398
    %v5052 = vunpack.c.l.b16 %v4399
    %v5053 = vpack.c.b16 %v5034, %v5033
    %v5054 = vpack.c.b16 %v5036, %v5035
    %v5055 = vpack.c.b16 %v5038, %v5037
    %v5056 = vpack.c.b16 %v5040, %v5039
    %v5057 = vpack.c.b16 %v5042, %v5041
    %v5058 = vpack.c.b16 %v5044, %v5043
    %v5059 = vpack.c.b16 %v5046, %v5045
    %v5060 = vpack.c.b16 %v5048, %v5047
    %v5061 = vpack.c.b16 %v5050, %v5049
    %v5062 = vpack.c.b16 %v5052, %v5051
    %v5074 = vsel %vm1191, %v4378, 0
    %5076 = vmatprep.subr.bf16.mxu0 0
    %5077 = vmatpush1.bf16.msra.mxu0 %v5053
    %5078 = vmatprep.subr.bf16.mxu0 0
    %5079 = vmatpush1.bf16.msra.mxu0 %v5054
    %5080 = vmatprep.subr.bf16.mxu0 0
    %5081 = vmatpush1.bf16.msra.mxu0 %v5055
    %5082 = vmatprep.subr.bf16.mxu0 0
    %5083 = vmatpush1.bf16.msra.mxu0 %v5056
    %5084 = vmatprep.subr.bf16.mxu0 0
    %5085 = vmatpush1.bf16.msra.mxu0 %v5057
    %5086 = vmatprep.subr.bf16.mxu0 0
    %5087 = vmatpush1.bf16.msra.mxu0 %v5058
    %5088 = vmatprep.subr.bf16.mxu0 0
    %5089 = vmatpush1.bf16.msra.mxu0 %v5059
    %5090 = vmatprep.subr.bf16.mxu0 0
    %5091 = vmatpush1.bf16.msra.mxu0 %v5060
    %5092 = vmatprep.subr.bf16.mxu0 0
    %5093 = vmatpush1.bf16.msra.mxu0 %v5061
    %5094 = vmatprep.subr.bf16.mxu0 0
    %5095 = vmatpush1.bf16.msra.mxu0 %v5062
    %5096 = vmatprep.subr.bf16.mxu0 0
    %5097 = vmatpush1.bf16.msra.mxu0 0
    %5098 = vmatprep.subr.bf16.mxu0 0
    %5099 = vmatpush1.bf16.msra.mxu0 0
    %5100 = vmatprep.subr.bf16.mxu0 0
    %5101 = vmatpush1.bf16.msra.mxu0 0
    %5102 = vmatprep.subr.bf16.mxu0 0
    %5103 = vmatpush1.bf16.msra.mxu0 0
    %5104 = vmatprep.subr.bf16.mxu0 0
    %5105 = vmatpush1.bf16.msra.mxu0 0
    %5106 = vmatprep.subr.bf16.mxu0 0
    %5107 = vmatpush1.bf16.msra.mxu0 0
    %5108 = vmatprep.mubr.bf16.mxu0 %v5074
    %5109 = vmatmul.mubr.bf16.gmra.mrb[0].mxu0 %v4377
    %v5110 = vpop.f32.mrb[0].mxu0
    %v5111 = vadd.f32 %v4524, %v5110
    %v5112 = vpop.f32.mrb[0].mxu0
    %v5113 = vpop.f32.mrb[0].mxu0
    %v5114 = vpop.f32.mrb[0].mxu0
    %5115 = vdwg.mxu0
    %v5116 = vrot.slane %v4377, 2
    %v5117 = vrot.slane %v4378, 2
    %v5139 = vunpack.c.l.b16 %v4530
    %v5140 = vunpack.c.l.b16 %v4531
    %v5141 = vunpack.c.l.b16 %v4532
    %v5142 = vunpack.c.l.b16 %v4533
    %v5143 = vunpack.c.l.b16 %v4534
    %v5144 = vunpack.c.l.b16 %v4535
    %v5145 = vunpack.c.l.b16 %v4536
    %v5146 = vunpack.c.l.b16 %v4537
    %v5147 = vunpack.c.l.b16 %v4538
    %v5148 = vunpack.c.l.b16 %v4539
    %v5149 = vunpack.c.l.b16 %v4540
    %v5150 = vunpack.c.l.b16 %v4541
    %v5151 = vunpack.c.l.b16 %v4542
    %v5152 = vunpack.c.l.b16 %v4543
    %v5153 = vunpack.c.l.b16 %v4544
    %v5154 = vunpack.c.l.b16 %v4545
    %v5155 = vunpack.c.l.b16 %v4546
    %v5156 = vunpack.c.l.b16 %v4547
    %v5157 = vunpack.c.l.b16 %v4548
    %v5158 = vunpack.c.l.b16 %v4549
    %v5159 = vpack.c.b16 %v5140, %v5139
    %v5160 = vpack.c.b16 %v5142, %v5141
    %v5161 = vpack.c.b16 %v5144, %v5143
    %v5162 = vpack.c.b16 %v5146, %v5145
    %v5163 = vpack.c.b16 %v5148, %v5147
    %v5164 = vpack.c.b16 %v5150, %v5149
    %v5165 = vpack.c.b16 %v5152, %v5151
    %v5166 = vpack.c.b16 %v5154, %v5153
    %v5167 = vpack.c.b16 %v5156, %v5155
    %v5168 = vpack.c.b16 %v5158, %v5157
    %v5180 = vsel %vm1191, %v5117, 0
    %5182 = vmatprep.subr.bf16.mxu0 0
    %5183 = vmatpush1.bf16.msra.mxu0 %v5159
    %5184 = vmatprep.subr.bf16.mxu0 0
    %5185 = vmatpush1.bf16.msra.mxu0 %v5160
    %5186 = vmatprep.subr.bf16.mxu0 0
    %5187 = vmatpush1.bf16.msra.mxu0 %v5161
    %5188 = vmatprep.subr.bf16.mxu0 0
    %5189 = vmatpush1.bf16.msra.mxu0 %v5162
    %5190 = vmatprep.subr.bf16.mxu0 0
    %5191 = vmatpush1.bf16.msra.mxu0 %v5163
    %5192 = vmatprep.subr.bf16.mxu0 0
    %5193 = vmatpush1.bf16.msra.mxu0 %v5164
    %5194 = vmatprep.subr.bf16.mxu0 0
    %5195 = vmatpush1.bf16.msra.mxu0 %v5165
    %5196 = vmatprep.subr.bf16.mxu0 0
    %5197 = vmatpush1.bf16.msra.mxu0 %v5166
    %5198 = vmatprep.subr.bf16.mxu0 0
    %5199 = vmatpush1.bf16.msra.mxu0 %v5167
    %5200 = vmatprep.subr.bf16.mxu0 0
    %5201 = vmatpush1.bf16.msra.mxu0 %v5168
    %5202 = vmatprep.subr.bf16.mxu0 0
    %5203 = vmatpush1.bf16.msra.mxu0 0
    %5204 = vmatprep.subr.bf16.mxu0 0
    %5205 = vmatpush1.bf16.msra.mxu0 0
    %5206 = vmatprep.subr.bf16.mxu0 0
    %5207 = vmatpush1.bf16.msra.mxu0 0
    %5208 = vmatprep.subr.bf16.mxu0 0
    %5209 = vmatpush1.bf16.msra.mxu0 0
    %5210 = vmatprep.subr.bf16.mxu0 0
    %5211 = vmatpush1.bf16.msra.mxu0 0
    %5212 = vmatprep.subr.bf16.mxu0 0
    %5213 = vmatpush1.bf16.msra.mxu0 0
    %5214 = vmatprep.mubr.bf16.mxu0 %v5180
    %5215 = vmatmul.mubr.bf16.gmra.mrb[0].mxu0 %v5116
    %v5216 = vpop.f32.mrb[0].mxu0
    %v5217 = vadd.f32 %v4672, %v5216
    %v5218 = vpop.f32.mrb[0].mxu0
    %v5219 = vpop.f32.mrb[0].mxu0
    %v5220 = vpop.f32.mrb[0].mxu0
    %5221 = vdwg.mxu0
    %v5222 = vadd.f32 %v5111, %v5217
    %v5223 = vadd.f32 %v5012, %v5222
    %v5224 = vadd.f32 %v5223, %v4798
    %v5225 = vld [vmem:[%s10] sm:$0x1]
    %v5227 = vlaneseq
    %v5228 = vshrl.u32 %v5227, 7
    %v5229 = vsub.s32 0, %v5228
    %v5230 = vrot.slane %v5225, %v5229
    %v5232 = vadd.f32 %v5224, %v5230
    %v5233 = vpack.c.bf16 %v5232, %v5232
    %v5234 = vld [vmem:[%s11] sm:$0xf]
    %v5235 = vld [vmem:[%s11 + $0x4] sm:$0xf]
    %v5236 = vld [vmem:[%s11 + $0x8] sm:$0xf]
    %v5237 = vld [vmem:[%s11 + $0xc] sm:$0xf]
    %v5238 = vld [vmem:[%s11 + $0x10] sm:$0xf]
    %v5239 = vld [vmem:[%s11 + $0x14] sm:$0xf]
    %v5240 = vld [vmem:[%s11 + $0x18] sm:$0xf]
    %v5241 = vld [vmem:[%s11 + $0x1c] sm:$0xf]
    %v5242 = vld [vmem:[%s11 + $0x20] sm:$0xf]
    %v5243 = vld [vmem:[%s11 + $0x24] sm:$0xf]
    %v5244 = vld [vmem:[%s11 + $0x28] sm:$0xf]
    %v5245 = vld [vmem:[%s11 + $0x2c] sm:$0xf]
    %v5246 = vld [vmem:[%s11 + $0x30] sm:$0xf]
    %v5247 = vld [vmem:[%s11 + $0x34] sm:$0xf]
    %v5248 = vld [vmem:[%s11 + $0x38] sm:$0xf]
    %v5249 = vld [vmem:[%s11 + $0x3c] sm:$0xf]
    %v5250 = vld [vmem:[%s12] sm:$0x1]
    %v5252 = vlaneseq
    %v5253 = vshrl.u32 %v5252, 7
    %v5254 = vsub.s32 0, %v5253
    %v5255 = vrot.slane %v5250, %v5254
    %v5273 = vunpack.c.l.b16 %v5234
    %v5274 = vunpack.c.l.b16 %v5235
    %v5275 = vunpack.c.l.b16 %v5236
    %v5276 = vunpack.c.l.b16 %v5237
    %v5277 = vunpack.c.l.b16 %v5238
    %v5278 = vunpack.c.l.b16 %v5239
    %v5279 = vunpack.c.l.b16 %v5240
    %v5280 = vunpack.c.l.b16 %v5241
    %v5281 = vunpack.c.l.b16 %v5242
    %v5282 = vunpack.c.l.b16 %v5243
    %v5283 = vunpack.c.l.b16 %v5244
    %v5284 = vunpack.c.l.b16 %v5245
    %v5285 = vunpack.c.l.b16 %v5246
    %v5286 = vunpack.c.l.b16 %v5247
    %v5287 = vunpack.c.l.b16 %v5248
    %v5288 = vunpack.c.l.b16 %v5249
    %v5289 = vpack.c.b16 %v5274, %v5273
    %v5290 = vpack.c.b16 %v5276, %v5275
    %v5291 = vpack.c.b16 %v5278, %v5277
    %v5292 = vpack.c.b16 %v5280, %v5279
    %v5293 = vpack.c.b16 %v5282, %v5281
    %v5294 = vpack.c.b16 %v5284, %v5283
    %v5295 = vpack.c.b16 %v5286, %v5285
    %v5296 = vpack.c.b16 %v5288, %v5287
    %5305 = vmatprep.subr.bf16.mxu0 0
    %5306 = vmatpush1.bf16.msra.mxu0 %v5289
    %5307 = vmatprep.subr.bf16.mxu0 0
    %5308 = vmatpush1.bf16.msra.mxu0 %v5290
    %5309 = vmatprep.subr.bf16.mxu0 0
    %5310 = vmatpush1.bf16.msra.mxu0 %v5291
    %5311 = vmatprep.subr.bf16.mxu0 0
    %5312 = vmatpush1.bf16.msra.mxu0 %v5292
    %5313 = vmatprep.subr.bf16.mxu0 0
    %5314 = vmatpush1.bf16.msra.mxu0 %v5293
    %5315 = vmatprep.subr.bf16.mxu0 0
    %5316 = vmatpush1.bf16.msra.mxu0 %v5294
    %5317 = vmatprep.subr.bf16.mxu0 0
    %5318 = vmatpush1.bf16.msra.mxu0 %v5295
    %5319 = vmatprep.subr.bf16.mxu0 0
    %5320 = vmatpush1.bf16.msra.mxu0 %v5296
    %5321 = vmatprep.subr.bf16.mxu0 0
    %5322 = vmatpush1.bf16.msra.mxu0 0
    %5323 = vmatprep.subr.bf16.mxu0 0
    %5324 = vmatpush1.bf16.msra.mxu0 0
    %5325 = vmatprep.subr.bf16.mxu0 0
    %5326 = vmatpush1.bf16.msra.mxu0 0
    %5327 = vmatprep.subr.bf16.mxu0 0
    %5328 = vmatpush1.bf16.msra.mxu0 0
    %5329 = vmatprep.subr.bf16.mxu0 0
    %5330 = vmatpush1.bf16.msra.mxu0 0
    %5331 = vmatprep.subr.bf16.mxu0 0
    %5332 = vmatpush1.bf16.msra.mxu0 0
    %5333 = vmatprep.subr.bf16.mxu0 0
    %5334 = vmatpush1.bf16.msra.mxu0 0
    %5335 = vmatprep.subr.bf16.mxu0 0
    %5336 = vmatpush1.bf16.msra.mxu0 0
    %5337 = vmatprep.mubr.bf16.mxu0 0
    %5338 = vmatmul.mubr.bf16.gmra.mrb[0].mxu0 %v5233
    %v5339 = vpop.f32.mrb[0].mxu0
    %v5340 = vadd.f32 %v5255, %v5339
    %v5341 = vpop.f32.mrb[0].mxu0
    %v5342 = vpop.f32.mrb[0].mxu0
    %v5343 = vpop.f32.mrb[0].mxu0
    %5344 = vdwg.mxu0
    %vm5345 = vcmask 156672
    %5346 = vst.msk [vmem:[%s13] sm:$0x3] %vm5345, %v5340
    // Predicated region
    $region58: #{cnn_forward.1} parent=1 // pred_check
      _
    $region59: #{cnn_forward.1} parent=1 // pred_check_branch
      %5348 = sbr.rel (0) target = $region61
    $region60: #{cnn_forward.1} parent=1 // pred_region
      _
    $region61: #{cnn_forward.1} parent=1 // pred_fallthru
      _
    // Predicated region
    $region62: #{cnn_forward.1} parent=1 // pred_check
      _
    $region63: #{cnn_forward.1} parent=1 // pred_check_branch
      %5350 = sbr.rel (0) target = $region65
    $region64: #{cnn_forward.1} parent=1 // pred_region
      _
    $region65: #{cnn_forward.1} parent=1 // pred_fallthru
      _
    %5351 = vsyncpa [#allocation3], 1

</llo_original>
